<compile_context>
chip_gen: v7x
topology: tpu7x:2x2x1
jax: 0.10.0
libtpu: 0.0.40
codegen_flags: <defaults>
</compile_context>

<pallas_src>
import functools

import jax
import jax.numpy as jnp
from jax.experimental import pallas as pl
from jax.experimental.pallas import tpu as pltpu


def _round_up(x, m):
    return (x + m - 1) // m * m


def _sigmoid_exact(z):
    return 1.0 / (1.0 + jnp.exp(-z))


# ----------------------------- Pallas kernel ------------------------------

def _lstm_pool_fcn_kernel(x_ref, wih_ref, whh_ref, b_ref,
                          wf1_ref, bf1_ref, wf2_ref, bf2_ref,
                          wf3_ref, bf3_ref, out_ref,
                          xg_ref, h_ref, c_ref, pooled_ref,
                          *, B_pad, T, T_pad, H, CHUNK):
    """One grid step = CHUNK timesteps: projection + recurrence (+ FCN at end)."""
    chunk = pl.program_id(0)
    last_chunk = pl.num_programs(0) - 1

    def sigm(z):
        # exp -> EUP, approximate reciprocal -> EUP; keeps divides off the
        # serial VPU chain.
        return pl.reciprocal(1.0 + jnp.exp(-z), approx=True)

    @pl.when(chunk == 0)
    def _():
        h_ref[...] = jnp.zeros_like(h_ref)
        c_ref[...] = jnp.zeros_like(c_ref)
        pooled_ref[...] = jnp.zeros_like(pooled_ref)

    # ---- Stage 1 (per chunk): input projection for CHUNK timesteps in one
    # lane-dense bf16 MXU matmul with f32 accumulation; bias folded in.
    xg_ref[...] = (jnp.dot(x_ref[...], wih_ref[...],
                           preferred_element_type=jnp.float32)
                   + b_ref[...])

    lane_t = jax.lax.broadcasted_iota(jnp.int32, (B_pad, T_pad), 1)
    t0 = chunk * CHUNK

    h = h_ref[...]
    c = c_ref[...]
    pooled = pooled_ref[...]

    # ---- Stage 2: sequential LSTM recurrence, fully unrolled within the
    # chunk (static, sublane-aligned slices).  PyTorch gate order i, f, g, o.
    for s in range(CHUNK):
        t = t0 + s
        gates = (xg_ref[s * B_pad:(s + 1) * B_pad, :]
                 + jnp.dot(h.astype(jnp.bfloat16), whh_ref[...],
                           preferred_element_type=jnp.float32))   # (B_pad, 4H)
        i_g = sigm(gates[:, 0:H])
        f_g = sigm(gates[:, H:2 * H])
        g_g = jnp.tanh(gates[:, 2 * H:3 * H])
        o_g = sigm(gates[:, 3 * H:4 * H])
        c_new = f_g * c + i_g * g_g
        h_new = o_g * jnp.tanh(c_new)

        valid = t < T                                  # mask padded tail steps
        c = jnp.where(valid, c_new, c)
        h = jnp.where(valid, h_new, h)
        # MaxPool1d(hidden) for this timestep, scattered into lane t.
        m = jnp.max(h_new, axis=1, keepdims=True)      # (B_pad, 1)
        pooled = jnp.where(jnp.logical_and(lane_t == t, valid), m, pooled)

    h_ref[...] = h
    c_ref[...] = c
    pooled_ref[...] = pooled

    # ---- Stage 3: FCN  num_patch -> 128 -> 32 -> 1, only on the last chunk.
    @pl.when(chunk == last_chunk)
    def _():
        z1 = jnp.maximum(jnp.dot(pooled, wf1_ref[...],
                                 preferred_element_type=jnp.float32)
                         + bf1_ref[...], 0.0)
        z2 = jnp.maximum(jnp.dot(z1, wf2_ref[...],
                                 preferred_element_type=jnp.float32)
                         + bf2_ref[...], 0.0)
        # Final 32 -> 1 layer as multiply + lane reduce (avoids a degenerate
        # N=1 MXU matmul).
        out = jnp.sum(z2 * wf3_ref[...], axis=1, keepdims=True) + bf3_ref[...]
        out_ref[...] = out.astype(out_ref.dtype)


# ------------------------------- wrapper -----------------------------------

def embedded_vector_classifier_forward(params, x, *, chunk=8):
    """Forward of EmbeddedVectorClassifier; x: (B, num_patch, embedding_dim)."""
    B, T, E = x.shape
    H = params["w_hh"].shape[1]
    G = 4 * H
    F1 = params["wf1"].shape[0]          # 128
    F2 = params["wf2"].shape[0]          # 32

    B_pad = _round_up(max(B, 8), 8)      # sublane tile
    E_pad = _round_up(E, 128)            # lane tile, LSTM contraction dim
    T_pad = _round_up(T, 128)            # lane tile, FCN contraction dim
    n_chunks = pl.cdiv(T, chunk)
    T_grid = n_chunks * chunk            # timesteps incl. masked padding

    # ---- host-side layout plumbing: cast fused with transpose/pad/reshape.
    x_tm = jnp.transpose(x.astype(jnp.bfloat16), (1, 0, 2))          # (T, B, E)
    x_tm = jnp.pad(x_tm, ((0, T_grid - T), (0, B_pad - B), (0, E_pad - E)))
    x2d = x_tm.reshape(T_grid * B_pad, E_pad)                        # time-major rows

    wih_t = jnp.pad(jnp.transpose(params["w_ih"]),
                    ((0, E_pad - E), (0, 0))).astype(jnp.bfloat16)   # (E_pad, 4H)
    whh_t = jnp.transpose(params["w_hh"]).astype(jnp.bfloat16)       # (H, 4H)
    b_g = (params["b_ih"] + params["b_hh"]).reshape(1, G).astype(jnp.float32)

    wf1_t = jnp.pad(jnp.transpose(params["wf1"]), ((0, T_pad - T), (0, 0)))  # (T_pad, F1)
    bf1 = params["bf1"].reshape(1, F1)
    wf2_t = jnp.transpose(params["wf2"])                             # (F1, F2)
    bf2 = params["bf2"].reshape(1, F2)
    wf3 = params["wf3"].reshape(1, F2)                               # (1, F2)
    bf3 = params["bf3"].reshape(1, 1)

    kernel = functools.partial(_lstm_pool_fcn_kernel,
                               B_pad=B_pad, T=T, T_pad=T_pad, H=H, CHUNK=chunk)

    in_specs = [
        # x: one chunk of timesteps per grid step (double-buffered DMA).
        pl.BlockSpec((chunk * B_pad, E_pad), lambda c: (c, 0)),
        # Weights / biases: full-array blocks, constant index map -> resident.
        pl.BlockSpec(wih_t.shape, lambda c: (0, 0)),
        pl.BlockSpec(whh_t.shape, lambda c: (0, 0)),
        pl.BlockSpec(b_g.shape, lambda c: (0, 0)),
        pl.BlockSpec(wf1_t.shape, lambda c: (0, 0)),
        pl.BlockSpec(bf1.shape, lambda c: (0, 0)),
        pl.BlockSpec(wf2_t.shape, lambda c: (0, 0)),
        pl.BlockSpec(bf2.shape, lambda c: (0, 0)),
        pl.BlockSpec(wf3.shape, lambda c: (0, 0)),
        pl.BlockSpec(bf3.shape, lambda c: (0, 0)),
    ]

    flops = int(2 * T_grid * B_pad * E_pad * G          # input projection
                + 2 * T_grid * B_pad * H * G            # recurrent matmuls
                + 2 * B_pad * (T_pad * F1 + F1 * F2 + F2))
    transcendentals = int(T_grid * B_pad * 5 * H)        # exps / tanhs / recips
    bytes_accessed = int(x2d.size * 2 + 4 * B_pad
                         + 2 * (wih_t.size + whh_t.size)
                         + 4 * (b_g.size + wf1_t.size + bf1.size + wf2_t.size
                                + bf2.size + wf3.size + bf3.size))

    out = pl.pallas_call(
        kernel,
        out_shape=jax.ShapeDtypeStruct((B_pad, 1), jnp.float32),
        grid_spec=pltpu.PrefetchScalarGridSpec(
            num_scalar_prefetch=0,
            grid=(n_chunks,),
            in_specs=in_specs,
            out_specs=pl.BlockSpec((B_pad, 1), lambda c: (0, 0)),
            scratch_shapes=[
                pltpu.VMEM((chunk * B_pad, G), jnp.float32),   # per-chunk x@Wih
                pltpu.VMEM((B_pad, H), jnp.float32),           # h carry
                pltpu.VMEM((B_pad, H), jnp.float32),           # c carry
                pltpu.VMEM((B_pad, T_pad), jnp.float32),       # pooled carry
            ]),
        compiler_params=pltpu.CompilerParams(
            dimension_semantics=("arbitrary",)),
        cost_estimate=pl.CostEstimate(flops=flops,
                                      transcendentals=transcendentals,
                                      bytes_accessed=bytes_accessed),
    )(x2d, wih_t, whh_t, b_g, wf1_t, bf1, wf2_t, bf2, wf3, bf3)
    return out[:B]


# ------------------------------ parameters ---------------------------------

def init_params(key, *, embedding_dim=1000, hidden_size=128, num_patch=68):
    """PyTorch-layout parameters (LSTM + fcn), deterministic synthetic values."""
    H, E, T = hidden_size, embedding_dim, num_patch
    ks = jax.random.split(key, 10)

    def rnd(k, shape, scale):
        return (scale * jax.random.normal(k, shape, jnp.float32)).astype(jnp.float32)

    return {
        "w_ih": rnd(ks[0], (4 * H, E), 1.0 / (E ** 0.5)),
        "b_ih": rnd(ks[1], (4 * H,), 0.05),
        "w_hh": rnd(ks[2], (4 * H, H), 1.0 / (H ** 0.5)),
        "b_hh": rnd(ks[3], (4 * H,), 0.05),
        "wf1": rnd(ks[4], (128, T), 1.0 / (T ** 0.5)),
        "bf1": rnd(ks[5], (128,), 0.05),
        "wf2": rnd(ks[6], (32, 128), 1.0 / (128 ** 0.5)),
        "bf2": rnd(ks[7], (32,), 0.05),
        "wf3": rnd(ks[8], (1, 32), 1.0 / (32 ** 0.5)),
        "bf3": rnd(ks[9], (1,), 0.05),
    }


# --------------------------- pure-JAX reference -----------------------------

def embedded_vector_classifier_reference(params, x):
    B, T, E = x.shape
    H = params["w_hh"].shape[1]
    wih_t = jnp.transpose(params["w_ih"])
    whh_t = jnp.transpose(params["w_hh"])
    b = params["b_ih"] + params["b_hh"]

    def step(carry, x_t):
        h, c = carry
        gates = x_t @ wih_t + h @ whh_t + b
        i_g = _sigmoid_exact(gates[:, 0:H])
        f_g = _sigmoid_exact(gates[:, H:2 * H])
        g_g = jnp.tanh(gates[:, 2 * H:3 * H])
        o_g = _sigmoid_exact(gates[:, 3 * H:4 * H])
        c = f_g * c + i_g * g_g
        h = o_g * jnp.tanh(c)
        return (h, c), h

    h0 = jnp.zeros((B, H), jnp.float32)
    c0 = jnp.zeros((B, H), jnp.float32)
    (_, _), hs = jax.lax.scan(step, (h0, c0), jnp.transpose(x, (1, 0, 2)))
    hs = jnp.transpose(hs, (1, 0, 2))              # (B, T, H)
    pooled = jnp.max(hs, axis=2)                   # MaxPool1d(hidden) + view -> (B, T)
    z1 = jnp.maximum(pooled @ params["wf1"].T + params["bf1"], 0.0)
    z2 = jnp.maximum(z1 @ params["wf2"].T + params["bf2"], 0.0)
    return z2 @ params["wf3"].T + params["bf3"]


# ---------------------------------- main ------------------------------------

if __name__ == "__main__":
    # Module defaults: embedding_dim=1000, hidden_size=128, num_patch=68.
    E, H, T = 1000, 128, 68
    B = 2

    key = jax.random.PRNGKey(0)
    kp, kx = jax.random.split(key)
    params = init_params(kp, embedding_dim=E, hidden_size=H, num_patch=T)
    x = jax.random.normal(kx, (B, T, E), jnp.float32)

    fwd = jax.jit(embedded_vector_classifier_forward)
    out = jax.block_until_ready(fwd(params, x))
    assert out.shape == (B, 1) and out.dtype == jnp.float32

    ref = jax.block_until_ready(jax.jit(embedded_vector_classifier_reference)(params, x))
    # bf16 MXU operands + approx-reciprocal sigmoid vs. exact-f32 reference:
    # error through the 68-step recurrence stays at the few-1e-3 level.
    assert jnp.allclose(out, ref, atol=2e-2, rtol=2e-2)

    print("KERNEL_OK")
</pallas_src>

<mosaic_0001>
module attributes {stable_mosaic.version = 11 : i64} {
  func.func @_lstm_pool_fcn_kernel(%arg0: i32, %arg1: memref<64x1024xbf16, #tpu.memory_space<vmem>>, %arg2: memref<1024x512xbf16, #tpu.memory_space<vmem>>, %arg3: memref<128x512xbf16, #tpu.memory_space<vmem>>, %arg4: memref<1x512xf32, #tpu.memory_space<vmem>>, %arg5: memref<128x128xf32, #tpu.memory_space<vmem>>, %arg6: memref<1x128xf32, #tpu.memory_space<vmem>>, %arg7: memref<128x32xf32, #tpu.memory_space<vmem>>, %arg8: memref<1x32xf32, #tpu.memory_space<vmem>>, %arg9: memref<1x32xf32, #tpu.memory_space<vmem>>, %arg10: memref<1x1xf32, #tpu.memory_space<vmem>>, %arg11: memref<8x1xf32, #tpu.memory_space<vmem>>, %arg12: memref<64x512xf32, #tpu.memory_space<vmem>>, %arg13: memref<8x128xf32, #tpu.memory_space<vmem>>, %arg14: memref<8x128xf32, #tpu.memory_space<vmem>>, %arg15: memref<8x128xf32, #tpu.memory_space<vmem>>) attributes {dimension_semantics = [#tpu.dimension_semantics<arbitrary>], iteration_bounds = array<i64: 9>, scalar_prefetch = 0 : i64, scratch_operands = 4 : i64, tpu.core_type = #tpu.core_type<tc>, window_params = [{transform_indices = @transform_0, window_bounds = array<i64: 64, 1024>}, {pipeline_mode = #tpu.pipeline_mode<synchronous>, transform_indices = @transform_1, window_bounds = array<i64: 1024, 512>}, {pipeline_mode = #tpu.pipeline_mode<synchronous>, transform_indices = @transform_2, window_bounds = array<i64: 128, 512>}, {pipeline_mode = #tpu.pipeline_mode<synchronous>, transform_indices = @transform_3, window_bounds = array<i64: 1, 512>}, {pipeline_mode = #tpu.pipeline_mode<synchronous>, transform_indices = @transform_4, window_bounds = array<i64: 128, 128>}, {pipeline_mode = #tpu.pipeline_mode<synchronous>, transform_indices = @transform_5, window_bounds = array<i64: 1, 128>}, {pipeline_mode = #tpu.pipeline_mode<synchronous>, transform_indices = @transform_6, window_bounds = array<i64: 128, 32>}, {pipeline_mode = #tpu.pipeline_mode<synchronous>, transform_indices = @transform_7, window_bounds = array<i64: 1, 32>}, {pipeline_mode = #tpu.pipeline_mode<synchronous>, transform_indices = @transform_8, window_bounds = array<i64: 1, 32>}, {pipeline_mode = #tpu.pipeline_mode<synchronous>, transform_indices = @transform_9, window_bounds = array<i64: 1, 1>}, {pipeline_mode = #tpu.pipeline_mode<synchronous>, transform_indices = @transform_10, window_bounds = array<i64: 8, 1>}]} {
    %c0_i32 = arith.constant 0 : i32
    %0 = arith.cmpi eq, %arg0, %c0_i32 : i32
    %1 = arith.extui %0 : i1 to i32
    %c0_i32_0 = arith.constant 0 : i32
    %2 = arith.cmpi ne, %1, %c0_i32_0 : i32
    scf.if %2 {
      %cst_119 = arith.constant 0.000000e+00 : f32
      %389 = vector.broadcast %cst_119 : f32 to vector<8x128xf32>
      %c0_120 = arith.constant 0 : index
      %c0_121 = arith.constant 0 : index
      %390 = vector.load %arg13[%c0_120, %c0_121] : memref<8x128xf32, #tpu.memory_space<vmem>>, vector<8x128xf32>
      tpu.vector_store %arg13[%c0_120, %c0_121], %389 {strides = array<i32>} : memref<8x128xf32, #tpu.memory_space<vmem>>, vector<8x128xf32>,
      %cst_122 = arith.constant 0.000000e+00 : f32
      %391 = vector.broadcast %cst_122 : f32 to vector<8x128xf32>
      %c0_123 = arith.constant 0 : index
      %c0_124 = arith.constant 0 : index
      %392 = vector.load %arg14[%c0_123, %c0_124] : memref<8x128xf32, #tpu.memory_space<vmem>>, vector<8x128xf32>
      tpu.vector_store %arg14[%c0_123, %c0_124], %391 {strides = array<i32>} : memref<8x128xf32, #tpu.memory_space<vmem>>, vector<8x128xf32>,
      %cst_125 = arith.constant 0.000000e+00 : f32
      %393 = vector.broadcast %cst_125 : f32 to vector<8x128xf32>
      %c0_126 = arith.constant 0 : index
      %c0_127 = arith.constant 0 : index
      %394 = vector.load %arg15[%c0_126, %c0_127] : memref<8x128xf32, #tpu.memory_space<vmem>>, vector<8x128xf32>
      tpu.vector_store %arg15[%c0_126, %c0_127], %393 {strides = array<i32>} : memref<8x128xf32, #tpu.memory_space<vmem>>, vector<8x128xf32>,
    } else {
    }
    %c0 = arith.constant 0 : index
    %c0_1 = arith.constant 0 : index
    %3 = vector.load %arg1[%c0, %c0_1] : memref<64x1024xbf16, #tpu.memory_space<vmem>>, vector<64x1024xbf16>
    %c0_2 = arith.constant 0 : index
    %c0_3 = arith.constant 0 : index
    %4 = vector.load %arg2[%c0_2, %c0_3] : memref<1024x512xbf16, #tpu.memory_space<vmem>>, vector<1024x512xbf16>
    %cst = arith.constant dense<0.000000e+00> : vector<64x512xf32>
    %5 = tpu.matmul %3, %4, %cst {dimension_numbers = #tpu.dot_dimension_numbers<[1], [0], [0], [1], [0, 0, 1, 1], [], []>} : vector<64x1024xbf16>, vector<1024x512xbf16>, vector<64x512xf32> -> vector<64x512xf32>
    %c0_4 = arith.constant 0 : index
    %c0_5 = arith.constant 0 : index
    %6 = vector.load %arg4[%c0_4, %c0_5] : memref<1x512xf32, #tpu.memory_space<vmem>>, vector<1x512xf32>
    %7 = vector.broadcast %6 : vector<1x512xf32> to vector<64x512xf32>
    %8 = arith.addf %5, %7 : vector<64x512xf32>
    %c0_6 = arith.constant 0 : index
    %c0_7 = arith.constant 0 : index
    %9 = vector.load %arg12[%c0_6, %c0_7] : memref<64x512xf32, #tpu.memory_space<vmem>>, vector<64x512xf32>
    tpu.vector_store %arg12[%c0_6, %c0_7], %8 {strides = array<i32>} : memref<64x512xf32, #tpu.memory_space<vmem>>, vector<64x512xf32>,
    %10 = tpu.iota {dimensions = array<i32: 1>} : vector<8x128xi32>
    %c8_i32 = arith.constant 8 : i32
    %11 = arith.muli %arg0, %c8_i32 : i32
    %c0_8 = arith.constant 0 : index
    %c0_9 = arith.constant 0 : index
    %12 = vector.load %arg13[%c0_8, %c0_9] : memref<8x128xf32, #tpu.memory_space<vmem>>, vector<8x128xf32>
    %c0_10 = arith.constant 0 : index
    %c0_11 = arith.constant 0 : index
    %13 = vector.load %arg14[%c0_10, %c0_11] : memref<8x128xf32, #tpu.memory_space<vmem>>, vector<8x128xf32>
    %c0_12 = arith.constant 0 : index
    %c0_13 = arith.constant 0 : index
    %14 = vector.load %arg15[%c0_12, %c0_13] : memref<8x128xf32, #tpu.memory_space<vmem>>, vector<8x128xf32>
    %c0_i32_14 = arith.constant 0 : i32
    %15 = arith.addi %11, %c0_i32_14 : i32
    %c0_15 = arith.constant 0 : index
    %c0_16 = arith.constant 0 : index
    %16 = vector.load %arg12[%c0_15, %c0_16] : memref<64x512xf32, #tpu.memory_space<vmem>>, vector<8x512xf32>
    %17 = arith.truncf %12 : vector<8x128xf32> to vector<8x128xbf16>
    %c0_17 = arith.constant 0 : index
    %c0_18 = arith.constant 0 : index
    %18 = vector.load %arg3[%c0_17, %c0_18] : memref<128x512xbf16, #tpu.memory_space<vmem>>, vector<128x512xbf16>
    %cst_19 = arith.constant dense<0.000000e+00> : vector<8x512xf32>
    %19 = tpu.matmul %17, %18, %cst_19 {dimension_numbers = #tpu.dot_dimension_numbers<[1], [0], [0], [1], [0, 0, 1, 1], [], []>} : vector<8x128xbf16>, vector<128x512xbf16>, vector<8x512xf32> -> vector<8x512xf32>
    %20 = arith.addf %16, %19 : vector<8x512xf32>
    %21 = vector.extract_strided_slice %20 {offsets = [0, 0], sizes = [8, 128], strides = [1, 1]} : vector<8x512xf32> to vector<8x128xf32>
    %cst_20 = arith.constant 0.000000e+00 : f32
    %22 = vector.broadcast %cst_20 : f32 to vector<8x128xf32>
    %23 = arith.subf %22, %21 : vector<8x128xf32>
    %24 = math.exp %23 : vector<8x128xf32>
    %cst_21 = arith.constant 1.000000e+00 : f32
    %25 = vector.broadcast %cst_21 : f32 to vector<8x128xf32>
    %26 = arith.addf %25, %24 : vector<8x128xf32>
    %27 = tpu.reciprocal %26 {approx = true} : vector<8x128xf32> -> vector<8x128xf32>
    %28 = vector.extract_strided_slice %20 {offsets = [0, 128], sizes = [8, 128], strides = [1, 1]} : vector<8x512xf32> to vector<8x128xf32>
    %cst_22 = arith.constant 0.000000e+00 : f32
    %29 = vector.broadcast %cst_22 : f32 to vector<8x128xf32>
    %30 = arith.subf %29, %28 : vector<8x128xf32>
    %31 = math.exp %30 : vector<8x128xf32>
    %cst_23 = arith.constant 1.000000e+00 : f32
    %32 = vector.broadcast %cst_23 : f32 to vector<8x128xf32>
    %33 = arith.addf %32, %31 : vector<8x128xf32>
    %34 = tpu.reciprocal %33 {approx = true} : vector<8x128xf32> -> vector<8x128xf32>
    %35 = vector.extract_strided_slice %20 {offsets = [0, 256], sizes = [8, 128], strides = [1, 1]} : vector<8x512xf32> to vector<8x128xf32>
    %36 = math.tanh %35 : vector<8x128xf32>
    %37 = vector.extract_strided_slice %20 {offsets = [0, 384], sizes = [8, 128], strides = [1, 1]} : vector<8x512xf32> to vector<8x128xf32>
    %cst_24 = arith.constant 0.000000e+00 : f32
    %38 = vector.broadcast %cst_24 : f32 to vector<8x128xf32>
    %39 = arith.subf %38, %37 : vector<8x128xf32>
    %40 = math.exp %39 : vector<8x128xf32>
    %cst_25 = arith.constant 1.000000e+00 : f32
    %41 = vector.broadcast %cst_25 : f32 to vector<8x128xf32>
    %42 = arith.addf %41, %40 : vector<8x128xf32>
    %43 = tpu.reciprocal %42 {approx = true} : vector<8x128xf32> -> vector<8x128xf32>
    %44 = arith.mulf %34, %13 : vector<8x128xf32>
    %45 = arith.mulf %27, %36 : vector<8x128xf32>
    %46 = arith.addf %44, %45 : vector<8x128xf32>
    %47 = math.tanh %46 : vector<8x128xf32>
    %48 = arith.mulf %43, %47 : vector<8x128xf32>
    %c68_i32 = arith.constant 68 : i32
    %49 = arith.cmpi slt, %15, %c68_i32 : i32
    %50 = arith.select %49, %46, %13 : vector<8x128xf32>
    %51 = arith.select %49, %48, %12 : vector<8x128xf32>
    %cst_26 = arith.constant dense<0xFF800000> : vector<8xf32>
    %52 = vector.multi_reduction <maximumf>, %48, %cst_26 [1] : vector<8x128xf32> to vector<8xf32>
    %53 = vector.shape_cast %52 : vector<8xf32> to vector<8x1xf32>
    %54 = vector.broadcast %15 : i32 to vector<8x128xi32>
    %55 = arith.cmpi eq, %10, %54 : vector<8x128xi32>
    %56 = vector.broadcast %49 : i1 to vector<8x128xi1>
    %57 = arith.andi %55, %56 : vector<8x128xi1>
    %58 = vector.shape_cast %53 : vector<8x1xf32> to vector<8x1xf32>
    %59 = vector.broadcast %58 : vector<8x1xf32> to vector<8x128xf32>
    %60 = arith.select %57, %59, %14 : vector<8x128xi1>, vector<8x128xf32>
    %c1_i32 = arith.constant 1 : i32
    %61 = arith.addi %11, %c1_i32 : i32
    %c8 = arith.constant 8 : index
    %c0_27 = arith.constant 0 : index
    %62 = vector.load %arg12[%c8, %c0_27] : memref<64x512xf32, #tpu.memory_space<vmem>>, vector<8x512xf32>
    %63 = arith.truncf %51 : vector<8x128xf32> to vector<8x128xbf16>
    %c0_28 = arith.constant 0 : index
    %c0_29 = arith.constant 0 : index
    %64 = vector.load %arg3[%c0_28, %c0_29] : memref<128x512xbf16, #tpu.memory_space<vmem>>, vector<128x512xbf16>
    %cst_30 = arith.constant dense<0.000000e+00> : vector<8x512xf32>
    %65 = tpu.matmul %63, %64, %cst_30 {dimension_numbers = #tpu.dot_dimension_numbers<[1], [0], [0], [1], [0, 0, 1, 1], [], []>} : vector<8x128xbf16>, vector<128x512xbf16>, vector<8x512xf32> -> vector<8x512xf32>
    %66 = arith.addf %62, %65 : vector<8x512xf32>
    %67 = vector.extract_strided_slice %66 {offsets = [0, 0], sizes = [8, 128], strides = [1, 1]} : vector<8x512xf32> to vector<8x128xf32>
    %cst_31 = arith.constant 0.000000e+00 : f32
    %68 = vector.broadcast %cst_31 : f32 to vector<8x128xf32>
    %69 = arith.subf %68, %67 : vector<8x128xf32>
    %70 = math.exp %69 : vector<8x128xf32>
    %cst_32 = arith.constant 1.000000e+00 : f32
    %71 = vector.broadcast %cst_32 : f32 to vector<8x128xf32>
    %72 = arith.addf %71, %70 : vector<8x128xf32>
    %73 = tpu.reciprocal %72 {approx = true} : vector<8x128xf32> -> vector<8x128xf32>
    %74 = vector.extract_strided_slice %66 {offsets = [0, 128], sizes = [8, 128], strides = [1, 1]} : vector<8x512xf32> to vector<8x128xf32>
    %cst_33 = arith.constant 0.000000e+00 : f32
    %75 = vector.broadcast %cst_33 : f32 to vector<8x128xf32>
    %76 = arith.subf %75, %74 : vector<8x128xf32>
    %77 = math.exp %76 : vector<8x128xf32>
    %cst_34 = arith.constant 1.000000e+00 : f32
    %78 = vector.broadcast %cst_34 : f32 to vector<8x128xf32>
    %79 = arith.addf %78, %77 : vector<8x128xf32>
    %80 = tpu.reciprocal %79 {approx = true} : vector<8x128xf32> -> vector<8x128xf32>
    %81 = vector.extract_strided_slice %66 {offsets = [0, 256], sizes = [8, 128], strides = [1, 1]} : vector<8x512xf32> to vector<8x128xf32>
    %82 = math.tanh %81 : vector<8x128xf32>
    %83 = vector.extract_strided_slice %66 {offsets = [0, 384], sizes = [8, 128], strides = [1, 1]} : vector<8x512xf32> to vector<8x128xf32>
    %cst_35 = arith.constant 0.000000e+00 : f32
    %84 = vector.broadcast %cst_35 : f32 to vector<8x128xf32>
    %85 = arith.subf %84, %83 : vector<8x128xf32>
    %86 = math.exp %85 : vector<8x128xf32>
    %cst_36 = arith.constant 1.000000e+00 : f32
    %87 = vector.broadcast %cst_36 : f32 to vector<8x128xf32>
    %88 = arith.addf %87, %86 : vector<8x128xf32>
    %89 = tpu.reciprocal %88 {approx = true} : vector<8x128xf32> -> vector<8x128xf32>
    %90 = arith.mulf %80, %50 : vector<8x128xf32>
    %91 = arith.mulf %73, %82 : vector<8x128xf32>
    %92 = arith.addf %90, %91 : vector<8x128xf32>
    %93 = math.tanh %92 : vector<8x128xf32>
    %94 = arith.mulf %89, %93 : vector<8x128xf32>
    %c68_i32_37 = arith.constant 68 : i32
    %95 = arith.cmpi slt, %61, %c68_i32_37 : i32
    %96 = arith.select %95, %92, %50 : vector<8x128xf32>
    %97 = arith.select %95, %94, %51 : vector<8x128xf32>
    %cst_38 = arith.constant dense<0xFF800000> : vector<8xf32>
    %98 = vector.multi_reduction <maximumf>, %94, %cst_38 [1] : vector<8x128xf32> to vector<8xf32>
    %99 = vector.shape_cast %98 : vector<8xf32> to vector<8x1xf32>
    %100 = vector.broadcast %61 : i32 to vector<8x128xi32>
    %101 = arith.cmpi eq, %10, %100 : vector<8x128xi32>
    %102 = vector.broadcast %95 : i1 to vector<8x128xi1>
    %103 = arith.andi %101, %102 : vector<8x128xi1>
    %104 = vector.shape_cast %99 : vector<8x1xf32> to vector<8x1xf32>
    %105 = vector.broadcast %104 : vector<8x1xf32> to vector<8x128xf32>
    %106 = arith.select %103, %105, %60 : vector<8x128xi1>, vector<8x128xf32>
    %c2_i32 = arith.constant 2 : i32
    %107 = arith.addi %11, %c2_i32 : i32
    %c16 = arith.constant 16 : index
    %c0_39 = arith.constant 0 : index
    %108 = vector.load %arg12[%c16, %c0_39] : memref<64x512xf32, #tpu.memory_space<vmem>>, vector<8x512xf32>
    %109 = arith.truncf %97 : vector<8x128xf32> to vector<8x128xbf16>
    %c0_40 = arith.constant 0 : index
    %c0_41 = arith.constant 0 : index
    %110 = vector.load %arg3[%c0_40, %c0_41] : memref<128x512xbf16, #tpu.memory_space<vmem>>, vector<128x512xbf16>
    %cst_42 = arith.constant dense<0.000000e+00> : vector<8x512xf32>
    %111 = tpu.matmul %109, %110, %cst_42 {dimension_numbers = #tpu.dot_dimension_numbers<[1], [0], [0], [1], [0, 0, 1, 1], [], []>} : vector<8x128xbf16>, vector<128x512xbf16>, vector<8x512xf32> -> vector<8x512xf32>
    %112 = arith.addf %108, %111 : vector<8x512xf32>
    %113 = vector.extract_strided_slice %112 {offsets = [0, 0], sizes = [8, 128], strides = [1, 1]} : vector<8x512xf32> to vector<8x128xf32>
    %cst_43 = arith.constant 0.000000e+00 : f32
    %114 = vector.broadcast %cst_43 : f32 to vector<8x128xf32>
    %115 = arith.subf %114, %113 : vector<8x128xf32>
    %116 = math.exp %115 : vector<8x128xf32>
    %cst_44 = arith.constant 1.000000e+00 : f32
    %117 = vector.broadcast %cst_44 : f32 to vector<8x128xf32>
    %118 = arith.addf %117, %116 : vector<8x128xf32>
    %119 = tpu.reciprocal %118 {approx = true} : vector<8x128xf32> -> vector<8x128xf32>
    %120 = vector.extract_strided_slice %112 {offsets = [0, 128], sizes = [8, 128], strides = [1, 1]} : vector<8x512xf32> to vector<8x128xf32>
    %cst_45 = arith.constant 0.000000e+00 : f32
    %121 = vector.broadcast %cst_45 : f32 to vector<8x128xf32>
    %122 = arith.subf %121, %120 : vector<8x128xf32>
    %123 = math.exp %122 : vector<8x128xf32>
    %cst_46 = arith.constant 1.000000e+00 : f32
    %124 = vector.broadcast %cst_46 : f32 to vector<8x128xf32>
    %125 = arith.addf %124, %123 : vector<8x128xf32>
    %126 = tpu.reciprocal %125 {approx = true} : vector<8x128xf32> -> vector<8x128xf32>
    %127 = vector.extract_strided_slice %112 {offsets = [0, 256], sizes = [8, 128], strides = [1, 1]} : vector<8x512xf32> to vector<8x128xf32>
    %128 = math.tanh %127 : vector<8x128xf32>
    %129 = vector.extract_strided_slice %112 {offsets = [0, 384], sizes = [8, 128], strides = [1, 1]} : vector<8x512xf32> to vector<8x128xf32>
    %cst_47 = arith.constant 0.000000e+00 : f32
    %130 = vector.broadcast %cst_47 : f32 to vector<8x128xf32>
    %131 = arith.subf %130, %129 : vector<8x128xf32>
    %132 = math.exp %131 : vector<8x128xf32>
    %cst_48 = arith.constant 1.000000e+00 : f32
    %133 = vector.broadcast %cst_48 : f32 to vector<8x128xf32>
    %134 = arith.addf %133, %132 : vector<8x128xf32>
    %135 = tpu.reciprocal %134 {approx = true} : vector<8x128xf32> -> vector<8x128xf32>
    %136 = arith.mulf %126, %96 : vector<8x128xf32>
    %137 = arith.mulf %119, %128 : vector<8x128xf32>
    %138 = arith.addf %136, %137 : vector<8x128xf32>
    %139 = math.tanh %138 : vector<8x128xf32>
    %140 = arith.mulf %135, %139 : vector<8x128xf32>
    %c68_i32_49 = arith.constant 68 : i32
    %141 = arith.cmpi slt, %107, %c68_i32_49 : i32
    %142 = arith.select %141, %138, %96 : vector<8x128xf32>
    %143 = arith.select %141, %140, %97 : vector<8x128xf32>
    %cst_50 = arith.constant dense<0xFF800000> : vector<8xf32>
    %144 = vector.multi_reduction <maximumf>, %140, %cst_50 [1] : vector<8x128xf32> to vector<8xf32>
    %145 = vector.shape_cast %144 : vector<8xf32> to vector<8x1xf32>
    %146 = vector.broadcast %107 : i32 to vector<8x128xi32>
    %147 = arith.cmpi eq, %10, %146 : vector<8x128xi32>
    %148 = vector.broadcast %141 : i1 to vector<8x128xi1>
    %149 = arith.andi %147, %148 : vector<8x128xi1>
    %150 = vector.shape_cast %145 : vector<8x1xf32> to vector<8x1xf32>
    %151 = vector.broadcast %150 : vector<8x1xf32> to vector<8x128xf32>
    %152 = arith.select %149, %151, %106 : vector<8x128xi1>, vector<8x128xf32>
    %c3_i32 = arith.constant 3 : i32
    %153 = arith.addi %11, %c3_i32 : i32
    %c24 = arith.constant 24 : index
    %c0_51 = arith.constant 0 : index
    %154 = vector.load %arg12[%c24, %c0_51] : memref<64x512xf32, #tpu.memory_space<vmem>>, vector<8x512xf32>
    %155 = arith.truncf %143 : vector<8x128xf32> to vector<8x128xbf16>
    %c0_52 = arith.constant 0 : index
    %c0_53 = arith.constant 0 : index
    %156 = vector.load %arg3[%c0_52, %c0_53] : memref<128x512xbf16, #tpu.memory_space<vmem>>, vector<128x512xbf16>
    %cst_54 = arith.constant dense<0.000000e+00> : vector<8x512xf32>
    %157 = tpu.matmul %155, %156, %cst_54 {dimension_numbers = #tpu.dot_dimension_numbers<[1], [0], [0], [1], [0, 0, 1, 1], [], []>} : vector<8x128xbf16>, vector<128x512xbf16>, vector<8x512xf32> -> vector<8x512xf32>
    %158 = arith.addf %154, %157 : vector<8x512xf32>
    %159 = vector.extract_strided_slice %158 {offsets = [0, 0], sizes = [8, 128], strides = [1, 1]} : vector<8x512xf32> to vector<8x128xf32>
    %cst_55 = arith.constant 0.000000e+00 : f32
    %160 = vector.broadcast %cst_55 : f32 to vector<8x128xf32>
    %161 = arith.subf %160, %159 : vector<8x128xf32>
    %162 = math.exp %161 : vector<8x128xf32>
    %cst_56 = arith.constant 1.000000e+00 : f32
    %163 = vector.broadcast %cst_56 : f32 to vector<8x128xf32>
    %164 = arith.addf %163, %162 : vector<8x128xf32>
    %165 = tpu.reciprocal %164 {approx = true} : vector<8x128xf32> -> vector<8x128xf32>
    %166 = vector.extract_strided_slice %158 {offsets = [0, 128], sizes = [8, 128], strides = [1, 1]} : vector<8x512xf32> to vector<8x128xf32>
    %cst_57 = arith.constant 0.000000e+00 : f32
    %167 = vector.broadcast %cst_57 : f32 to vector<8x128xf32>
    %168 = arith.subf %167, %166 : vector<8x128xf32>
    %169 = math.exp %168 : vector<8x128xf32>
    %cst_58 = arith.constant 1.000000e+00 : f32
    %170 = vector.broadcast %cst_58 : f32 to vector<8x128xf32>
    %171 = arith.addf %170, %169 : vector<8x128xf32>
    %172 = tpu.reciprocal %171 {approx = true} : vector<8x128xf32> -> vector<8x128xf32>
    %173 = vector.extract_strided_slice %158 {offsets = [0, 256], sizes = [8, 128], strides = [1, 1]} : vector<8x512xf32> to vector<8x128xf32>
    %174 = math.tanh %173 : vector<8x128xf32>
    %175 = vector.extract_strided_slice %158 {offsets = [0, 384], sizes = [8, 128], strides = [1, 1]} : vector<8x512xf32> to vector<8x128xf32>
    %cst_59 = arith.constant 0.000000e+00 : f32
    %176 = vector.broadcast %cst_59 : f32 to vector<8x128xf32>
    %177 = arith.subf %176, %175 : vector<8x128xf32>
    %178 = math.exp %177 : vector<8x128xf32>
    %cst_60 = arith.constant 1.000000e+00 : f32
    %179 = vector.broadcast %cst_60 : f32 to vector<8x128xf32>
    %180 = arith.addf %179, %178 : vector<8x128xf32>
    %181 = tpu.reciprocal %180 {approx = true} : vector<8x128xf32> -> vector<8x128xf32>
    %182 = arith.mulf %172, %142 : vector<8x128xf32>
    %183 = arith.mulf %165, %174 : vector<8x128xf32>
    %184 = arith.addf %182, %183 : vector<8x128xf32>
    %185 = math.tanh %184 : vector<8x128xf32>
    %186 = arith.mulf %181, %185 : vector<8x128xf32>
    %c68_i32_61 = arith.constant 68 : i32
    %187 = arith.cmpi slt, %153, %c68_i32_61 : i32
    %188 = arith.select %187, %184, %142 : vector<8x128xf32>
    %189 = arith.select %187, %186, %143 : vector<8x128xf32>
    %cst_62 = arith.constant dense<0xFF800000> : vector<8xf32>
    %190 = vector.multi_reduction <maximumf>, %186, %cst_62 [1] : vector<8x128xf32> to vector<8xf32>
    %191 = vector.shape_cast %190 : vector<8xf32> to vector<8x1xf32>
    %192 = vector.broadcast %153 : i32 to vector<8x128xi32>
    %193 = arith.cmpi eq, %10, %192 : vector<8x128xi32>
    %194 = vector.broadcast %187 : i1 to vector<8x128xi1>
    %195 = arith.andi %193, %194 : vector<8x128xi1>
    %196 = vector.shape_cast %191 : vector<8x1xf32> to vector<8x1xf32>
    %197 = vector.broadcast %196 : vector<8x1xf32> to vector<8x128xf32>
    %198 = arith.select %195, %197, %152 : vector<8x128xi1>, vector<8x128xf32>
    %c4_i32 = arith.constant 4 : i32
    %199 = arith.addi %11, %c4_i32 : i32
    %c32 = arith.constant 32 : index
    %c0_63 = arith.constant 0 : index
    %200 = vector.load %arg12[%c32, %c0_63] : memref<64x512xf32, #tpu.memory_space<vmem>>, vector<8x512xf32>
    %201 = arith.truncf %189 : vector<8x128xf32> to vector<8x128xbf16>
    %c0_64 = arith.constant 0 : index
    %c0_65 = arith.constant 0 : index
    %202 = vector.load %arg3[%c0_64, %c0_65] : memref<128x512xbf16, #tpu.memory_space<vmem>>, vector<128x512xbf16>
    %cst_66 = arith.constant dense<0.000000e+00> : vector<8x512xf32>
    %203 = tpu.matmul %201, %202, %cst_66 {dimension_numbers = #tpu.dot_dimension_numbers<[1], [0], [0], [1], [0, 0, 1, 1], [], []>} : vector<8x128xbf16>, vector<128x512xbf16>, vector<8x512xf32> -> vector<8x512xf32>
    %204 = arith.addf %200, %203 : vector<8x512xf32>
    %205 = vector.extract_strided_slice %204 {offsets = [0, 0], sizes = [8, 128], strides = [1, 1]} : vector<8x512xf32> to vector<8x128xf32>
    %cst_67 = arith.constant 0.000000e+00 : f32
    %206 = vector.broadcast %cst_67 : f32 to vector<8x128xf32>
    %207 = arith.subf %206, %205 : vector<8x128xf32>
    %208 = math.exp %207 : vector<8x128xf32>
    %cst_68 = arith.constant 1.000000e+00 : f32
    %209 = vector.broadcast %cst_68 : f32 to vector<8x128xf32>
    %210 = arith.addf %209, %208 : vector<8x128xf32>
    %211 = tpu.reciprocal %210 {approx = true} : vector<8x128xf32> -> vector<8x128xf32>
    %212 = vector.extract_strided_slice %204 {offsets = [0, 128], sizes = [8, 128], strides = [1, 1]} : vector<8x512xf32> to vector<8x128xf32>
    %cst_69 = arith.constant 0.000000e+00 : f32
    %213 = vector.broadcast %cst_69 : f32 to vector<8x128xf32>
    %214 = arith.subf %213, %212 : vector<8x128xf32>
    %215 = math.exp %214 : vector<8x128xf32>
    %cst_70 = arith.constant 1.000000e+00 : f32
    %216 = vector.broadcast %cst_70 : f32 to vector<8x128xf32>
    %217 = arith.addf %216, %215 : vector<8x128xf32>
    %218 = tpu.reciprocal %217 {approx = true} : vector<8x128xf32> -> vector<8x128xf32>
    %219 = vector.extract_strided_slice %204 {offsets = [0, 256], sizes = [8, 128], strides = [1, 1]} : vector<8x512xf32> to vector<8x128xf32>
    %220 = math.tanh %219 : vector<8x128xf32>
    %221 = vector.extract_strided_slice %204 {offsets = [0, 384], sizes = [8, 128], strides = [1, 1]} : vector<8x512xf32> to vector<8x128xf32>
    %cst_71 = arith.constant 0.000000e+00 : f32
    %222 = vector.broadcast %cst_71 : f32 to vector<8x128xf32>
    %223 = arith.subf %222, %221 : vector<8x128xf32>
    %224 = math.exp %223 : vector<8x128xf32>
    %cst_72 = arith.constant 1.000000e+00 : f32
    %225 = vector.broadcast %cst_72 : f32 to vector<8x128xf32>
    %226 = arith.addf %225, %224 : vector<8x128xf32>
    %227 = tpu.reciprocal %226 {approx = true} : vector<8x128xf32> -> vector<8x128xf32>
    %228 = arith.mulf %218, %188 : vector<8x128xf32>
    %229 = arith.mulf %211, %220 : vector<8x128xf32>
    %230 = arith.addf %228, %229 : vector<8x128xf32>
    %231 = math.tanh %230 : vector<8x128xf32>
    %232 = arith.mulf %227, %231 : vector<8x128xf32>
    %c68_i32_73 = arith.constant 68 : i32
    %233 = arith.cmpi slt, %199, %c68_i32_73 : i32
    %234 = arith.select %233, %230, %188 : vector<8x128xf32>
    %235 = arith.select %233, %232, %189 : vector<8x128xf32>
    %cst_74 = arith.constant dense<0xFF800000> : vector<8xf32>
    %236 = vector.multi_reduction <maximumf>, %232, %cst_74 [1] : vector<8x128xf32> to vector<8xf32>
    %237 = vector.shape_cast %236 : vector<8xf32> to vector<8x1xf32>
    %238 = vector.broadcast %199 : i32 to vector<8x128xi32>
    %239 = arith.cmpi eq, %10, %238 : vector<8x128xi32>
    %240 = vector.broadcast %233 : i1 to vector<8x128xi1>
    %241 = arith.andi %239, %240 : vector<8x128xi1>
    %242 = vector.shape_cast %237 : vector<8x1xf32> to vector<8x1xf32>
    %243 = vector.broadcast %242 : vector<8x1xf32> to vector<8x128xf32>
    %244 = arith.select %241, %243, %198 : vector<8x128xi1>, vector<8x128xf32>
    %c5_i32 = arith.constant 5 : i32
    %245 = arith.addi %11, %c5_i32 : i32
    %c40 = arith.constant 40 : index
    %c0_75 = arith.constant 0 : index
    %246 = vector.load %arg12[%c40, %c0_75] : memref<64x512xf32, #tpu.memory_space<vmem>>, vector<8x512xf32>
    %247 = arith.truncf %235 : vector<8x128xf32> to vector<8x128xbf16>
    %c0_76 = arith.constant 0 : index
    %c0_77 = arith.constant 0 : index
    %248 = vector.load %arg3[%c0_76, %c0_77] : memref<128x512xbf16, #tpu.memory_space<vmem>>, vector<128x512xbf16>
    %cst_78 = arith.constant dense<0.000000e+00> : vector<8x512xf32>
    %249 = tpu.matmul %247, %248, %cst_78 {dimension_numbers = #tpu.dot_dimension_numbers<[1], [0], [0], [1], [0, 0, 1, 1], [], []>} : vector<8x128xbf16>, vector<128x512xbf16>, vector<8x512xf32> -> vector<8x512xf32>
    %250 = arith.addf %246, %249 : vector<8x512xf32>
    %251 = vector.extract_strided_slice %250 {offsets = [0, 0], sizes = [8, 128], strides = [1, 1]} : vector<8x512xf32> to vector<8x128xf32>
    %cst_79 = arith.constant 0.000000e+00 : f32
    %252 = vector.broadcast %cst_79 : f32 to vector<8x128xf32>
    %253 = arith.subf %252, %251 : vector<8x128xf32>
    %254 = math.exp %253 : vector<8x128xf32>
    %cst_80 = arith.constant 1.000000e+00 : f32
    %255 = vector.broadcast %cst_80 : f32 to vector<8x128xf32>
    %256 = arith.addf %255, %254 : vector<8x128xf32>
    %257 = tpu.reciprocal %256 {approx = true} : vector<8x128xf32> -> vector<8x128xf32>
    %258 = vector.extract_strided_slice %250 {offsets = [0, 128], sizes = [8, 128], strides = [1, 1]} : vector<8x512xf32> to vector<8x128xf32>
    %cst_81 = arith.constant 0.000000e+00 : f32
    %259 = vector.broadcast %cst_81 : f32 to vector<8x128xf32>
    %260 = arith.subf %259, %258 : vector<8x128xf32>
    %261 = math.exp %260 : vector<8x128xf32>
    %cst_82 = arith.constant 1.000000e+00 : f32
    %262 = vector.broadcast %cst_82 : f32 to vector<8x128xf32>
    %263 = arith.addf %262, %261 : vector<8x128xf32>
    %264 = tpu.reciprocal %263 {approx = true} : vector<8x128xf32> -> vector<8x128xf32>
    %265 = vector.extract_strided_slice %250 {offsets = [0, 256], sizes = [8, 128], strides = [1, 1]} : vector<8x512xf32> to vector<8x128xf32>
    %266 = math.tanh %265 : vector<8x128xf32>
    %267 = vector.extract_strided_slice %250 {offsets = [0, 384], sizes = [8, 128], strides = [1, 1]} : vector<8x512xf32> to vector<8x128xf32>
    %cst_83 = arith.constant 0.000000e+00 : f32
    %268 = vector.broadcast %cst_83 : f32 to vector<8x128xf32>
    %269 = arith.subf %268, %267 : vector<8x128xf32>
    %270 = math.exp %269 : vector<8x128xf32>
    %cst_84 = arith.constant 1.000000e+00 : f32
    %271 = vector.broadcast %cst_84 : f32 to vector<8x128xf32>
    %272 = arith.addf %271, %270 : vector<8x128xf32>
    %273 = tpu.reciprocal %272 {approx = true} : vector<8x128xf32> -> vector<8x128xf32>
    %274 = arith.mulf %264, %234 : vector<8x128xf32>
    %275 = arith.mulf %257, %266 : vector<8x128xf32>
    %276 = arith.addf %274, %275 : vector<8x128xf32>
    %277 = math.tanh %276 : vector<8x128xf32>
    %278 = arith.mulf %273, %277 : vector<8x128xf32>
    %c68_i32_85 = arith.constant 68 : i32
    %279 = arith.cmpi slt, %245, %c68_i32_85 : i32
    %280 = arith.select %279, %276, %234 : vector<8x128xf32>
    %281 = arith.select %279, %278, %235 : vector<8x128xf32>
    %cst_86 = arith.constant dense<0xFF800000> : vector<8xf32>
    %282 = vector.multi_reduction <maximumf>, %278, %cst_86 [1] : vector<8x128xf32> to vector<8xf32>
    %283 = vector.shape_cast %282 : vector<8xf32> to vector<8x1xf32>
    %284 = vector.broadcast %245 : i32 to vector<8x128xi32>
    %285 = arith.cmpi eq, %10, %284 : vector<8x128xi32>
    %286 = vector.broadcast %279 : i1 to vector<8x128xi1>
    %287 = arith.andi %285, %286 : vector<8x128xi1>
    %288 = vector.shape_cast %283 : vector<8x1xf32> to vector<8x1xf32>
    %289 = vector.broadcast %288 : vector<8x1xf32> to vector<8x128xf32>
    %290 = arith.select %287, %289, %244 : vector<8x128xi1>, vector<8x128xf32>
    %c6_i32 = arith.constant 6 : i32
    %291 = arith.addi %11, %c6_i32 : i32
    %c48 = arith.constant 48 : index
    %c0_87 = arith.constant 0 : index
    %292 = vector.load %arg12[%c48, %c0_87] : memref<64x512xf32, #tpu.memory_space<vmem>>, vector<8x512xf32>
    %293 = arith.truncf %281 : vector<8x128xf32> to vector<8x128xbf16>
    %c0_88 = arith.constant 0 : index
    %c0_89 = arith.constant 0 : index
    %294 = vector.load %arg3[%c0_88, %c0_89] : memref<128x512xbf16, #tpu.memory_space<vmem>>, vector<128x512xbf16>
    %cst_90 = arith.constant dense<0.000000e+00> : vector<8x512xf32>
    %295 = tpu.matmul %293, %294, %cst_90 {dimension_numbers = #tpu.dot_dimension_numbers<[1], [0], [0], [1], [0, 0, 1, 1], [], []>} : vector<8x128xbf16>, vector<128x512xbf16>, vector<8x512xf32> -> vector<8x512xf32>
    %296 = arith.addf %292, %295 : vector<8x512xf32>
    %297 = vector.extract_strided_slice %296 {offsets = [0, 0], sizes = [8, 128], strides = [1, 1]} : vector<8x512xf32> to vector<8x128xf32>
    %cst_91 = arith.constant 0.000000e+00 : f32
    %298 = vector.broadcast %cst_91 : f32 to vector<8x128xf32>
    %299 = arith.subf %298, %297 : vector<8x128xf32>
    %300 = math.exp %299 : vector<8x128xf32>
    %cst_92 = arith.constant 1.000000e+00 : f32
    %301 = vector.broadcast %cst_92 : f32 to vector<8x128xf32>
    %302 = arith.addf %301, %300 : vector<8x128xf32>
    %303 = tpu.reciprocal %302 {approx = true} : vector<8x128xf32> -> vector<8x128xf32>
    %304 = vector.extract_strided_slice %296 {offsets = [0, 128], sizes = [8, 128], strides = [1, 1]} : vector<8x512xf32> to vector<8x128xf32>
    %cst_93 = arith.constant 0.000000e+00 : f32
    %305 = vector.broadcast %cst_93 : f32 to vector<8x128xf32>
    %306 = arith.subf %305, %304 : vector<8x128xf32>
    %307 = math.exp %306 : vector<8x128xf32>
    %cst_94 = arith.constant 1.000000e+00 : f32
    %308 = vector.broadcast %cst_94 : f32 to vector<8x128xf32>
    %309 = arith.addf %308, %307 : vector<8x128xf32>
    %310 = tpu.reciprocal %309 {approx = true} : vector<8x128xf32> -> vector<8x128xf32>
    %311 = vector.extract_strided_slice %296 {offsets = [0, 256], sizes = [8, 128], strides = [1, 1]} : vector<8x512xf32> to vector<8x128xf32>
    %312 = math.tanh %311 : vector<8x128xf32>
    %313 = vector.extract_strided_slice %296 {offsets = [0, 384], sizes = [8, 128], strides = [1, 1]} : vector<8x512xf32> to vector<8x128xf32>
    %cst_95 = arith.constant 0.000000e+00 : f32
    %314 = vector.broadcast %cst_95 : f32 to vector<8x128xf32>
    %315 = arith.subf %314, %313 : vector<8x128xf32>
    %316 = math.exp %315 : vector<8x128xf32>
    %cst_96 = arith.constant 1.000000e+00 : f32
    %317 = vector.broadcast %cst_96 : f32 to vector<8x128xf32>
    %318 = arith.addf %317, %316 : vector<8x128xf32>
    %319 = tpu.reciprocal %318 {approx = true} : vector<8x128xf32> -> vector<8x128xf32>
    %320 = arith.mulf %310, %280 : vector<8x128xf32>
    %321 = arith.mulf %303, %312 : vector<8x128xf32>
    %322 = arith.addf %320, %321 : vector<8x128xf32>
    %323 = math.tanh %322 : vector<8x128xf32>
    %324 = arith.mulf %319, %323 : vector<8x128xf32>
    %c68_i32_97 = arith.constant 68 : i32
    %325 = arith.cmpi slt, %291, %c68_i32_97 : i32
    %326 = arith.select %325, %322, %280 : vector<8x128xf32>
    %327 = arith.select %325, %324, %281 : vector<8x128xf32>
    %cst_98 = arith.constant dense<0xFF800000> : vector<8xf32>
    %328 = vector.multi_reduction <maximumf>, %324, %cst_98 [1] : vector<8x128xf32> to vector<8xf32>
    %329 = vector.shape_cast %328 : vector<8xf32> to vector<8x1xf32>
    %330 = vector.broadcast %291 : i32 to vector<8x128xi32>
    %331 = arith.cmpi eq, %10, %330 : vector<8x128xi32>
    %332 = vector.broadcast %325 : i1 to vector<8x128xi1>
    %333 = arith.andi %331, %332 : vector<8x128xi1>
    %334 = vector.shape_cast %329 : vector<8x1xf32> to vector<8x1xf32>
    %335 = vector.broadcast %334 : vector<8x1xf32> to vector<8x128xf32>
    %336 = arith.select %333, %335, %290 : vector<8x128xi1>, vector<8x128xf32>
    %c7_i32 = arith.constant 7 : i32
    %337 = arith.addi %11, %c7_i32 : i32
    %c56 = arith.constant 56 : index
    %c0_99 = arith.constant 0 : index
    %338 = vector.load %arg12[%c56, %c0_99] : memref<64x512xf32, #tpu.memory_space<vmem>>, vector<8x512xf32>
    %339 = arith.truncf %327 : vector<8x128xf32> to vector<8x128xbf16>
    %c0_100 = arith.constant 0 : index
    %c0_101 = arith.constant 0 : index
    %340 = vector.load %arg3[%c0_100, %c0_101] : memref<128x512xbf16, #tpu.memory_space<vmem>>, vector<128x512xbf16>
    %cst_102 = arith.constant dense<0.000000e+00> : vector<8x512xf32>
    %341 = tpu.matmul %339, %340, %cst_102 {dimension_numbers = #tpu.dot_dimension_numbers<[1], [0], [0], [1], [0, 0, 1, 1], [], []>} : vector<8x128xbf16>, vector<128x512xbf16>, vector<8x512xf32> -> vector<8x512xf32>
    %342 = arith.addf %338, %341 : vector<8x512xf32>
    %343 = vector.extract_strided_slice %342 {offsets = [0, 0], sizes = [8, 128], strides = [1, 1]} : vector<8x512xf32> to vector<8x128xf32>
    %cst_103 = arith.constant 0.000000e+00 : f32
    %344 = vector.broadcast %cst_103 : f32 to vector<8x128xf32>
    %345 = arith.subf %344, %343 : vector<8x128xf32>
    %346 = math.exp %345 : vector<8x128xf32>
    %cst_104 = arith.constant 1.000000e+00 : f32
    %347 = vector.broadcast %cst_104 : f32 to vector<8x128xf32>
    %348 = arith.addf %347, %346 : vector<8x128xf32>
    %349 = tpu.reciprocal %348 {approx = true} : vector<8x128xf32> -> vector<8x128xf32>
    %350 = vector.extract_strided_slice %342 {offsets = [0, 128], sizes = [8, 128], strides = [1, 1]} : vector<8x512xf32> to vector<8x128xf32>
    %cst_105 = arith.constant 0.000000e+00 : f32
    %351 = vector.broadcast %cst_105 : f32 to vector<8x128xf32>
    %352 = arith.subf %351, %350 : vector<8x128xf32>
    %353 = math.exp %352 : vector<8x128xf32>
    %cst_106 = arith.constant 1.000000e+00 : f32
    %354 = vector.broadcast %cst_106 : f32 to vector<8x128xf32>
    %355 = arith.addf %354, %353 : vector<8x128xf32>
    %356 = tpu.reciprocal %355 {approx = true} : vector<8x128xf32> -> vector<8x128xf32>
    %357 = vector.extract_strided_slice %342 {offsets = [0, 256], sizes = [8, 128], strides = [1, 1]} : vector<8x512xf32> to vector<8x128xf32>
    %358 = math.tanh %357 : vector<8x128xf32>
    %359 = vector.extract_strided_slice %342 {offsets = [0, 384], sizes = [8, 128], strides = [1, 1]} : vector<8x512xf32> to vector<8x128xf32>
    %cst_107 = arith.constant 0.000000e+00 : f32
    %360 = vector.broadcast %cst_107 : f32 to vector<8x128xf32>
    %361 = arith.subf %360, %359 : vector<8x128xf32>
    %362 = math.exp %361 : vector<8x128xf32>
    %cst_108 = arith.constant 1.000000e+00 : f32
    %363 = vector.broadcast %cst_108 : f32 to vector<8x128xf32>
    %364 = arith.addf %363, %362 : vector<8x128xf32>
    %365 = tpu.reciprocal %364 {approx = true} : vector<8x128xf32> -> vector<8x128xf32>
    %366 = arith.mulf %356, %326 : vector<8x128xf32>
    %367 = arith.mulf %349, %358 : vector<8x128xf32>
    %368 = arith.addf %366, %367 : vector<8x128xf32>
    %369 = math.tanh %368 : vector<8x128xf32>
    %370 = arith.mulf %365, %369 : vector<8x128xf32>
    %c68_i32_109 = arith.constant 68 : i32
    %371 = arith.cmpi slt, %337, %c68_i32_109 : i32
    %372 = arith.select %371, %368, %326 : vector<8x128xf32>
    %373 = arith.select %371, %370, %327 : vector<8x128xf32>
    %cst_110 = arith.constant dense<0xFF800000> : vector<8xf32>
    %374 = vector.multi_reduction <maximumf>, %370, %cst_110 [1] : vector<8x128xf32> to vector<8xf32>
    %375 = vector.shape_cast %374 : vector<8xf32> to vector<8x1xf32>
    %376 = vector.broadcast %337 : i32 to vector<8x128xi32>
    %377 = arith.cmpi eq, %10, %376 : vector<8x128xi32>
    %378 = vector.broadcast %371 : i1 to vector<8x128xi1>
    %379 = arith.andi %377, %378 : vector<8x128xi1>
    %380 = vector.shape_cast %375 : vector<8x1xf32> to vector<8x1xf32>
    %381 = vector.broadcast %380 : vector<8x1xf32> to vector<8x128xf32>
    %382 = arith.select %379, %381, %336 : vector<8x128xi1>, vector<8x128xf32>
    %c0_111 = arith.constant 0 : index
    %c0_112 = arith.constant 0 : index
    %383 = vector.load %arg13[%c0_111, %c0_112] : memref<8x128xf32, #tpu.memory_space<vmem>>, vector<8x128xf32>
    tpu.vector_store %arg13[%c0_111, %c0_112], %373 {strides = array<i32>} : memref<8x128xf32, #tpu.memory_space<vmem>>, vector<8x128xf32>,
    %c0_113 = arith.constant 0 : index
    %c0_114 = arith.constant 0 : index
    %384 = vector.load %arg14[%c0_113, %c0_114] : memref<8x128xf32, #tpu.memory_space<vmem>>, vector<8x128xf32>
    tpu.vector_store %arg14[%c0_113, %c0_114], %372 {strides = array<i32>} : memref<8x128xf32, #tpu.memory_space<vmem>>, vector<8x128xf32>,
    %c0_115 = arith.constant 0 : index
    %c0_116 = arith.constant 0 : index
    %385 = vector.load %arg15[%c0_115, %c0_116] : memref<8x128xf32, #tpu.memory_space<vmem>>, vector<8x128xf32>
    tpu.vector_store %arg15[%c0_115, %c0_116], %382 {strides = array<i32>} : memref<8x128xf32, #tpu.memory_space<vmem>>, vector<8x128xf32>,
    %c8_i32_117 = arith.constant 8 : i32
    %386 = arith.cmpi eq, %arg0, %c8_i32_117 : i32
    %387 = arith.extui %386 : i1 to i32
    %c0_i32_118 = arith.constant 0 : i32
    %388 = arith.cmpi ne, %387, %c0_i32_118 : i32
    scf.if %388 {
      %c0_119 = arith.constant 0 : index
      %c0_120 = arith.constant 0 : index
      %389 = vector.load %arg5[%c0_119, %c0_120] : memref<128x128xf32, #tpu.memory_space<vmem>>, vector<128x128xf32>
      %cst_121 = arith.constant dense<0.000000e+00> : vector<8x128xf32>
      %390 = tpu.matmul %382, %389, %cst_121 {dimension_numbers = #tpu.dot_dimension_numbers<[1], [0], [0], [1], [0, 0, 1, 1], [], []>} : vector<8x128xf32>, vector<128x128xf32>, vector<8x128xf32> -> vector<8x128xf32>
      %c0_122 = arith.constant 0 : index
      %c0_123 = arith.constant 0 : index
      %391 = vector.load %arg6[%c0_122, %c0_123] : memref<1x128xf32, #tpu.memory_space<vmem>>, vector<1x128xf32>
      %392 = vector.broadcast %391 : vector<1x128xf32> to vector<8x128xf32>
      %393 = arith.addf %390, %392 : vector<8x128xf32>
      %cst_124 = arith.constant 0.000000e+00 : f32
      %394 = vector.broadcast %cst_124 : f32 to vector<8x128xf32>
      %395 = arith.maximumf %393, %394 : vector<8x128xf32>
      %c0_125 = arith.constant 0 : index
      %c0_126 = arith.constant 0 : index
      %396 = vector.load %arg7[%c0_125, %c0_126] : memref<128x32xf32, #tpu.memory_space<vmem>>, vector<128x32xf32>
      %cst_127 = arith.constant dense<0.000000e+00> : vector<8x32xf32>
      %397 = tpu.matmul %395, %396, %cst_127 {dimension_numbers = #tpu.dot_dimension_numbers<[1], [0], [0], [1], [0, 0, 1, 1], [], []>} : vector<8x128xf32>, vector<128x32xf32>, vector<8x32xf32> -> vector<8x32xf32>
      %c0_128 = arith.constant 0 : index
      %c0_129 = arith.constant 0 : index
      %398 = vector.load %arg8[%c0_128, %c0_129] : memref<1x32xf32, #tpu.memory_space<vmem>>, vector<1x32xf32>
      %399 = vector.broadcast %398 : vector<1x32xf32> to vector<8x32xf32>
      %400 = arith.addf %397, %399 : vector<8x32xf32>
      %cst_130 = arith.constant 0.000000e+00 : f32
      %401 = vector.broadcast %cst_130 : f32 to vector<8x32xf32>
      %402 = arith.maximumf %400, %401 : vector<8x32xf32>
      %c0_131 = arith.constant 0 : index
      %c0_132 = arith.constant 0 : index
      %403 = vector.load %arg9[%c0_131, %c0_132] : memref<1x32xf32, #tpu.memory_space<vmem>>, vector<1x32xf32>
      %404 = vector.broadcast %403 : vector<1x32xf32> to vector<8x32xf32>
      %405 = arith.mulf %402, %404 : vector<8x32xf32>
      %cst_133 = arith.constant dense<0.000000e+00> : vector<8xf32>
      %406 = vector.multi_reduction <add>, %405, %cst_133 [1] : vector<8x32xf32> to vector<8xf32>
      %407 = vector.shape_cast %406 : vector<8xf32> to vector<8x1xf32>
      %c0_134 = arith.constant 0 : index
      %c0_135 = arith.constant 0 : index
      %408 = vector.load %arg10[%c0_134, %c0_135] : memref<1x1xf32, #tpu.memory_space<vmem>>, vector<1x1xf32>
      %409 = vector.broadcast %408 : vector<1x1xf32> to vector<8x1xf32>
      %410 = arith.addf %407, %409 : vector<8x1xf32>
      %c0_136 = arith.constant 0 : index
      %c0_137 = arith.constant 0 : index
      %411 = vector.load %arg11[%c0_136, %c0_137] : memref<8x1xf32, #tpu.memory_space<vmem>>, vector<8x1xf32>
      tpu.vector_store %arg11[%c0_136, %c0_137], %410 {strides = array<i32>} : memref<8x1xf32, #tpu.memory_space<vmem>>, vector<8x1xf32>,
    } else {
    }
    return
  }
  func.func @transform_0(%arg0: i32) -> (i32, i32) {
    %c0_i32 = arith.constant 0 : i32
    %c0_i32_0 = arith.constant 0 : i32
    return %arg0, %c0_i32 : i32, i32
  }
  func.func @transform_1(%arg0: i32) -> (i32, i32) {
    %c0_i32 = arith.constant 0 : i32
    %c0_i32_0 = arith.constant 0 : i32
    %c0_i32_1 = arith.constant 0 : i32
    return %c0_i32, %c0_i32_0 : i32, i32
  }
  func.func @transform_2(%arg0: i32) -> (i32, i32) {
    %c0_i32 = arith.constant 0 : i32
    %c0_i32_0 = arith.constant 0 : i32
    %c0_i32_1 = arith.constant 0 : i32
    return %c0_i32, %c0_i32_0 : i32, i32
  }
  func.func @transform_3(%arg0: i32) -> (i32, i32) {
    %c0_i32 = arith.constant 0 : i32
    %c0_i32_0 = arith.constant 0 : i32
    %c0_i32_1 = arith.constant 0 : i32
    return %c0_i32, %c0_i32_0 : i32, i32
  }
  func.func @transform_4(%arg0: i32) -> (i32, i32) {
    %c0_i32 = arith.constant 0 : i32
    %c0_i32_0 = arith.constant 0 : i32
    %c0_i32_1 = arith.constant 0 : i32
    return %c0_i32, %c0_i32_0 : i32, i32
  }
  func.func @transform_5(%arg0: i32) -> (i32, i32) {
    %c0_i32 = arith.constant 0 : i32
    %c0_i32_0 = arith.constant 0 : i32
    %c0_i32_1 = arith.constant 0 : i32
    return %c0_i32, %c0_i32_0 : i32, i32
  }
  func.func @transform_6(%arg0: i32) -> (i32, i32) {
    %c0_i32 = arith.constant 0 : i32
    %c0_i32_0 = arith.constant 0 : i32
    %c0_i32_1 = arith.constant 0 : i32
    return %c0_i32, %c0_i32_0 : i32, i32
  }
  func.func @transform_7(%arg0: i32) -> (i32, i32) {
    %c0_i32 = arith.constant 0 : i32
    %c0_i32_0 = arith.constant 0 : i32
    %c0_i32_1 = arith.constant 0 : i32
    return %c0_i32, %c0_i32_0 : i32, i32
  }
  func.func @transform_8(%arg0: i32) -> (i32, i32) {
    %c0_i32 = arith.constant 0 : i32
    %c0_i32_0 = arith.constant 0 : i32
    %c0_i32_1 = arith.constant 0 : i32
    return %c0_i32, %c0_i32_0 : i32, i32
  }
  func.func @transform_9(%arg0: i32) -> (i32, i32) {
    %c0_i32 = arith.constant 0 : i32
    %c0_i32_0 = arith.constant 0 : i32
    %c0_i32_1 = arith.constant 0 : i32
    return %c0_i32, %c0_i32_0 : i32, i32
  }
  func.func @transform_10(%arg0: i32) -> (i32, i32) {
    %c0_i32 = arith.constant 0 : i32
    %c0_i32_0 = arith.constant 0 : i32
    %c0_i32_1 = arith.constant 0 : i32
    return %c0_i32, %c0_i32_0 : i32, i32
  }
}

</mosaic_0001>

<llo_original>
// kernel: embedded_vector_classifier_forward.1
$region0: #{embedded_vector_classifier_forward.1}
  #allocation0 [shape = 'u32[]', space=smem, size = 0x4, offset = 0x4, fixed_abs, tag = 'smem constant byte address 0x4 - core index']
  #allocation1 [shape = 'u32[144,128]{1,0:T(1,128)}', space=vmem, size = 0x12000, scoped, tag = 'internal scratch']
  #allocation2 [shape = 'f32[64,512]{1,0:T(8,128)}', space=vmem, size = 0x20000, scoped, tag = 'scratch operand']
  #allocation3 [shape = 'f32[8,128]{1,0:T(8,128)}', space=vmem, size = 0x1000, scoped, tag = 'scratch operand']
  #allocation4 [shape = 'f32[8,128]{1,0:T(8,128)}', space=vmem, size = 0x1000, scoped, tag = 'scratch operand']
  #allocation5 [shape = 'f32[8,128]{1,0:T(8,128)}', space=vmem, size = 0x1000, scoped, tag = 'scratch operand']
  #allocation6 [shape = 'f32[1,1]{1,0:T(1,128)S(1)}', space=vmem, size = 0x200, scoped, tag = 'scoped memory for embedded_vector_classifier_forward.1']
  %s0 = inlined_call_operand.vmem [shape: bf16[576,1024], index: 0, kind: input, shape index: {}]
  %s1 = inlined_call_operand.vmem [shape: bf16[1024,512], index: 1, kind: input, shape index: {}]
  %s2 = inlined_call_operand.vmem [shape: bf16[128,512], index: 2, kind: input, shape index: {}]
  %s3 = inlined_call_operand.vmem [shape: f32[1,512], index: 3, kind: input, shape index: {}]
  %s4 = inlined_call_operand.vmem [shape: f32[128,128], index: 4, kind: input, shape index: {}]
  %s5 = inlined_call_operand.vmem [shape: f32[1,128], index: 5, kind: input, shape index: {}]
  %s6 = inlined_call_operand.vmem [shape: f32[128,32], index: 6, kind: input, shape index: {}]
  %s7 = inlined_call_operand.vmem [shape: f32[1,32], index: 7, kind: input, shape index: {}]
  %s8 = inlined_call_operand.vmem [shape: f32[1,32], index: 8, kind: input, shape index: {}]
  %s9 = inlined_call_operand.<no memory space> [shape: f32[1,1], index: 9, kind: input, shape index: {}]
  %s10 = inlined_call_operand.vmem [shape: f32[8,1], index: 10, kind: output, shape index: {}]
  %s11 = sld [smem:[#allocation0]]
  $region81: #{embedded_vector_classifier_forward.1} parent=0
    _
  %s13 = ssub.s32 1, %s11
  %s14 = scalar_select 0, %s13, %s11
  %v15 = vstv %s9
  %16 = vst [vmem:[#allocation6] sm:$0x1] %v15
  loop: start=0, step=1, limit=11
  $region2: #{embedded_vector_classifier_forward.1} parent=0 // loop_pre_header
    _
  $region3: #{embedded_vector_classifier_forward.1} parent=0 // loop_header
    %s18 = sphi 0, %s22
    %p19 = scmp.ge.s32.totalorder %s18, 11
    %s28 = sphi 0, %s30
    %s31 = sphi 0, %s28
    %s32 = sphi 0, %s31
    %s48 = sphi 0, %s32
    %s52 = sphi 0, %s52
    %s54 = sphi 0, %s52
    %s55 = sphi 0, %s54
    %s69 = sphi 0, %s55
    %s73 = sphi 0, %s73
    %s75 = sphi 0, %s73
    %s76 = sphi 0, %s75
    %s90 = sphi 0, %s76
    %s94 = sphi 0, %s94
    %s96 = sphi 0, %s94
    %s97 = sphi 0, %s96
    %s111 = sphi 0, %s97
    %s115 = sphi 0, %s115
    %s117 = sphi 0, %s115
    %s118 = sphi 0, %s117
    %s132 = sphi 0, %s118
    %s136 = sphi 0, %s136
    %s138 = sphi 0, %s136
    %s139 = sphi 0, %s138
    %s153 = sphi 0, %s139
    %s157 = sphi 0, %s157
    %s159 = sphi 0, %s157
    %s160 = sphi 0, %s159
    %s174 = sphi 0, %s160
    %s178 = sphi 0, %s178
    %s180 = sphi 0, %s178
    %s181 = sphi 0, %s180
    %s195 = sphi 0, %s181
    %s199 = sphi 0, %s199
    %s201 = sphi 0, %s199
    %s202 = sphi 0, %s201
    %s216 = sphi 0, %s202
    %s220 = sphi 0, %s220
    %s222 = sphi 0, %s220
    %s223 = sphi 0, %s222
    %s237 = sphi 0, %s223
    %s241 = sphi 0, %s241
    %s243 = sphi 0, %s241
    %s244 = sphi 0, %s243
    %s258 = sphi 0, %s244
  $region4: #{embedded_vector_classifier_forward.1} parent=0 // loop_header_branch
    %21 = sbr.rel (%p19) target = $region8
  $region5: #{embedded_vector_classifier_forward.1} parent=0 // loop_body
    %s23 = ssub.s32 %s18, 1
    %s24 = ssub.s32 %s18, 2
    %s25 = sadd.s32 %s18, 1
    %s26 = ssub.s32 %s18, %s25
    %p27 = scmp.eq.s32.totalorder %s26, 0
    %s29 = sadd.s32 %s28, 1
    %s30 = scalar_select %p27, %s28, %s29
    %p33 = pneg %p27
    %p34 = scmp.eq.s32.totalorder %s18, 8
    %p35 = por %p33, %p34
    %p36 = scmp.ne.s32.totalorder %s28, %s31
    %p37 = scmp.eq.s32.totalorder %s18, 0
    %p38 = por %p36, %p37
    %p39 = scmp.ne.s32.totalorder %s28, %s31
    %p40 = scmp.eq.s32.totalorder %s23, 8
    %p41 = por %p39, %p40
    %p42 = scmp.ne.s32.totalorder %s31, %s32
    %p43 = scmp.eq.s32.totalorder %s23, 0
    %p44 = por %p42, %p43
    %p45 = scmp.ne.s32.totalorder %s31, %s32
    %p46 = scmp.eq.s32.totalorder %s24, 8
    %p47 = por %p45, %p46
    %p49 = scmp.ne.s32.totalorder %s32, %s48
    %p50 = scmp.eq.s32.totalorder %s24, 0
    %p51 = por %p49, %p50
    %s53 = sadd.s32 %s52, 1
    %p56 = scmp.eq.s32.totalorder %s18, 8
    %p57 = scmp.ne.s32.totalorder %s52, %s54
    %p58 = scmp.eq.s32.totalorder %s18, 0
    %p59 = por %p57, %p58
    %p60 = scmp.ne.s32.totalorder %s52, %s54
    %p61 = scmp.eq.s32.totalorder %s23, 8
    %p62 = por %p60, %p61
    %p63 = scmp.ne.s32.totalorder %s54, %s55
    %p64 = scmp.eq.s32.totalorder %s23, 0
    %p65 = por %p63, %p64
    %p66 = scmp.ne.s32.totalorder %s54, %s55
    %p67 = scmp.eq.s32.totalorder %s24, 8
    %p68 = por %p66, %p67
    %p70 = scmp.ne.s32.totalorder %s55, %s69
    %p71 = scmp.eq.s32.totalorder %s24, 0
    %p72 = por %p70, %p71
    %s74 = sadd.s32 %s73, 1
    %p77 = scmp.eq.s32.totalorder %s18, 8
    %p78 = scmp.ne.s32.totalorder %s73, %s75
    %p79 = scmp.eq.s32.totalorder %s18, 0
    %p80 = por %p78, %p79
    %p81 = scmp.ne.s32.totalorder %s73, %s75
    %p82 = scmp.eq.s32.totalorder %s23, 8
    %p83 = por %p81, %p82
    %p84 = scmp.ne.s32.totalorder %s75, %s76
    %p85 = scmp.eq.s32.totalorder %s23, 0
    %p86 = por %p84, %p85
    %p87 = scmp.ne.s32.totalorder %s75, %s76
    %p88 = scmp.eq.s32.totalorder %s24, 8
    %p89 = por %p87, %p88
    %p91 = scmp.ne.s32.totalorder %s76, %s90
    %p92 = scmp.eq.s32.totalorder %s24, 0
    %p93 = por %p91, %p92
    %s95 = sadd.s32 %s94, 1
    %p98 = scmp.eq.s32.totalorder %s18, 8
    %p99 = scmp.ne.s32.totalorder %s94, %s96
    %p100 = scmp.eq.s32.totalorder %s18, 0
    %p101 = por %p99, %p100
    %p102 = scmp.ne.s32.totalorder %s94, %s96
    %p103 = scmp.eq.s32.totalorder %s23, 8
    %p104 = por %p102, %p103
    %p105 = scmp.ne.s32.totalorder %s96, %s97
    %p106 = scmp.eq.s32.totalorder %s23, 0
    %p107 = por %p105, %p106
    %p108 = scmp.ne.s32.totalorder %s96, %s97
    %p109 = scmp.eq.s32.totalorder %s24, 8
    %p110 = por %p108, %p109
    %p112 = scmp.ne.s32.totalorder %s97, %s111
    %p113 = scmp.eq.s32.totalorder %s24, 0
    %p114 = por %p112, %p113
    %s116 = sadd.s32 %s115, 1
    %p119 = scmp.eq.s32.totalorder %s18, 8
    %p120 = scmp.ne.s32.totalorder %s115, %s117
    %p121 = scmp.eq.s32.totalorder %s18, 0
    %p122 = por %p120, %p121
    %p123 = scmp.ne.s32.totalorder %s115, %s117
    %p124 = scmp.eq.s32.totalorder %s23, 8
    %p125 = por %p123, %p124
    %p126 = scmp.ne.s32.totalorder %s117, %s118
    %p127 = scmp.eq.s32.totalorder %s23, 0
    %p128 = por %p126, %p127
    %p129 = scmp.ne.s32.totalorder %s117, %s118
    %p130 = scmp.eq.s32.totalorder %s24, 8
    %p131 = por %p129, %p130
    %p133 = scmp.ne.s32.totalorder %s118, %s132
    %p134 = scmp.eq.s32.totalorder %s24, 0
    %p135 = por %p133, %p134
    %s137 = sadd.s32 %s136, 1
    %p140 = scmp.eq.s32.totalorder %s18, 8
    %p141 = scmp.ne.s32.totalorder %s136, %s138
    %p142 = scmp.eq.s32.totalorder %s18, 0
    %p143 = por %p141, %p142
    %p144 = scmp.ne.s32.totalorder %s136, %s138
    %p145 = scmp.eq.s32.totalorder %s23, 8
    %p146 = por %p144, %p145
    %p147 = scmp.ne.s32.totalorder %s138, %s139
    %p148 = scmp.eq.s32.totalorder %s23, 0
    %p149 = por %p147, %p148
    %p150 = scmp.ne.s32.totalorder %s138, %s139
    %p151 = scmp.eq.s32.totalorder %s24, 8
    %p152 = por %p150, %p151
    %p154 = scmp.ne.s32.totalorder %s139, %s153
    %p155 = scmp.eq.s32.totalorder %s24, 0
    %p156 = por %p154, %p155
    %s158 = sadd.s32 %s157, 1
    %p161 = scmp.eq.s32.totalorder %s18, 8
    %p162 = scmp.ne.s32.totalorder %s157, %s159
    %p163 = scmp.eq.s32.totalorder %s18, 0
    %p164 = por %p162, %p163
    %p165 = scmp.ne.s32.totalorder %s157, %s159
    %p166 = scmp.eq.s32.totalorder %s23, 8
    %p167 = por %p165, %p166
    %p168 = scmp.ne.s32.totalorder %s159, %s160
    %p169 = scmp.eq.s32.totalorder %s23, 0
    %p170 = por %p168, %p169
    %p171 = scmp.ne.s32.totalorder %s159, %s160
    %p172 = scmp.eq.s32.totalorder %s24, 8
    %p173 = por %p171, %p172
    %p175 = scmp.ne.s32.totalorder %s160, %s174
    %p176 = scmp.eq.s32.totalorder %s24, 0
    %p177 = por %p175, %p176
    %s179 = sadd.s32 %s178, 1
    %p182 = scmp.eq.s32.totalorder %s18, 8
    %p183 = scmp.ne.s32.totalorder %s178, %s180
    %p184 = scmp.eq.s32.totalorder %s18, 0
    %p185 = por %p183, %p184
    %p186 = scmp.ne.s32.totalorder %s178, %s180
    %p187 = scmp.eq.s32.totalorder %s23, 8
    %p188 = por %p186, %p187
    %p189 = scmp.ne.s32.totalorder %s180, %s181
    %p190 = scmp.eq.s32.totalorder %s23, 0
    %p191 = por %p189, %p190
    %p192 = scmp.ne.s32.totalorder %s180, %s181
    %p193 = scmp.eq.s32.totalorder %s24, 8
    %p194 = por %p192, %p193
    %p196 = scmp.ne.s32.totalorder %s181, %s195
    %p197 = scmp.eq.s32.totalorder %s24, 0
    %p198 = por %p196, %p197
    %s200 = sadd.s32 %s199, 1
    %p203 = scmp.eq.s32.totalorder %s18, 8
    %p204 = scmp.ne.s32.totalorder %s199, %s201
    %p205 = scmp.eq.s32.totalorder %s18, 0
    %p206 = por %p204, %p205
    %p207 = scmp.ne.s32.totalorder %s199, %s201
    %p208 = scmp.eq.s32.totalorder %s23, 8
    %p209 = por %p207, %p208
    %p210 = scmp.ne.s32.totalorder %s201, %s202
    %p211 = scmp.eq.s32.totalorder %s23, 0
    %p212 = por %p210, %p211
    %p213 = scmp.ne.s32.totalorder %s201, %s202
    %p214 = scmp.eq.s32.totalorder %s24, 8
    %p215 = por %p213, %p214
    %p217 = scmp.ne.s32.totalorder %s202, %s216
    %p218 = scmp.eq.s32.totalorder %s24, 0
    %p219 = por %p217, %p218
    %s221 = sadd.s32 %s220, 1
    %p224 = scmp.eq.s32.totalorder %s18, 8
    %p225 = scmp.ne.s32.totalorder %s220, %s222
    %p226 = scmp.eq.s32.totalorder %s18, 0
    %p227 = por %p225, %p226
    %p228 = scmp.ne.s32.totalorder %s220, %s222
    %p229 = scmp.eq.s32.totalorder %s23, 8
    %p230 = por %p228, %p229
    %p231 = scmp.ne.s32.totalorder %s222, %s223
    %p232 = scmp.eq.s32.totalorder %s23, 0
    %p233 = por %p231, %p232
    %p234 = scmp.ne.s32.totalorder %s222, %s223
    %p235 = scmp.eq.s32.totalorder %s24, 8
    %p236 = por %p234, %p235
    %p238 = scmp.ne.s32.totalorder %s223, %s237
    %p239 = scmp.eq.s32.totalorder %s24, 0
    %p240 = por %p238, %p239
    %s242 = sadd.s32 %s241, 1
    %p245 = scmp.eq.s32.totalorder %s18, 8
    %p246 = scmp.ne.s32.totalorder %s241, %s243
    %p247 = scmp.eq.s32.totalorder %s18, 0
    %p248 = por %p246, %p247
    %p249 = scmp.ne.s32.totalorder %s241, %s243
    %p250 = scmp.eq.s32.totalorder %s23, 8
    %p251 = por %p249, %p250
    %p252 = scmp.ne.s32.totalorder %s243, %s244
    %p253 = scmp.eq.s32.totalorder %s23, 0
    %p254 = por %p252, %p253
    %p255 = scmp.ne.s32.totalorder %s243, %s244
    %p256 = scmp.eq.s32.totalorder %s24, 8
    %p257 = por %p255, %p256
    %p259 = scmp.ne.s32.totalorder %s244, %s258
    %p260 = scmp.eq.s32.totalorder %s24, 0
    %p261 = por %p259, %p260
    %p262 = scmp.le.s32.totalorder 1, %s18
    %p263 = scmp.lt.s32.totalorder %s18, 10
    %p264 = pnand %p262, %p263
    %p265 = pneg %p264
    // Predicated region
    $region9: #{embedded_vector_classifier_forward.1} parent=5 // pred_check
      _
    $region10: #{embedded_vector_classifier_forward.1} parent=5 // pred_check_branch
      %267 = sbr.rel (%p264) target = $region12
    $region11: #{embedded_vector_classifier_forward.1} parent=5 // pred_region
      %s268 = ssub.s32 %s18, 1
      // Predicated region
      $region13: #{embedded_vector_classifier_forward.1} parent=11 // pred_check
        %p269 = pneg %p65
      $region14: #{embedded_vector_classifier_forward.1} parent=11 // pred_check_branch
        %271 = sbr.rel (%p269) target = $region16
      $region15: #{embedded_vector_classifier_forward.1} parent=11 // pred_region
        _
      $region16: #{embedded_vector_classifier_forward.1} parent=11 // pred_fallthru
        _
      // Predicated region
      $region17: #{embedded_vector_classifier_forward.1} parent=11 // pred_check
        %p272 = pneg %p86
      $region18: #{embedded_vector_classifier_forward.1} parent=11 // pred_check_branch
        %274 = sbr.rel (%p272) target = $region20
      $region19: #{embedded_vector_classifier_forward.1} parent=11 // pred_region
        _
      $region20: #{embedded_vector_classifier_forward.1} parent=11 // pred_fallthru
        _
      // Predicated region
      $region21: #{embedded_vector_classifier_forward.1} parent=11 // pred_check
        %p275 = pneg %p107
      $region22: #{embedded_vector_classifier_forward.1} parent=11 // pred_check_branch
        %277 = sbr.rel (%p275) target = $region24
      $region23: #{embedded_vector_classifier_forward.1} parent=11 // pred_region
        _
      $region24: #{embedded_vector_classifier_forward.1} parent=11 // pred_fallthru
        _
      // Predicated region
      $region25: #{embedded_vector_classifier_forward.1} parent=11 // pred_check
        %p278 = pneg %p128
      $region26: #{embedded_vector_classifier_forward.1} parent=11 // pred_check_branch
        %280 = sbr.rel (%p278) target = $region28
      $region27: #{embedded_vector_classifier_forward.1} parent=11 // pred_region
        _
      $region28: #{embedded_vector_classifier_forward.1} parent=11 // pred_fallthru
        _
      // Predicated region
      $region29: #{embedded_vector_classifier_forward.1} parent=11 // pred_check
        %p281 = pneg %p149
      $region30: #{embedded_vector_classifier_forward.1} parent=11 // pred_check_branch
        %283 = sbr.rel (%p281) target = $region32
      $region31: #{embedded_vector_classifier_forward.1} parent=11 // pred_region
        _
      $region32: #{embedded_vector_classifier_forward.1} parent=11 // pred_fallthru
        _
      // Predicated region
      $region33: #{embedded_vector_classifier_forward.1} parent=11 // pred_check
        %p284 = pneg %p170
      $region34: #{embedded_vector_classifier_forward.1} parent=11 // pred_check_branch
        %286 = sbr.rel (%p284) target = $region36
      $region35: #{embedded_vector_classifier_forward.1} parent=11 // pred_region
        _
      $region36: #{embedded_vector_classifier_forward.1} parent=11 // pred_fallthru
        _
      // Predicated region
      $region37: #{embedded_vector_classifier_forward.1} parent=11 // pred_check
        %p287 = pneg %p191
      $region38: #{embedded_vector_classifier_forward.1} parent=11 // pred_check_branch
        %289 = sbr.rel (%p287) target = $region40
      $region39: #{embedded_vector_classifier_forward.1} parent=11 // pred_region
        _
      $region40: #{embedded_vector_classifier_forward.1} parent=11 // pred_fallthru
        _
      // Predicated region
      $region41: #{embedded_vector_classifier_forward.1} parent=11 // pred_check
        %p290 = pneg %p212
      $region42: #{embedded_vector_classifier_forward.1} parent=11 // pred_check_branch
        %292 = sbr.rel (%p290) target = $region44
      $region43: #{embedded_vector_classifier_forward.1} parent=11 // pred_region
        _
      $region44: #{embedded_vector_classifier_forward.1} parent=11 // pred_fallthru
        _
      // Predicated region
      $region45: #{embedded_vector_classifier_forward.1} parent=11 // pred_check
        %p293 = pneg %p233
      $region46: #{embedded_vector_classifier_forward.1} parent=11 // pred_check_branch
        %295 = sbr.rel (%p293) target = $region48
      $region47: #{embedded_vector_classifier_forward.1} parent=11 // pred_region
        _
      $region48: #{embedded_vector_classifier_forward.1} parent=11 // pred_fallthru
        _
    $region12: #{embedded_vector_classifier_forward.1} parent=5 // pred_fallthru
      _
    %p296 = scmp.lt.s32.totalorder %s18, 9
    // Predicated region
    $region49: #{embedded_vector_classifier_forward.1} parent=5 // pred_check
      %p297 = pneg %p296
    $region50: #{embedded_vector_classifier_forward.1} parent=5 // pred_check_branch
      %299 = sbr.rel (%p297) target = $region52
    $region51: #{embedded_vector_classifier_forward.1} parent=5 // pred_region
      // Predicated region
      $region53: #{embedded_vector_classifier_forward.1} parent=51 // pred_check
        %p300 = pneg %p38
      $region54: #{embedded_vector_classifier_forward.1} parent=51 // pred_check_branch
        %302 = sbr.rel (%p300) target = $region56
      $region55: #{embedded_vector_classifier_forward.1} parent=51 // pred_region
        %s303 = smul.u32 8, %s18
        %p304 = scmp.lt.s32.totalorder %s303, 71
        %s305 = scalar_select %p304, %s303, 71
        %s306 = smul.addr %s305, 8
        %s307 = smul.addr %s306, 4
        %s308 = scalar_lea.vmem %s0, %s307
        %s309 = smul.u32 8, %s18
      $region56: #{embedded_vector_classifier_forward.1} parent=51 // pred_fallthru
        _
    $region52: #{embedded_vector_classifier_forward.1} parent=5 // pred_fallthru
      _
    %p310 = scmp.le.s32.totalorder 1, %s18
    %p311 = scmp.lt.s32.totalorder %s18, 10
    %p312 = pnand %p310, %p311
    %p313 = pneg %p312
    // Predicated region
    $region57: #{embedded_vector_classifier_forward.1} parent=5 // pred_check
      _
    $region58: #{embedded_vector_classifier_forward.1} parent=5 // pred_check_branch
      %315 = sbr.rel (%p312) target = $region60
    $region59: #{embedded_vector_classifier_forward.1} parent=5 // pred_region
      %s316 = ssub.s32 %s18, 1
      %s317 = smul.u32 8, %s23
      %p318 = scmp.lt.s32.totalorder %s317, 71
      %s319 = scalar_select %p318, %s317, 71
      %s320 = smul.addr %s319, 8
      %s321 = smul.addr %s320, 4
      %s322 = scalar_lea.vmem %s0, %s321
      %p323 = pneg %p44
      %p324 = pneg %p41
      %p325 = pneg %p65
      %p326 = pneg %p62
      %p327 = pneg %p86
      %p328 = pneg %p83
      %p329 = pneg %p107
      %p330 = pneg %p104
      %p331 = pneg %p128
      %p332 = pneg %p125
      %p333 = pneg %p149
      %p334 = pneg %p146
      %p335 = pneg %p170
      %p336 = pneg %p167
      %p337 = pneg %p191
      %p338 = pneg %p188
      %p339 = pneg %p212
      %p340 = pneg %p209
      %p341 = pneg %p233
      %p342 = pneg %p230
      %p343 = pneg %p254
      %p344 = pneg %p251
      %s345 = smul.u32 8, %s23
      %p346 = scmp.lt.s32.totalorder %s345, 71
      %s347 = scalar_select %p346, %s345, 71
      %s348 = smul.addr %s347, 8
      %s349 = smul.addr %s348, 4
      %s350 = scalar_lea.vmem %s0, %s349
      %s351 = smul.u32 8, %s23
      %p353 = scmp.eq.s32.totalorder %s23, 0
      // Predicated region
      $region61: #{embedded_vector_classifier_forward.1} parent=59 // pred_check
        %p354 = pneg %p353
      $region62: #{embedded_vector_classifier_forward.1} parent=59 // pred_check_branch
        %356 = sbr.rel (%p354) target = $region64
      $region63: #{embedded_vector_classifier_forward.1} parent=59 // pred_region
        %357 = vst [vmem:[#allocation3] sm:$0xff] 0.0
        %358 = vst [vmem:[#allocation4] sm:$0xff] 0.0
        %359 = vst [vmem:[#allocation5] sm:$0xff] 0.0
      $region64: #{embedded_vector_classifier_forward.1} parent=59 // pred_fallthru
        _
      %v360 = vld [vmem:[%s350] sm:$0xff]
      %v361 = vld [vmem:[%s350 + $0x8] sm:$0xff]
      %v362 = vld [vmem:[%s350 + $0x10] sm:$0xff]
      %v363 = vld [vmem:[%s350 + $0x18] sm:$0xff]
      %v364 = vld [vmem:[%s350 + $0x20] sm:$0xff]
      %v365 = vld [vmem:[%s350 + $0x28] sm:$0xff]
      %v366 = vld [vmem:[%s350 + $0x30] sm:$0xff]
      %v367 = vld [vmem:[%s350 + $0x38] sm:$0xff]
      %v368 = vld [vmem:[%s350 + $0x40] sm:$0xff]
      %v369 = vld [vmem:[%s350 + $0x48] sm:$0xff]
      %v370 = vld [vmem:[%s350 + $0x50] sm:$0xff]
      %v371 = vld [vmem:[%s350 + $0x58] sm:$0xff]
      %v372 = vld [vmem:[%s350 + $0x60] sm:$0xff]
      %v373 = vld [vmem:[%s350 + $0x68] sm:$0xff]
      %v374 = vld [vmem:[%s350 + $0x70] sm:$0xff]
      %v375 = vld [vmem:[%s350 + $0x78] sm:$0xff]
      %v376 = vld [vmem:[%s350 + $0x80] sm:$0xff]
      %v377 = vld [vmem:[%s350 + $0x88] sm:$0xff]
      %v378 = vld [vmem:[%s350 + $0x90] sm:$0xff]
      %v379 = vld [vmem:[%s350 + $0x98] sm:$0xff]
      %v380 = vld [vmem:[%s350 + $0xa0] sm:$0xff]
      %v381 = vld [vmem:[%s350 + $0xa8] sm:$0xff]
      %v382 = vld [vmem:[%s350 + $0xb0] sm:$0xff]
      %v383 = vld [vmem:[%s350 + $0xb8] sm:$0xff]
      %v384 = vld [vmem:[%s350 + $0xc0] sm:$0xff]
      %v385 = vld [vmem:[%s350 + $0xc8] sm:$0xff]
      %v386 = vld [vmem:[%s350 + $0xd0] sm:$0xff]
      %v387 = vld [vmem:[%s350 + $0xd8] sm:$0xff]
      %v388 = vld [vmem:[%s350 + $0xe0] sm:$0xff]
      %v389 = vld [vmem:[%s350 + $0xe8] sm:$0xff]
      %v390 = vld [vmem:[%s350 + $0xf0] sm:$0xff]
      %v391 = vld [vmem:[%s350 + $0xf8] sm:$0xff]
      %v392 = vld [vmem:[%s1] sm:$0xff]
      %v393 = vld [vmem:[%s1 + $0x8] sm:$0xff]
      %v394 = vld [vmem:[%s1 + $0x10] sm:$0xff]
      %v395 = vld [vmem:[%s1 + $0x18] sm:$0xff]
      %v396 = vld [vmem:[%s1 + $0x20] sm:$0xff]
      %v397 = vld [vmem:[%s1 + $0x28] sm:$0xff]
      %v398 = vld [vmem:[%s1 + $0x30] sm:$0xff]
      %v399 = vld [vmem:[%s1 + $0x38] sm:$0xff]
      %v400 = vld [vmem:[%s1 + $0x40] sm:$0xff]
      %v401 = vld [vmem:[%s1 + $0x48] sm:$0xff]
      %v402 = vld [vmem:[%s1 + $0x50] sm:$0xff]
      %v403 = vld [vmem:[%s1 + $0x58] sm:$0xff]
      %v404 = vld [vmem:[%s1 + $0x60] sm:$0xff]
      %v405 = vld [vmem:[%s1 + $0x68] sm:$0xff]
      %v406 = vld [vmem:[%s1 + $0x70] sm:$0xff]
      %v407 = vld [vmem:[%s1 + $0x78] sm:$0xff]
      %v408 = vld [vmem:[%s1 + $0x80] sm:$0xff]
      %v409 = vld [vmem:[%s1 + $0x88] sm:$0xff]
      %v410 = vld [vmem:[%s1 + $0x90] sm:$0xff]
      %v411 = vld [vmem:[%s1 + $0x98] sm:$0xff]
      %v412 = vld [vmem:[%s1 + $0xa0] sm:$0xff]
      %v413 = vld [vmem:[%s1 + $0xa8] sm:$0xff]
      %v414 = vld [vmem:[%s1 + $0xb0] sm:$0xff]
      %v415 = vld [vmem:[%s1 + $0xb8] sm:$0xff]
      %v416 = vld [vmem:[%s1 + $0xc0] sm:$0xff]
      %v417 = vld [vmem:[%s1 + $0xc8] sm:$0xff]
      %v418 = vld [vmem:[%s1 + $0xd0] sm:$0xff]
      %v419 = vld [vmem:[%s1 + $0xd8] sm:$0xff]
      %v420 = vld [vmem:[%s1 + $0xe0] sm:$0xff]
      %v421 = vld [vmem:[%s1 + $0xe8] sm:$0xff]
      %v422 = vld [vmem:[%s1 + $0xf0] sm:$0xff]
      %v423 = vld [vmem:[%s1 + $0xf8] sm:$0xff]
      %v424 = vld [vmem:[%s1 + $0x100] sm:$0xff]
      %v425 = vld [vmem:[%s1 + $0x108] sm:$0xff]
      %v426 = vld [vmem:[%s1 + $0x110] sm:$0xff]
      %v427 = vld [vmem:[%s1 + $0x118] sm:$0xff]
      %v428 = vld [vmem:[%s1 + $0x120] sm:$0xff]
      %v429 = vld [vmem:[%s1 + $0x128] sm:$0xff]
      %v430 = vld [vmem:[%s1 + $0x130] sm:$0xff]
      %v431 = vld [vmem:[%s1 + $0x138] sm:$0xff]
      %v432 = vld [vmem:[%s1 + $0x140] sm:$0xff]
      %v433 = vld [vmem:[%s1 + $0x148] sm:$0xff]
      %v434 = vld [vmem:[%s1 + $0x150] sm:$0xff]
      %v435 = vld [vmem:[%s1 + $0x158] sm:$0xff]
      %v436 = vld [vmem:[%s1 + $0x160] sm:$0xff]
      %v437 = vld [vmem:[%s1 + $0x168] sm:$0xff]
      %v438 = vld [vmem:[%s1 + $0x170] sm:$0xff]
      %v439 = vld [vmem:[%s1 + $0x178] sm:$0xff]
      %v440 = vld [vmem:[%s1 + $0x180] sm:$0xff]
      %v441 = vld [vmem:[%s1 + $0x188] sm:$0xff]
      %v442 = vld [vmem:[%s1 + $0x190] sm:$0xff]
      %v443 = vld [vmem:[%s1 + $0x198] sm:$0xff]
      %v444 = vld [vmem:[%s1 + $0x1a0] sm:$0xff]
      %v445 = vld [vmem:[%s1 + $0x1a8] sm:$0xff]
      %v446 = vld [vmem:[%s1 + $0x1b0] sm:$0xff]
      %v447 = vld [vmem:[%s1 + $0x1b8] sm:$0xff]
      %v448 = vld [vmem:[%s1 + $0x1c0] sm:$0xff]
      %v449 = vld [vmem:[%s1 + $0x1c8] sm:$0xff]
      %v450 = vld [vmem:[%s1 + $0x1d0] sm:$0xff]
      %v451 = vld [vmem:[%s1 + $0x1d8] sm:$0xff]
      %v452 = vld [vmem:[%s1 + $0x1e0] sm:$0xff]
      %v453 = vld [vmem:[%s1 + $0x1e8] sm:$0xff]
      %v454 = vld [vmem:[%s1 + $0x1f0] sm:$0xff]
      %v455 = vld [vmem:[%s1 + $0x1f8] sm:$0xff]
      %v456 = vld [vmem:[%s1 + $0x200] sm:$0xff]
      %v457 = vld [vmem:[%s1 + $0x208] sm:$0xff]
      %v458 = vld [vmem:[%s1 + $0x210] sm:$0xff]
      %v459 = vld [vmem:[%s1 + $0x218] sm:$0xff]
      %v460 = vld [vmem:[%s1 + $0x220] sm:$0xff]
      %v461 = vld [vmem:[%s1 + $0x228] sm:$0xff]
      %v462 = vld [vmem:[%s1 + $0x230] sm:$0xff]
      %v463 = vld [vmem:[%s1 + $0x238] sm:$0xff]
      %v464 = vld [vmem:[%s1 + $0x240] sm:$0xff]
      %v465 = vld [vmem:[%s1 + $0x248] sm:$0xff]
      %v466 = vld [vmem:[%s1 + $0x250] sm:$0xff]
      %v467 = vld [vmem:[%s1 + $0x258] sm:$0xff]
      %v468 = vld [vmem:[%s1 + $0x260] sm:$0xff]
      %v469 = vld [vmem:[%s1 + $0x268] sm:$0xff]
      %v470 = vld [vmem:[%s1 + $0x270] sm:$0xff]
      %v471 = vld [vmem:[%s1 + $0x278] sm:$0xff]
      %v472 = vld [vmem:[%s1 + $0x280] sm:$0xff]
      %v473 = vld [vmem:[%s1 + $0x288] sm:$0xff]
      %v474 = vld [vmem:[%s1 + $0x290] sm:$0xff]
      %v475 = vld [vmem:[%s1 + $0x298] sm:$0xff]
      %v476 = vld [vmem:[%s1 + $0x2a0] sm:$0xff]
      %v477 = vld [vmem:[%s1 + $0x2a8] sm:$0xff]
      %v478 = vld [vmem:[%s1 + $0x2b0] sm:$0xff]
      %v479 = vld [vmem:[%s1 + $0x2b8] sm:$0xff]
      %v480 = vld [vmem:[%s1 + $0x2c0] sm:$0xff]
      %v481 = vld [vmem:[%s1 + $0x2c8] sm:$0xff]
      %v482 = vld [vmem:[%s1 + $0x2d0] sm:$0xff]
      %v483 = vld [vmem:[%s1 + $0x2d8] sm:$0xff]
      %v484 = vld [vmem:[%s1 + $0x2e0] sm:$0xff]
      %v485 = vld [vmem:[%s1 + $0x2e8] sm:$0xff]
      %v486 = vld [vmem:[%s1 + $0x2f0] sm:$0xff]
      %v487 = vld [vmem:[%s1 + $0x2f8] sm:$0xff]
      %v488 = vld [vmem:[%s1 + $0x300] sm:$0xff]
      %v489 = vld [vmem:[%s1 + $0x308] sm:$0xff]
      %v490 = vld [vmem:[%s1 + $0x310] sm:$0xff]
      %v491 = vld [vmem:[%s1 + $0x318] sm:$0xff]
      %v492 = vld [vmem:[%s1 + $0x320] sm:$0xff]
      %v493 = vld [vmem:[%s1 + $0x328] sm:$0xff]
      %v494 = vld [vmem:[%s1 + $0x330] sm:$0xff]
      %v495 = vld [vmem:[%s1 + $0x338] sm:$0xff]
      %v496 = vld [vmem:[%s1 + $0x340] sm:$0xff]
      %v497 = vld [vmem:[%s1 + $0x348] sm:$0xff]
      %v498 = vld [vmem:[%s1 + $0x350] sm:$0xff]
      %v499 = vld [vmem:[%s1 + $0x358] sm:$0xff]
      %v500 = vld [vmem:[%s1 + $0x360] sm:$0xff]
      %v501 = vld [vmem:[%s1 + $0x368] sm:$0xff]
      %v502 = vld [vmem:[%s1 + $0x370] sm:$0xff]
      %v503 = vld [vmem:[%s1 + $0x378] sm:$0xff]
      %v504 = vld [vmem:[%s1 + $0x380] sm:$0xff]
      %v505 = vld [vmem:[%s1 + $0x388] sm:$0xff]
      %v506 = vld [vmem:[%s1 + $0x390] sm:$0xff]
      %v507 = vld [vmem:[%s1 + $0x398] sm:$0xff]
      %v508 = vld [vmem:[%s1 + $0x3a0] sm:$0xff]
      %v509 = vld [vmem:[%s1 + $0x3a8] sm:$0xff]
      %v510 = vld [vmem:[%s1 + $0x3b0] sm:$0xff]
      %v511 = vld [vmem:[%s1 + $0x3b8] sm:$0xff]
      %v512 = vld [vmem:[%s1 + $0x3c0] sm:$0xff]
      %v513 = vld [vmem:[%s1 + $0x3c8] sm:$0xff]
      %v514 = vld [vmem:[%s1 + $0x3d0] sm:$0xff]
      %v515 = vld [vmem:[%s1 + $0x3d8] sm:$0xff]
      %v516 = vld [vmem:[%s1 + $0x3e0] sm:$0xff]
      %v517 = vld [vmem:[%s1 + $0x3e8] sm:$0xff]
      %v518 = vld [vmem:[%s1 + $0x3f0] sm:$0xff]
      %v519 = vld [vmem:[%s1 + $0x3f8] sm:$0xff]
      %v520 = vld [vmem:[%s1 + $0x400] sm:$0xff]
      %v521 = vld [vmem:[%s1 + $0x408] sm:$0xff]
      %v522 = vld [vmem:[%s1 + $0x410] sm:$0xff]
      %v523 = vld [vmem:[%s1 + $0x418] sm:$0xff]
      %v524 = vld [vmem:[%s1 + $0x420] sm:$0xff]
      %v525 = vld [vmem:[%s1 + $0x428] sm:$0xff]
      %v526 = vld [vmem:[%s1 + $0x430] sm:$0xff]
      %v527 = vld [vmem:[%s1 + $0x438] sm:$0xff]
      %v528 = vld [vmem:[%s1 + $0x440] sm:$0xff]
      %v529 = vld [vmem:[%s1 + $0x448] sm:$0xff]
      %v530 = vld [vmem:[%s1 + $0x450] sm:$0xff]
      %v531 = vld [vmem:[%s1 + $0x458] sm:$0xff]
      %v532 = vld [vmem:[%s1 + $0x460] sm:$0xff]
      %v533 = vld [vmem:[%s1 + $0x468] sm:$0xff]
      %v534 = vld [vmem:[%s1 + $0x470] sm:$0xff]
      %v535 = vld [vmem:[%s1 + $0x478] sm:$0xff]
      %v536 = vld [vmem:[%s1 + $0x480] sm:$0xff]
      %v537 = vld [vmem:[%s1 + $0x488] sm:$0xff]
      %v538 = vld [vmem:[%s1 + $0x490] sm:$0xff]
      %v539 = vld [vmem:[%s1 + $0x498] sm:$0xff]
      %v540 = vld [vmem:[%s1 + $0x4a0] sm:$0xff]
      %v541 = vld [vmem:[%s1 + $0x4a8] sm:$0xff]
      %v542 = vld [vmem:[%s1 + $0x4b0] sm:$0xff]
      %v543 = vld [vmem:[%s1 + $0x4b8] sm:$0xff]
      %v544 = vld [vmem:[%s1 + $0x4c0] sm:$0xff]
      %v545 = vld [vmem:[%s1 + $0x4c8] sm:$0xff]
      %v546 = vld [vmem:[%s1 + $0x4d0] sm:$0xff]
      %v547 = vld [vmem:[%s1 + $0x4d8] sm:$0xff]
      %v548 = vld [vmem:[%s1 + $0x4e0] sm:$0xff]
      %v549 = vld [vmem:[%s1 + $0x4e8] sm:$0xff]
      %v550 = vld [vmem:[%s1 + $0x4f0] sm:$0xff]
      %v551 = vld [vmem:[%s1 + $0x4f8] sm:$0xff]
      %v552 = vld [vmem:[%s1 + $0x500] sm:$0xff]
      %v553 = vld [vmem:[%s1 + $0x508] sm:$0xff]
      %v554 = vld [vmem:[%s1 + $0x510] sm:$0xff]
      %v555 = vld [vmem:[%s1 + $0x518] sm:$0xff]
      %v556 = vld [vmem:[%s1 + $0x520] sm:$0xff]
      %v557 = vld [vmem:[%s1 + $0x528] sm:$0xff]
      %v558 = vld [vmem:[%s1 + $0x530] sm:$0xff]
      %v559 = vld [vmem:[%s1 + $0x538] sm:$0xff]
      %v560 = vld [vmem:[%s1 + $0x540] sm:$0xff]
      %v561 = vld [vmem:[%s1 + $0x548] sm:$0xff]
      %v562 = vld [vmem:[%s1 + $0x550] sm:$0xff]
      %v563 = vld [vmem:[%s1 + $0x558] sm:$0xff]
      %v564 = vld [vmem:[%s1 + $0x560] sm:$0xff]
      %v565 = vld [vmem:[%s1 + $0x568] sm:$0xff]
      %v566 = vld [vmem:[%s1 + $0x570] sm:$0xff]
      %v567 = vld [vmem:[%s1 + $0x578] sm:$0xff]
      %v568 = vld [vmem:[%s1 + $0x580] sm:$0xff]
      %v569 = vld [vmem:[%s1 + $0x588] sm:$0xff]
      %v570 = vld [vmem:[%s1 + $0x590] sm:$0xff]
      %v571 = vld [vmem:[%s1 + $0x598] sm:$0xff]
      %v572 = vld [vmem:[%s1 + $0x5a0] sm:$0xff]
      %v573 = vld [vmem:[%s1 + $0x5a8] sm:$0xff]
      %v574 = vld [vmem:[%s1 + $0x5b0] sm:$0xff]
      %v575 = vld [vmem:[%s1 + $0x5b8] sm:$0xff]
      %v576 = vld [vmem:[%s1 + $0x5c0] sm:$0xff]
      %v577 = vld [vmem:[%s1 + $0x5c8] sm:$0xff]
      %v578 = vld [vmem:[%s1 + $0x5d0] sm:$0xff]
      %v579 = vld [vmem:[%s1 + $0x5d8] sm:$0xff]
      %v580 = vld [vmem:[%s1 + $0x5e0] sm:$0xff]
      %v581 = vld [vmem:[%s1 + $0x5e8] sm:$0xff]
      %v582 = vld [vmem:[%s1 + $0x5f0] sm:$0xff]
      %v583 = vld [vmem:[%s1 + $0x5f8] sm:$0xff]
      %v584 = vld [vmem:[%s1 + $0x600] sm:$0xff]
      %v585 = vld [vmem:[%s1 + $0x608] sm:$0xff]
      %v586 = vld [vmem:[%s1 + $0x610] sm:$0xff]
      %v587 = vld [vmem:[%s1 + $0x618] sm:$0xff]
      %v588 = vld [vmem:[%s1 + $0x620] sm:$0xff]
      %v589 = vld [vmem:[%s1 + $0x628] sm:$0xff]
      %v590 = vld [vmem:[%s1 + $0x630] sm:$0xff]
      %v591 = vld [vmem:[%s1 + $0x638] sm:$0xff]
      %v592 = vld [vmem:[%s1 + $0x640] sm:$0xff]
      %v593 = vld [vmem:[%s1 + $0x648] sm:$0xff]
      %v594 = vld [vmem:[%s1 + $0x650] sm:$0xff]
      %v595 = vld [vmem:[%s1 + $0x658] sm:$0xff]
      %v596 = vld [vmem:[%s1 + $0x660] sm:$0xff]
      %v597 = vld [vmem:[%s1 + $0x668] sm:$0xff]
      %v598 = vld [vmem:[%s1 + $0x670] sm:$0xff]
      %v599 = vld [vmem:[%s1 + $0x678] sm:$0xff]
      %v600 = vld [vmem:[%s1 + $0x680] sm:$0xff]
      %v601 = vld [vmem:[%s1 + $0x688] sm:$0xff]
      %v602 = vld [vmem:[%s1 + $0x690] sm:$0xff]
      %v603 = vld [vmem:[%s1 + $0x698] sm:$0xff]
      %v604 = vld [vmem:[%s1 + $0x6a0] sm:$0xff]
      %v605 = vld [vmem:[%s1 + $0x6a8] sm:$0xff]
      %v606 = vld [vmem:[%s1 + $0x6b0] sm:$0xff]
      %v607 = vld [vmem:[%s1 + $0x6b8] sm:$0xff]
      %v608 = vld [vmem:[%s1 + $0x6c0] sm:$0xff]
      %v609 = vld [vmem:[%s1 + $0x6c8] sm:$0xff]
      %v610 = vld [vmem:[%s1 + $0x6d0] sm:$0xff]
      %v611 = vld [vmem:[%s1 + $0x6d8] sm:$0xff]
      %v612 = vld [vmem:[%s1 + $0x6e0] sm:$0xff]
      %v613 = vld [vmem:[%s1 + $0x6e8] sm:$0xff]
      %v614 = vld [vmem:[%s1 + $0x6f0] sm:$0xff]
      %v615 = vld [vmem:[%s1 + $0x6f8] sm:$0xff]
      %v616 = vld [vmem:[%s1 + $0x700] sm:$0xff]
      %v617 = vld [vmem:[%s1 + $0x708] sm:$0xff]
      %v618 = vld [vmem:[%s1 + $0x710] sm:$0xff]
      %v619 = vld [vmem:[%s1 + $0x718] sm:$0xff]
      %v620 = vld [vmem:[%s1 + $0x720] sm:$0xff]
      %v621 = vld [vmem:[%s1 + $0x728] sm:$0xff]
      %v622 = vld [vmem:[%s1 + $0x730] sm:$0xff]
      %v623 = vld [vmem:[%s1 + $0x738] sm:$0xff]
      %v624 = vld [vmem:[%s1 + $0x740] sm:$0xff]
      %v625 = vld [vmem:[%s1 + $0x748] sm:$0xff]
      %v626 = vld [vmem:[%s1 + $0x750] sm:$0xff]
      %v627 = vld [vmem:[%s1 + $0x758] sm:$0xff]
      %v628 = vld [vmem:[%s1 + $0x760] sm:$0xff]
      %v629 = vld [vmem:[%s1 + $0x768] sm:$0xff]
      %v630 = vld [vmem:[%s1 + $0x770] sm:$0xff]
      %v631 = vld [vmem:[%s1 + $0x778] sm:$0xff]
      %v632 = vld [vmem:[%s1 + $0x780] sm:$0xff]
      %v633 = vld [vmem:[%s1 + $0x788] sm:$0xff]
      %v634 = vld [vmem:[%s1 + $0x790] sm:$0xff]
      %v635 = vld [vmem:[%s1 + $0x798] sm:$0xff]
      %v636 = vld [vmem:[%s1 + $0x7a0] sm:$0xff]
      %v637 = vld [vmem:[%s1 + $0x7a8] sm:$0xff]
      %v638 = vld [vmem:[%s1 + $0x7b0] sm:$0xff]
      %v639 = vld [vmem:[%s1 + $0x7b8] sm:$0xff]
      %v640 = vld [vmem:[%s1 + $0x7c0] sm:$0xff]
      %v641 = vld [vmem:[%s1 + $0x7c8] sm:$0xff]
      %v642 = vld [vmem:[%s1 + $0x7d0] sm:$0xff]
      %v643 = vld [vmem:[%s1 + $0x7d8] sm:$0xff]
      %v644 = vld [vmem:[%s1 + $0x7e0] sm:$0xff]
      %v645 = vld [vmem:[%s1 + $0x7e8] sm:$0xff]
      %v646 = vld [vmem:[%s1 + $0x7f0] sm:$0xff]
      %v647 = vld [vmem:[%s1 + $0x7f8] sm:$0xff]
      %v648 = vld [vmem:[%s3] sm:$0xf]
      %v650 = vlaneseq
      %v651 = vshrl.u32 %v650, 7
      %v652 = vsub.s32 0, %v651
      %v653 = vrot.slane %v648, %v652
      %v654 = vlaneseq
      %v655 = vshrl.u32 %v654, 7
      %v656 = vsub.s32 1, %v655
      %v657 = vrot.slane %v648, %v656
      %v658 = vlaneseq
      %v659 = vshrl.u32 %v658, 7
      %v660 = vsub.s32 2, %v659
      %v661 = vrot.slane %v648, %v660
      %v662 = vlaneseq
      %v663 = vshrl.u32 %v662, 7
      %v664 = vsub.s32 3, %v663
      %v665 = vrot.slane %v648, %v664
      %v702 = vunpack.c.l.b16 %v360
      %v703 = vunpack.c.h.b16 %v360
      %v704 = vunpack.c.l.b16 %v361
      %v705 = vunpack.c.h.b16 %v361
      %v706 = vunpack.c.l.b16 %v362
      %v707 = vunpack.c.h.b16 %v362
      %v708 = vunpack.c.l.b16 %v363
      %v709 = vunpack.c.h.b16 %v363
      %v710 = vunpack.c.l.b16 %v364
      %v711 = vunpack.c.h.b16 %v364
      %v712 = vunpack.c.l.b16 %v365
      %v713 = vunpack.c.h.b16 %v365
      %v714 = vunpack.c.l.b16 %v366
      %v715 = vunpack.c.h.b16 %v366
      %v716 = vunpack.c.l.b16 %v367
      %v717 = vunpack.c.h.b16 %v367
      %v718 = vunpack.c.l.b16 %v368
      %v719 = vunpack.c.h.b16 %v368
      %v720 = vunpack.c.l.b16 %v369
      %v721 = vunpack.c.h.b16 %v369
      %v722 = vunpack.c.l.b16 %v370
      %v723 = vunpack.c.h.b16 %v370
      %v724 = vunpack.c.l.b16 %v371
      %v725 = vunpack.c.h.b16 %v371
      %v726 = vunpack.c.l.b16 %v372
      %v727 = vunpack.c.h.b16 %v372
      %v728 = vunpack.c.l.b16 %v373
      %v729 = vunpack.c.h.b16 %v373
      %v730 = vunpack.c.l.b16 %v374
      %v731 = vunpack.c.h.b16 %v374
      %v732 = vunpack.c.l.b16 %v375
      %v733 = vunpack.c.h.b16 %v375
      %v734 = vunpack.c.l.b16 %v376
      %v735 = vunpack.c.h.b16 %v376
      %v736 = vunpack.c.l.b16 %v377
      %v737 = vunpack.c.h.b16 %v377
      %v738 = vunpack.c.l.b16 %v378
      %v739 = vunpack.c.h.b16 %v378
      %v740 = vunpack.c.l.b16 %v379
      %v741 = vunpack.c.h.b16 %v379
      %v742 = vunpack.c.l.b16 %v380
      %v743 = vunpack.c.h.b16 %v380
      %v744 = vunpack.c.l.b16 %v381
      %v745 = vunpack.c.h.b16 %v381
      %v746 = vunpack.c.l.b16 %v382
      %v747 = vunpack.c.h.b16 %v382
      %v748 = vunpack.c.l.b16 %v383
      %v749 = vunpack.c.h.b16 %v383
      %v750 = vunpack.c.l.b16 %v384
      %v751 = vunpack.c.h.b16 %v384
      %v752 = vunpack.c.l.b16 %v385
      %v753 = vunpack.c.h.b16 %v385
      %v754 = vunpack.c.l.b16 %v386
      %v755 = vunpack.c.h.b16 %v386
      %v756 = vunpack.c.l.b16 %v387
      %v757 = vunpack.c.h.b16 %v387
      %v758 = vunpack.c.l.b16 %v388
      %v759 = vunpack.c.h.b16 %v388
      %v760 = vunpack.c.l.b16 %v389
      %v761 = vunpack.c.h.b16 %v389
      %v762 = vunpack.c.l.b16 %v390
      %v763 = vunpack.c.h.b16 %v390
      %v764 = vunpack.c.l.b16 %v391
      %v765 = vunpack.c.h.b16 %v391
      %v766 = vpack.c.b16 %v710, %v702
      %v767 = vpack.c.b16 %v711, %v703
      %v768 = vpack.c.b16 %v712, %v704
      %v769 = vpack.c.b16 %v713, %v705
      %v770 = vpack.c.b16 %v714, %v706
      %v771 = vpack.c.b16 %v715, %v707
      %v772 = vpack.c.b16 %v716, %v708
      %v773 = vpack.c.b16 %v717, %v709
      %v774 = vpack.c.b16 %v726, %v718
      %v775 = vpack.c.b16 %v727, %v719
      %v776 = vpack.c.b16 %v728, %v720
      %v777 = vpack.c.b16 %v729, %v721
      %v778 = vpack.c.b16 %v730, %v722
      %v779 = vpack.c.b16 %v731, %v723
      %v780 = vpack.c.b16 %v732, %v724
      %v781 = vpack.c.b16 %v733, %v725
      %v782 = vpack.c.b16 %v742, %v734
      %v783 = vpack.c.b16 %v743, %v735
      %v784 = vpack.c.b16 %v744, %v736
      %v785 = vpack.c.b16 %v745, %v737
      %v786 = vpack.c.b16 %v746, %v738
      %v787 = vpack.c.b16 %v747, %v739
      %v788 = vpack.c.b16 %v748, %v740
      %v789 = vpack.c.b16 %v749, %v741
      %v790 = vpack.c.b16 %v758, %v750
      %v791 = vpack.c.b16 %v759, %v751
      %v792 = vpack.c.b16 %v760, %v752
      %v793 = vpack.c.b16 %v761, %v753
      %v794 = vpack.c.b16 %v762, %v754
      %v795 = vpack.c.b16 %v763, %v755
      %v796 = vpack.c.b16 %v764, %v756
      %v797 = vpack.c.b16 %v765, %v757
      %v1086 = vunpack.c.l.b16 %v392
      %v1087 = vunpack.c.h.b16 %v392
      %v1088 = vunpack.c.l.b16 %v393
      %v1089 = vunpack.c.h.b16 %v393
      %v1090 = vunpack.c.l.b16 %v394
      %v1091 = vunpack.c.h.b16 %v394
      %v1092 = vunpack.c.l.b16 %v395
      %v1093 = vunpack.c.h.b16 %v395
      %v1094 = vunpack.c.l.b16 %v396
      %v1095 = vunpack.c.h.b16 %v396
      %v1096 = vunpack.c.l.b16 %v397
      %v1097 = vunpack.c.h.b16 %v397
      %v1098 = vunpack.c.l.b16 %v398
      %v1099 = vunpack.c.h.b16 %v398
      %v1100 = vunpack.c.l.b16 %v399
      %v1101 = vunpack.c.h.b16 %v399
      %v1102 = vunpack.c.l.b16 %v400
      %v1103 = vunpack.c.h.b16 %v400
      %v1104 = vunpack.c.l.b16 %v401
      %v1105 = vunpack.c.h.b16 %v401
      %v1106 = vunpack.c.l.b16 %v402
      %v1107 = vunpack.c.h.b16 %v402
      %v1108 = vunpack.c.l.b16 %v403
      %v1109 = vunpack.c.h.b16 %v403
      %v1110 = vunpack.c.l.b16 %v404
      %v1111 = vunpack.c.h.b16 %v404
      %v1112 = vunpack.c.l.b16 %v405
      %v1113 = vunpack.c.h.b16 %v405
      %v1114 = vunpack.c.l.b16 %v406
      %v1115 = vunpack.c.h.b16 %v406
      %v1116 = vunpack.c.l.b16 %v407
      %v1117 = vunpack.c.h.b16 %v407
      %v1118 = vunpack.c.l.b16 %v408
      %v1119 = vunpack.c.h.b16 %v408
      %v1120 = vunpack.c.l.b16 %v409
      %v1121 = vunpack.c.h.b16 %v409
      %v1122 = vunpack.c.l.b16 %v410
      %v1123 = vunpack.c.h.b16 %v410
      %v1124 = vunpack.c.l.b16 %v411
      %v1125 = vunpack.c.h.b16 %v411
      %v1126 = vunpack.c.l.b16 %v412
      %v1127 = vunpack.c.h.b16 %v412
      %v1128 = vunpack.c.l.b16 %v413
      %v1129 = vunpack.c.h.b16 %v413
      %v1130 = vunpack.c.l.b16 %v414
      %v1131 = vunpack.c.h.b16 %v414
      %v1132 = vunpack.c.l.b16 %v415
      %v1133 = vunpack.c.h.b16 %v415
      %v1134 = vunpack.c.l.b16 %v416
      %v1135 = vunpack.c.h.b16 %v416
      %v1136 = vunpack.c.l.b16 %v417
      %v1137 = vunpack.c.h.b16 %v417
      %v1138 = vunpack.c.l.b16 %v418
      %v1139 = vunpack.c.h.b16 %v418
      %v1140 = vunpack.c.l.b16 %v419
      %v1141 = vunpack.c.h.b16 %v419
      %v1142 = vunpack.c.l.b16 %v420
      %v1143 = vunpack.c.h.b16 %v420
      %v1144 = vunpack.c.l.b16 %v421
      %v1145 = vunpack.c.h.b16 %v421
      %v1146 = vunpack.c.l.b16 %v422
      %v1147 = vunpack.c.h.b16 %v422
      %v1148 = vunpack.c.l.b16 %v423
      %v1149 = vunpack.c.h.b16 %v423
      %v1150 = vunpack.c.l.b16 %v424
      %v1151 = vunpack.c.h.b16 %v424
      %v1152 = vunpack.c.l.b16 %v425
      %v1153 = vunpack.c.h.b16 %v425
      %v1154 = vunpack.c.l.b16 %v426
      %v1155 = vunpack.c.h.b16 %v426
      %v1156 = vunpack.c.l.b16 %v427
      %v1157 = vunpack.c.h.b16 %v427
      %v1158 = vunpack.c.l.b16 %v428
      %v1159 = vunpack.c.h.b16 %v428
      %v1160 = vunpack.c.l.b16 %v429
      %v1161 = vunpack.c.h.b16 %v429
      %v1162 = vunpack.c.l.b16 %v430
      %v1163 = vunpack.c.h.b16 %v430
      %v1164 = vunpack.c.l.b16 %v431
      %v1165 = vunpack.c.h.b16 %v431
      %v1166 = vunpack.c.l.b16 %v432
      %v1167 = vunpack.c.h.b16 %v432
      %v1168 = vunpack.c.l.b16 %v433
      %v1169 = vunpack.c.h.b16 %v433
      %v1170 = vunpack.c.l.b16 %v434
      %v1171 = vunpack.c.h.b16 %v434
      %v1172 = vunpack.c.l.b16 %v435
      %v1173 = vunpack.c.h.b16 %v435
      %v1174 = vunpack.c.l.b16 %v436
      %v1175 = vunpack.c.h.b16 %v436
      %v1176 = vunpack.c.l.b16 %v437
      %v1177 = vunpack.c.h.b16 %v437
      %v1178 = vunpack.c.l.b16 %v438
      %v1179 = vunpack.c.h.b16 %v438
      %v1180 = vunpack.c.l.b16 %v439
      %v1181 = vunpack.c.h.b16 %v439
      %v1182 = vunpack.c.l.b16 %v440
      %v1183 = vunpack.c.h.b16 %v440
      %v1184 = vunpack.c.l.b16 %v441
      %v1185 = vunpack.c.h.b16 %v441
      %v1186 = vunpack.c.l.b16 %v442
      %v1187 = vunpack.c.h.b16 %v442
      %v1188 = vunpack.c.l.b16 %v443
      %v1189 = vunpack.c.h.b16 %v443
      %v1190 = vunpack.c.l.b16 %v444
      %v1191 = vunpack.c.h.b16 %v444
      %v1192 = vunpack.c.l.b16 %v445
      %v1193 = vunpack.c.h.b16 %v445
      %v1194 = vunpack.c.l.b16 %v446
      %v1195 = vunpack.c.h.b16 %v446
      %v1196 = vunpack.c.l.b16 %v447
      %v1197 = vunpack.c.h.b16 %v447
      %v1198 = vunpack.c.l.b16 %v448
      %v1199 = vunpack.c.h.b16 %v448
      %v1200 = vunpack.c.l.b16 %v449
      %v1201 = vunpack.c.h.b16 %v449
      %v1202 = vunpack.c.l.b16 %v450
      %v1203 = vunpack.c.h.b16 %v450
      %v1204 = vunpack.c.l.b16 %v451
      %v1205 = vunpack.c.h.b16 %v451
      %v1206 = vunpack.c.l.b16 %v452
      %v1207 = vunpack.c.h.b16 %v452
      %v1208 = vunpack.c.l.b16 %v453
      %v1209 = vunpack.c.h.b16 %v453
      %v1210 = vunpack.c.l.b16 %v454
      %v1211 = vunpack.c.h.b16 %v454
      %v1212 = vunpack.c.l.b16 %v455
      %v1213 = vunpack.c.h.b16 %v455
      %v1214 = vunpack.c.l.b16 %v456
      %v1215 = vunpack.c.h.b16 %v456
      %v1216 = vunpack.c.l.b16 %v457
      %v1217 = vunpack.c.h.b16 %v457
      %v1218 = vunpack.c.l.b16 %v458
      %v1219 = vunpack.c.h.b16 %v458
      %v1220 = vunpack.c.l.b16 %v459
      %v1221 = vunpack.c.h.b16 %v459
      %v1222 = vunpack.c.l.b16 %v460
      %v1223 = vunpack.c.h.b16 %v460
      %v1224 = vunpack.c.l.b16 %v461
      %v1225 = vunpack.c.h.b16 %v461
      %v1226 = vunpack.c.l.b16 %v462
      %v1227 = vunpack.c.h.b16 %v462
      %v1228 = vunpack.c.l.b16 %v463
      %v1229 = vunpack.c.h.b16 %v463
      %v1230 = vunpack.c.l.b16 %v464
      %v1231 = vunpack.c.h.b16 %v464
      %v1232 = vunpack.c.l.b16 %v465
      %v1233 = vunpack.c.h.b16 %v465
      %v1234 = vunpack.c.l.b16 %v466
      %v1235 = vunpack.c.h.b16 %v466
      %v1236 = vunpack.c.l.b16 %v467
      %v1237 = vunpack.c.h.b16 %v467
      %v1238 = vunpack.c.l.b16 %v468
      %v1239 = vunpack.c.h.b16 %v468
      %v1240 = vunpack.c.l.b16 %v469
      %v1241 = vunpack.c.h.b16 %v469
      %v1242 = vunpack.c.l.b16 %v470
      %v1243 = vunpack.c.h.b16 %v470
      %v1244 = vunpack.c.l.b16 %v471
      %v1245 = vunpack.c.h.b16 %v471
      %v1246 = vunpack.c.l.b16 %v472
      %v1247 = vunpack.c.h.b16 %v472
      %v1248 = vunpack.c.l.b16 %v473
      %v1249 = vunpack.c.h.b16 %v473
      %v1250 = vunpack.c.l.b16 %v474
      %v1251 = vunpack.c.h.b16 %v474
      %v1252 = vunpack.c.l.b16 %v475
      %v1253 = vunpack.c.h.b16 %v475
      %v1254 = vunpack.c.l.b16 %v476
      %v1255 = vunpack.c.h.b16 %v476
      %v1256 = vunpack.c.l.b16 %v477
      %v1257 = vunpack.c.h.b16 %v477
      %v1258 = vunpack.c.l.b16 %v478
      %v1259 = vunpack.c.h.b16 %v478
      %v1260 = vunpack.c.l.b16 %v479
      %v1261 = vunpack.c.h.b16 %v479
      %v1262 = vunpack.c.l.b16 %v480
      %v1263 = vunpack.c.h.b16 %v480
      %v1264 = vunpack.c.l.b16 %v481
      %v1265 = vunpack.c.h.b16 %v481
      %v1266 = vunpack.c.l.b16 %v482
      %v1267 = vunpack.c.h.b16 %v482
      %v1268 = vunpack.c.l.b16 %v483
      %v1269 = vunpack.c.h.b16 %v483
      %v1270 = vunpack.c.l.b16 %v484
      %v1271 = vunpack.c.h.b16 %v484
      %v1272 = vunpack.c.l.b16 %v485
      %v1273 = vunpack.c.h.b16 %v485
      %v1274 = vunpack.c.l.b16 %v486
      %v1275 = vunpack.c.h.b16 %v486
      %v1276 = vunpack.c.l.b16 %v487
      %v1277 = vunpack.c.h.b16 %v487
      %v1278 = vunpack.c.l.b16 %v488
      %v1279 = vunpack.c.h.b16 %v488
      %v1280 = vunpack.c.l.b16 %v489
      %v1281 = vunpack.c.h.b16 %v489
      %v1282 = vunpack.c.l.b16 %v490
      %v1283 = vunpack.c.h.b16 %v490
      %v1284 = vunpack.c.l.b16 %v491
      %v1285 = vunpack.c.h.b16 %v491
      %v1286 = vunpack.c.l.b16 %v492
      %v1287 = vunpack.c.h.b16 %v492
      %v1288 = vunpack.c.l.b16 %v493
      %v1289 = vunpack.c.h.b16 %v493
      %v1290 = vunpack.c.l.b16 %v494
      %v1291 = vunpack.c.h.b16 %v494
      %v1292 = vunpack.c.l.b16 %v495
      %v1293 = vunpack.c.h.b16 %v495
      %v1294 = vunpack.c.l.b16 %v496
      %v1295 = vunpack.c.h.b16 %v496
      %v1296 = vunpack.c.l.b16 %v497
      %v1297 = vunpack.c.h.b16 %v497
      %v1298 = vunpack.c.l.b16 %v498
      %v1299 = vunpack.c.h.b16 %v498
      %v1300 = vunpack.c.l.b16 %v499
      %v1301 = vunpack.c.h.b16 %v499
      %v1302 = vunpack.c.l.b16 %v500
      %v1303 = vunpack.c.h.b16 %v500
      %v1304 = vunpack.c.l.b16 %v501
      %v1305 = vunpack.c.h.b16 %v501
      %v1306 = vunpack.c.l.b16 %v502
      %v1307 = vunpack.c.h.b16 %v502
      %v1308 = vunpack.c.l.b16 %v503
      %v1309 = vunpack.c.h.b16 %v503
      %v1310 = vunpack.c.l.b16 %v504
      %v1311 = vunpack.c.h.b16 %v504
      %v1312 = vunpack.c.l.b16 %v505
      %v1313 = vunpack.c.h.b16 %v505
      %v1314 = vunpack.c.l.b16 %v506
      %v1315 = vunpack.c.h.b16 %v506
      %v1316 = vunpack.c.l.b16 %v507
      %v1317 = vunpack.c.h.b16 %v507
      %v1318 = vunpack.c.l.b16 %v508
      %v1319 = vunpack.c.h.b16 %v508
      %v1320 = vunpack.c.l.b16 %v509
      %v1321 = vunpack.c.h.b16 %v509
      %v1322 = vunpack.c.l.b16 %v510
      %v1323 = vunpack.c.h.b16 %v510
      %v1324 = vunpack.c.l.b16 %v511
      %v1325 = vunpack.c.h.b16 %v511
      %v1326 = vunpack.c.l.b16 %v512
      %v1327 = vunpack.c.h.b16 %v512
      %v1328 = vunpack.c.l.b16 %v513
      %v1329 = vunpack.c.h.b16 %v513
      %v1330 = vunpack.c.l.b16 %v514
      %v1331 = vunpack.c.h.b16 %v514
      %v1332 = vunpack.c.l.b16 %v515
      %v1333 = vunpack.c.h.b16 %v515
      %v1334 = vunpack.c.l.b16 %v516
      %v1335 = vunpack.c.h.b16 %v516
      %v1336 = vunpack.c.l.b16 %v517
      %v1337 = vunpack.c.h.b16 %v517
      %v1338 = vunpack.c.l.b16 %v518
      %v1339 = vunpack.c.h.b16 %v518
      %v1340 = vunpack.c.l.b16 %v519
      %v1341 = vunpack.c.h.b16 %v519
      %v1342 = vunpack.c.l.b16 %v520
      %v1343 = vunpack.c.h.b16 %v520
      %v1344 = vunpack.c.l.b16 %v521
      %v1345 = vunpack.c.h.b16 %v521
      %v1346 = vunpack.c.l.b16 %v522
      %v1347 = vunpack.c.h.b16 %v522
      %v1348 = vunpack.c.l.b16 %v523
      %v1349 = vunpack.c.h.b16 %v523
      %v1350 = vunpack.c.l.b16 %v524
      %v1351 = vunpack.c.h.b16 %v524
      %v1352 = vunpack.c.l.b16 %v525
      %v1353 = vunpack.c.h.b16 %v525
      %v1354 = vunpack.c.l.b16 %v526
      %v1355 = vunpack.c.h.b16 %v526
      %v1356 = vunpack.c.l.b16 %v527
      %v1357 = vunpack.c.h.b16 %v527
      %v1358 = vunpack.c.l.b16 %v528
      %v1359 = vunpack.c.h.b16 %v528
      %v1360 = vunpack.c.l.b16 %v529
      %v1361 = vunpack.c.h.b16 %v529
      %v1362 = vunpack.c.l.b16 %v530
      %v1363 = vunpack.c.h.b16 %v530
      %v1364 = vunpack.c.l.b16 %v531
      %v1365 = vunpack.c.h.b16 %v531
      %v1366 = vunpack.c.l.b16 %v532
      %v1367 = vunpack.c.h.b16 %v532
      %v1368 = vunpack.c.l.b16 %v533
      %v1369 = vunpack.c.h.b16 %v533
      %v1370 = vunpack.c.l.b16 %v534
      %v1371 = vunpack.c.h.b16 %v534
      %v1372 = vunpack.c.l.b16 %v535
      %v1373 = vunpack.c.h.b16 %v535
      %v1374 = vunpack.c.l.b16 %v536
      %v1375 = vunpack.c.h.b16 %v536
      %v1376 = vunpack.c.l.b16 %v537
      %v1377 = vunpack.c.h.b16 %v537
      %v1378 = vunpack.c.l.b16 %v538
      %v1379 = vunpack.c.h.b16 %v538
      %v1380 = vunpack.c.l.b16 %v539
      %v1381 = vunpack.c.h.b16 %v539
      %v1382 = vunpack.c.l.b16 %v540
      %v1383 = vunpack.c.h.b16 %v540
      %v1384 = vunpack.c.l.b16 %v541
      %v1385 = vunpack.c.h.b16 %v541
      %v1386 = vunpack.c.l.b16 %v542
      %v1387 = vunpack.c.h.b16 %v542
      %v1388 = vunpack.c.l.b16 %v543
      %v1389 = vunpack.c.h.b16 %v543
      %v1390 = vunpack.c.l.b16 %v544
      %v1391 = vunpack.c.h.b16 %v544
      %v1392 = vunpack.c.l.b16 %v545
      %v1393 = vunpack.c.h.b16 %v545
      %v1394 = vunpack.c.l.b16 %v546
      %v1395 = vunpack.c.h.b16 %v546
      %v1396 = vunpack.c.l.b16 %v547
      %v1397 = vunpack.c.h.b16 %v547
      %v1398 = vunpack.c.l.b16 %v548
      %v1399 = vunpack.c.h.b16 %v548
      %v1400 = vunpack.c.l.b16 %v549
      %v1401 = vunpack.c.h.b16 %v549
      %v1402 = vunpack.c.l.b16 %v550
      %v1403 = vunpack.c.h.b16 %v550
      %v1404 = vunpack.c.l.b16 %v551
      %v1405 = vunpack.c.h.b16 %v551
      %v1406 = vunpack.c.l.b16 %v552
      %v1407 = vunpack.c.h.b16 %v552
      %v1408 = vunpack.c.l.b16 %v553
      %v1409 = vunpack.c.h.b16 %v553
      %v1410 = vunpack.c.l.b16 %v554
      %v1411 = vunpack.c.h.b16 %v554
      %v1412 = vunpack.c.l.b16 %v555
      %v1413 = vunpack.c.h.b16 %v555
      %v1414 = vunpack.c.l.b16 %v556
      %v1415 = vunpack.c.h.b16 %v556
      %v1416 = vunpack.c.l.b16 %v557
      %v1417 = vunpack.c.h.b16 %v557
      %v1418 = vunpack.c.l.b16 %v558
      %v1419 = vunpack.c.h.b16 %v558
      %v1420 = vunpack.c.l.b16 %v559
      %v1421 = vunpack.c.h.b16 %v559
      %v1422 = vunpack.c.l.b16 %v560
      %v1423 = vunpack.c.h.b16 %v560
      %v1424 = vunpack.c.l.b16 %v561
      %v1425 = vunpack.c.h.b16 %v561
      %v1426 = vunpack.c.l.b16 %v562
      %v1427 = vunpack.c.h.b16 %v562
      %v1428 = vunpack.c.l.b16 %v563
      %v1429 = vunpack.c.h.b16 %v563
      %v1430 = vunpack.c.l.b16 %v564
      %v1431 = vunpack.c.h.b16 %v564
      %v1432 = vunpack.c.l.b16 %v565
      %v1433 = vunpack.c.h.b16 %v565
      %v1434 = vunpack.c.l.b16 %v566
      %v1435 = vunpack.c.h.b16 %v566
      %v1436 = vunpack.c.l.b16 %v567
      %v1437 = vunpack.c.h.b16 %v567
      %v1438 = vunpack.c.l.b16 %v568
      %v1439 = vunpack.c.h.b16 %v568
      %v1440 = vunpack.c.l.b16 %v569
      %v1441 = vunpack.c.h.b16 %v569
      %v1442 = vunpack.c.l.b16 %v570
      %v1443 = vunpack.c.h.b16 %v570
      %v1444 = vunpack.c.l.b16 %v571
      %v1445 = vunpack.c.h.b16 %v571
      %v1446 = vunpack.c.l.b16 %v572
      %v1447 = vunpack.c.h.b16 %v572
      %v1448 = vunpack.c.l.b16 %v573
      %v1449 = vunpack.c.h.b16 %v573
      %v1450 = vunpack.c.l.b16 %v574
      %v1451 = vunpack.c.h.b16 %v574
      %v1452 = vunpack.c.l.b16 %v575
      %v1453 = vunpack.c.h.b16 %v575
      %v1454 = vunpack.c.l.b16 %v576
      %v1455 = vunpack.c.h.b16 %v576
      %v1456 = vunpack.c.l.b16 %v577
      %v1457 = vunpack.c.h.b16 %v577
      %v1458 = vunpack.c.l.b16 %v578
      %v1459 = vunpack.c.h.b16 %v578
      %v1460 = vunpack.c.l.b16 %v579
      %v1461 = vunpack.c.h.b16 %v579
      %v1462 = vunpack.c.l.b16 %v580
      %v1463 = vunpack.c.h.b16 %v580
      %v1464 = vunpack.c.l.b16 %v581
      %v1465 = vunpack.c.h.b16 %v581
      %v1466 = vunpack.c.l.b16 %v582
      %v1467 = vunpack.c.h.b16 %v582
      %v1468 = vunpack.c.l.b16 %v583
      %v1469 = vunpack.c.h.b16 %v583
      %v1470 = vunpack.c.l.b16 %v584
      %v1471 = vunpack.c.h.b16 %v584
      %v1472 = vunpack.c.l.b16 %v585
      %v1473 = vunpack.c.h.b16 %v585
      %v1474 = vunpack.c.l.b16 %v586
      %v1475 = vunpack.c.h.b16 %v586
      %v1476 = vunpack.c.l.b16 %v587
      %v1477 = vunpack.c.h.b16 %v587
      %v1478 = vunpack.c.l.b16 %v588
      %v1479 = vunpack.c.h.b16 %v588
      %v1480 = vunpack.c.l.b16 %v589
      %v1481 = vunpack.c.h.b16 %v589
      %v1482 = vunpack.c.l.b16 %v590
      %v1483 = vunpack.c.h.b16 %v590
      %v1484 = vunpack.c.l.b16 %v591
      %v1485 = vunpack.c.h.b16 %v591
      %v1486 = vunpack.c.l.b16 %v592
      %v1487 = vunpack.c.h.b16 %v592
      %v1488 = vunpack.c.l.b16 %v593
      %v1489 = vunpack.c.h.b16 %v593
      %v1490 = vunpack.c.l.b16 %v594
      %v1491 = vunpack.c.h.b16 %v594
      %v1492 = vunpack.c.l.b16 %v595
      %v1493 = vunpack.c.h.b16 %v595
      %v1494 = vunpack.c.l.b16 %v596
      %v1495 = vunpack.c.h.b16 %v596
      %v1496 = vunpack.c.l.b16 %v597
      %v1497 = vunpack.c.h.b16 %v597
      %v1498 = vunpack.c.l.b16 %v598
      %v1499 = vunpack.c.h.b16 %v598
      %v1500 = vunpack.c.l.b16 %v599
      %v1501 = vunpack.c.h.b16 %v599
      %v1502 = vunpack.c.l.b16 %v600
      %v1503 = vunpack.c.h.b16 %v600
      %v1504 = vunpack.c.l.b16 %v601
      %v1505 = vunpack.c.h.b16 %v601
      %v1506 = vunpack.c.l.b16 %v602
      %v1507 = vunpack.c.h.b16 %v602
      %v1508 = vunpack.c.l.b16 %v603
      %v1509 = vunpack.c.h.b16 %v603
      %v1510 = vunpack.c.l.b16 %v604
      %v1511 = vunpack.c.h.b16 %v604
      %v1512 = vunpack.c.l.b16 %v605
      %v1513 = vunpack.c.h.b16 %v605
      %v1514 = vunpack.c.l.b16 %v606
      %v1515 = vunpack.c.h.b16 %v606
      %v1516 = vunpack.c.l.b16 %v607
      %v1517 = vunpack.c.h.b16 %v607
      %v1518 = vunpack.c.l.b16 %v608
      %v1519 = vunpack.c.h.b16 %v608
      %v1520 = vunpack.c.l.b16 %v609
      %v1521 = vunpack.c.h.b16 %v609
      %v1522 = vunpack.c.l.b16 %v610
      %v1523 = vunpack.c.h.b16 %v610
      %v1524 = vunpack.c.l.b16 %v611
      %v1525 = vunpack.c.h.b16 %v611
      %v1526 = vunpack.c.l.b16 %v612
      %v1527 = vunpack.c.h.b16 %v612
      %v1528 = vunpack.c.l.b16 %v613
      %v1529 = vunpack.c.h.b16 %v613
      %v1530 = vunpack.c.l.b16 %v614
      %v1531 = vunpack.c.h.b16 %v614
      %v1532 = vunpack.c.l.b16 %v615
      %v1533 = vunpack.c.h.b16 %v615
      %v1534 = vunpack.c.l.b16 %v616
      %v1535 = vunpack.c.h.b16 %v616
      %v1536 = vunpack.c.l.b16 %v617
      %v1537 = vunpack.c.h.b16 %v617
      %v1538 = vunpack.c.l.b16 %v618
      %v1539 = vunpack.c.h.b16 %v618
      %v1540 = vunpack.c.l.b16 %v619
      %v1541 = vunpack.c.h.b16 %v619
      %v1542 = vunpack.c.l.b16 %v620
      %v1543 = vunpack.c.h.b16 %v620
      %v1544 = vunpack.c.l.b16 %v621
      %v1545 = vunpack.c.h.b16 %v621
      %v1546 = vunpack.c.l.b16 %v622
      %v1547 = vunpack.c.h.b16 %v622
      %v1548 = vunpack.c.l.b16 %v623
      %v1549 = vunpack.c.h.b16 %v623
      %v1550 = vunpack.c.l.b16 %v624
      %v1551 = vunpack.c.h.b16 %v624
      %v1552 = vunpack.c.l.b16 %v625
      %v1553 = vunpack.c.h.b16 %v625
      %v1554 = vunpack.c.l.b16 %v626
      %v1555 = vunpack.c.h.b16 %v626
      %v1556 = vunpack.c.l.b16 %v627
      %v1557 = vunpack.c.h.b16 %v627
      %v1558 = vunpack.c.l.b16 %v628
      %v1559 = vunpack.c.h.b16 %v628
      %v1560 = vunpack.c.l.b16 %v629
      %v1561 = vunpack.c.h.b16 %v629
      %v1562 = vunpack.c.l.b16 %v630
      %v1563 = vunpack.c.h.b16 %v630
      %v1564 = vunpack.c.l.b16 %v631
      %v1565 = vunpack.c.h.b16 %v631
      %v1566 = vunpack.c.l.b16 %v632
      %v1567 = vunpack.c.h.b16 %v632
      %v1568 = vunpack.c.l.b16 %v633
      %v1569 = vunpack.c.h.b16 %v633
      %v1570 = vunpack.c.l.b16 %v634
      %v1571 = vunpack.c.h.b16 %v634
      %v1572 = vunpack.c.l.b16 %v635
      %v1573 = vunpack.c.h.b16 %v635
      %v1574 = vunpack.c.l.b16 %v636
      %v1575 = vunpack.c.h.b16 %v636
      %v1576 = vunpack.c.l.b16 %v637
      %v1577 = vunpack.c.h.b16 %v637
      %v1578 = vunpack.c.l.b16 %v638
      %v1579 = vunpack.c.h.b16 %v638
      %v1580 = vunpack.c.l.b16 %v639
      %v1581 = vunpack.c.h.b16 %v639
      %v1582 = vunpack.c.l.b16 %v640
      %v1583 = vunpack.c.h.b16 %v640
      %v1584 = vunpack.c.l.b16 %v641
      %v1585 = vunpack.c.h.b16 %v641
      %v1586 = vunpack.c.l.b16 %v642
      %v1587 = vunpack.c.h.b16 %v642
      %v1588 = vunpack.c.l.b16 %v643
      %v1589 = vunpack.c.h.b16 %v643
      %v1590 = vunpack.c.l.b16 %v644
      %v1591 = vunpack.c.h.b16 %v644
      %v1592 = vunpack.c.l.b16 %v645
      %v1593 = vunpack.c.h.b16 %v645
      %v1594 = vunpack.c.l.b16 %v646
      %v1595 = vunpack.c.h.b16 %v646
      %v1596 = vunpack.c.l.b16 %v647
      %v1597 = vunpack.c.h.b16 %v647
      %v1598 = vpack.c.b16 %v1090, %v1086
      %v1599 = vpack.c.b16 %v1091, %v1087
      %v1600 = vpack.c.b16 %v1092, %v1088
      %v1601 = vpack.c.b16 %v1093, %v1089
      %v1602 = vpack.c.b16 %v1098, %v1094
      %v1603 = vpack.c.b16 %v1099, %v1095
      %v1604 = vpack.c.b16 %v1100, %v1096
      %v1605 = vpack.c.b16 %v1101, %v1097
      %v1606 = vpack.c.b16 %v1106, %v1102
      %v1607 = vpack.c.b16 %v1107, %v1103
      %v1608 = vpack.c.b16 %v1108, %v1104
      %v1609 = vpack.c.b16 %v1109, %v1105
      %v1610 = vpack.c.b16 %v1114, %v1110
      %v1611 = vpack.c.b16 %v1115, %v1111
      %v1612 = vpack.c.b16 %v1116, %v1112
      %v1613 = vpack.c.b16 %v1117, %v1113
      %v1614 = vpack.c.b16 %v1122, %v1118
      %v1615 = vpack.c.b16 %v1123, %v1119
      %v1616 = vpack.c.b16 %v1124, %v1120
      %v1617 = vpack.c.b16 %v1125, %v1121
      %v1618 = vpack.c.b16 %v1130, %v1126
      %v1619 = vpack.c.b16 %v1131, %v1127
      %v1620 = vpack.c.b16 %v1132, %v1128
      %v1621 = vpack.c.b16 %v1133, %v1129
      %v1622 = vpack.c.b16 %v1138, %v1134
      %v1623 = vpack.c.b16 %v1139, %v1135
      %v1624 = vpack.c.b16 %v1140, %v1136
      %v1625 = vpack.c.b16 %v1141, %v1137
      %v1626 = vpack.c.b16 %v1146, %v1142
      %v1627 = vpack.c.b16 %v1147, %v1143
      %v1628 = vpack.c.b16 %v1148, %v1144
      %v1629 = vpack.c.b16 %v1149, %v1145
      %v1630 = vpack.c.b16 %v1154, %v1150
      %v1631 = vpack.c.b16 %v1155, %v1151
      %v1632 = vpack.c.b16 %v1156, %v1152
      %v1633 = vpack.c.b16 %v1157, %v1153
      %v1634 = vpack.c.b16 %v1162, %v1158
      %v1635 = vpack.c.b16 %v1163, %v1159
      %v1636 = vpack.c.b16 %v1164, %v1160
      %v1637 = vpack.c.b16 %v1165, %v1161
      %v1638 = vpack.c.b16 %v1170, %v1166
      %v1639 = vpack.c.b16 %v1171, %v1167
      %v1640 = vpack.c.b16 %v1172, %v1168
      %v1641 = vpack.c.b16 %v1173, %v1169
      %v1642 = vpack.c.b16 %v1178, %v1174
      %v1643 = vpack.c.b16 %v1179, %v1175
      %v1644 = vpack.c.b16 %v1180, %v1176
      %v1645 = vpack.c.b16 %v1181, %v1177
      %v1646 = vpack.c.b16 %v1186, %v1182
      %v1647 = vpack.c.b16 %v1187, %v1183
      %v1648 = vpack.c.b16 %v1188, %v1184
      %v1649 = vpack.c.b16 %v1189, %v1185
      %v1650 = vpack.c.b16 %v1194, %v1190
      %v1651 = vpack.c.b16 %v1195, %v1191
      %v1652 = vpack.c.b16 %v1196, %v1192
      %v1653 = vpack.c.b16 %v1197, %v1193
      %v1654 = vpack.c.b16 %v1202, %v1198
      %v1655 = vpack.c.b16 %v1203, %v1199
      %v1656 = vpack.c.b16 %v1204, %v1200
      %v1657 = vpack.c.b16 %v1205, %v1201
      %v1658 = vpack.c.b16 %v1210, %v1206
      %v1659 = vpack.c.b16 %v1211, %v1207
      %v1660 = vpack.c.b16 %v1212, %v1208
      %v1661 = vpack.c.b16 %v1213, %v1209
      %v1662 = vpack.c.b16 %v1218, %v1214
      %v1663 = vpack.c.b16 %v1219, %v1215
      %v1664 = vpack.c.b16 %v1220, %v1216
      %v1665 = vpack.c.b16 %v1221, %v1217
      %v1666 = vpack.c.b16 %v1226, %v1222
      %v1667 = vpack.c.b16 %v1227, %v1223
      %v1668 = vpack.c.b16 %v1228, %v1224
      %v1669 = vpack.c.b16 %v1229, %v1225
      %v1670 = vpack.c.b16 %v1234, %v1230
      %v1671 = vpack.c.b16 %v1235, %v1231
      %v1672 = vpack.c.b16 %v1236, %v1232
      %v1673 = vpack.c.b16 %v1237, %v1233
      %v1674 = vpack.c.b16 %v1242, %v1238
      %v1675 = vpack.c.b16 %v1243, %v1239
      %v1676 = vpack.c.b16 %v1244, %v1240
      %v1677 = vpack.c.b16 %v1245, %v1241
      %v1678 = vpack.c.b16 %v1250, %v1246
      %v1679 = vpack.c.b16 %v1251, %v1247
      %v1680 = vpack.c.b16 %v1252, %v1248
      %v1681 = vpack.c.b16 %v1253, %v1249
      %v1682 = vpack.c.b16 %v1258, %v1254
      %v1683 = vpack.c.b16 %v1259, %v1255
      %v1684 = vpack.c.b16 %v1260, %v1256
      %v1685 = vpack.c.b16 %v1261, %v1257
      %v1686 = vpack.c.b16 %v1266, %v1262
      %v1687 = vpack.c.b16 %v1267, %v1263
      %v1688 = vpack.c.b16 %v1268, %v1264
      %v1689 = vpack.c.b16 %v1269, %v1265
      %v1690 = vpack.c.b16 %v1274, %v1270
      %v1691 = vpack.c.b16 %v1275, %v1271
      %v1692 = vpack.c.b16 %v1276, %v1272
      %v1693 = vpack.c.b16 %v1277, %v1273
      %v1694 = vpack.c.b16 %v1282, %v1278
      %v1695 = vpack.c.b16 %v1283, %v1279
      %v1696 = vpack.c.b16 %v1284, %v1280
      %v1697 = vpack.c.b16 %v1285, %v1281
      %v1698 = vpack.c.b16 %v1290, %v1286
      %v1699 = vpack.c.b16 %v1291, %v1287
      %v1700 = vpack.c.b16 %v1292, %v1288
      %v1701 = vpack.c.b16 %v1293, %v1289
      %v1702 = vpack.c.b16 %v1298, %v1294
      %v1703 = vpack.c.b16 %v1299, %v1295
      %v1704 = vpack.c.b16 %v1300, %v1296
      %v1705 = vpack.c.b16 %v1301, %v1297
      %v1706 = vpack.c.b16 %v1306, %v1302
      %v1707 = vpack.c.b16 %v1307, %v1303
      %v1708 = vpack.c.b16 %v1308, %v1304
      %v1709 = vpack.c.b16 %v1309, %v1305
      %v1710 = vpack.c.b16 %v1314, %v1310
      %v1711 = vpack.c.b16 %v1315, %v1311
      %v1712 = vpack.c.b16 %v1316, %v1312
      %v1713 = vpack.c.b16 %v1317, %v1313
      %v1714 = vpack.c.b16 %v1322, %v1318
      %v1715 = vpack.c.b16 %v1323, %v1319
      %v1716 = vpack.c.b16 %v1324, %v1320
      %v1717 = vpack.c.b16 %v1325, %v1321
      %v1718 = vpack.c.b16 %v1330, %v1326
      %v1719 = vpack.c.b16 %v1331, %v1327
      %v1720 = vpack.c.b16 %v1332, %v1328
      %v1721 = vpack.c.b16 %v1333, %v1329
      %v1722 = vpack.c.b16 %v1338, %v1334
      %v1723 = vpack.c.b16 %v1339, %v1335
      %v1724 = vpack.c.b16 %v1340, %v1336
      %v1725 = vpack.c.b16 %v1341, %v1337
      %v1726 = vpack.c.b16 %v1346, %v1342
      %v1727 = vpack.c.b16 %v1347, %v1343
      %v1728 = vpack.c.b16 %v1348, %v1344
      %v1729 = vpack.c.b16 %v1349, %v1345
      %v1730 = vpack.c.b16 %v1354, %v1350
      %v1731 = vpack.c.b16 %v1355, %v1351
      %v1732 = vpack.c.b16 %v1356, %v1352
      %v1733 = vpack.c.b16 %v1357, %v1353
      %v1734 = vpack.c.b16 %v1362, %v1358
      %v1735 = vpack.c.b16 %v1363, %v1359
      %v1736 = vpack.c.b16 %v1364, %v1360
      %v1737 = vpack.c.b16 %v1365, %v1361
      %v1738 = vpack.c.b16 %v1370, %v1366
      %v1739 = vpack.c.b16 %v1371, %v1367
      %v1740 = vpack.c.b16 %v1372, %v1368
      %v1741 = vpack.c.b16 %v1373, %v1369
      %v1742 = vpack.c.b16 %v1378, %v1374
      %v1743 = vpack.c.b16 %v1379, %v1375
      %v1744 = vpack.c.b16 %v1380, %v1376
      %v1745 = vpack.c.b16 %v1381, %v1377
      %v1746 = vpack.c.b16 %v1386, %v1382
      %v1747 = vpack.c.b16 %v1387, %v1383
      %v1748 = vpack.c.b16 %v1388, %v1384
      %v1749 = vpack.c.b16 %v1389, %v1385
      %v1750 = vpack.c.b16 %v1394, %v1390
      %v1751 = vpack.c.b16 %v1395, %v1391
      %v1752 = vpack.c.b16 %v1396, %v1392
      %v1753 = vpack.c.b16 %v1397, %v1393
      %v1754 = vpack.c.b16 %v1402, %v1398
      %v1755 = vpack.c.b16 %v1403, %v1399
      %v1756 = vpack.c.b16 %v1404, %v1400
      %v1757 = vpack.c.b16 %v1405, %v1401
      %v1758 = vpack.c.b16 %v1410, %v1406
      %v1759 = vpack.c.b16 %v1411, %v1407
      %v1760 = vpack.c.b16 %v1412, %v1408
      %v1761 = vpack.c.b16 %v1413, %v1409
      %v1762 = vpack.c.b16 %v1418, %v1414
      %v1763 = vpack.c.b16 %v1419, %v1415
      %v1764 = vpack.c.b16 %v1420, %v1416
      %v1765 = vpack.c.b16 %v1421, %v1417
      %v1766 = vpack.c.b16 %v1426, %v1422
      %v1767 = vpack.c.b16 %v1427, %v1423
      %v1768 = vpack.c.b16 %v1428, %v1424
      %v1769 = vpack.c.b16 %v1429, %v1425
      %v1770 = vpack.c.b16 %v1434, %v1430
      %v1771 = vpack.c.b16 %v1435, %v1431
      %v1772 = vpack.c.b16 %v1436, %v1432
      %v1773 = vpack.c.b16 %v1437, %v1433
      %v1774 = vpack.c.b16 %v1442, %v1438
      %v1775 = vpack.c.b16 %v1443, %v1439
      %v1776 = vpack.c.b16 %v1444, %v1440
      %v1777 = vpack.c.b16 %v1445, %v1441
      %v1778 = vpack.c.b16 %v1450, %v1446
      %v1779 = vpack.c.b16 %v1451, %v1447
      %v1780 = vpack.c.b16 %v1452, %v1448
      %v1781 = vpack.c.b16 %v1453, %v1449
      %v1782 = vpack.c.b16 %v1458, %v1454
      %v1783 = vpack.c.b16 %v1459, %v1455
      %v1784 = vpack.c.b16 %v1460, %v1456
      %v1785 = vpack.c.b16 %v1461, %v1457
      %v1786 = vpack.c.b16 %v1466, %v1462
      %v1787 = vpack.c.b16 %v1467, %v1463
      %v1788 = vpack.c.b16 %v1468, %v1464
      %v1789 = vpack.c.b16 %v1469, %v1465
      %v1790 = vpack.c.b16 %v1474, %v1470
      %v1791 = vpack.c.b16 %v1475, %v1471
      %v1792 = vpack.c.b16 %v1476, %v1472
      %v1793 = vpack.c.b16 %v1477, %v1473
      %v1794 = vpack.c.b16 %v1482, %v1478
      %v1795 = vpack.c.b16 %v1483, %v1479
      %v1796 = vpack.c.b16 %v1484, %v1480
      %v1797 = vpack.c.b16 %v1485, %v1481
      %v1798 = vpack.c.b16 %v1490, %v1486
      %v1799 = vpack.c.b16 %v1491, %v1487
      %v1800 = vpack.c.b16 %v1492, %v1488
      %v1801 = vpack.c.b16 %v1493, %v1489
      %v1802 = vpack.c.b16 %v1498, %v1494
      %v1803 = vpack.c.b16 %v1499, %v1495
      %v1804 = vpack.c.b16 %v1500, %v1496
      %v1805 = vpack.c.b16 %v1501, %v1497
      %v1806 = vpack.c.b16 %v1506, %v1502
      %v1807 = vpack.c.b16 %v1507, %v1503
      %v1808 = vpack.c.b16 %v1508, %v1504
      %v1809 = vpack.c.b16 %v1509, %v1505
      %v1810 = vpack.c.b16 %v1514, %v1510
      %v1811 = vpack.c.b16 %v1515, %v1511
      %v1812 = vpack.c.b16 %v1516, %v1512
      %v1813 = vpack.c.b16 %v1517, %v1513
      %v1814 = vpack.c.b16 %v1522, %v1518
      %v1815 = vpack.c.b16 %v1523, %v1519
      %v1816 = vpack.c.b16 %v1524, %v1520
      %v1817 = vpack.c.b16 %v1525, %v1521
      %v1818 = vpack.c.b16 %v1530, %v1526
      %v1819 = vpack.c.b16 %v1531, %v1527
      %v1820 = vpack.c.b16 %v1532, %v1528
      %v1821 = vpack.c.b16 %v1533, %v1529
      %v1822 = vpack.c.b16 %v1538, %v1534
      %v1823 = vpack.c.b16 %v1539, %v1535
      %v1824 = vpack.c.b16 %v1540, %v1536
      %v1825 = vpack.c.b16 %v1541, %v1537
      %v1826 = vpack.c.b16 %v1546, %v1542
      %v1827 = vpack.c.b16 %v1547, %v1543
      %v1828 = vpack.c.b16 %v1548, %v1544
      %v1829 = vpack.c.b16 %v1549, %v1545
      %v1830 = vpack.c.b16 %v1554, %v1550
      %v1831 = vpack.c.b16 %v1555, %v1551
      %v1832 = vpack.c.b16 %v1556, %v1552
      %v1833 = vpack.c.b16 %v1557, %v1553
      %v1834 = vpack.c.b16 %v1562, %v1558
      %v1835 = vpack.c.b16 %v1563, %v1559
      %v1836 = vpack.c.b16 %v1564, %v1560
      %v1837 = vpack.c.b16 %v1565, %v1561
      %v1838 = vpack.c.b16 %v1570, %v1566
      %v1839 = vpack.c.b16 %v1571, %v1567
      %v1840 = vpack.c.b16 %v1572, %v1568
      %v1841 = vpack.c.b16 %v1573, %v1569
      %v1842 = vpack.c.b16 %v1578, %v1574
      %v1843 = vpack.c.b16 %v1579, %v1575
      %v1844 = vpack.c.b16 %v1580, %v1576
      %v1845 = vpack.c.b16 %v1581, %v1577
      %v1846 = vpack.c.b16 %v1586, %v1582
      %v1847 = vpack.c.b16 %v1587, %v1583
      %v1848 = vpack.c.b16 %v1588, %v1584
      %v1849 = vpack.c.b16 %v1589, %v1585
      %v1850 = vpack.c.b16 %v1594, %v1590
      %v1851 = vpack.c.b16 %v1595, %v1591
      %v1852 = vpack.c.b16 %v1596, %v1592
      %v1853 = vpack.c.b16 %v1597, %v1593
      %2110 = vmatprep.subr.bf16.mxu0 %v1599
      %2111 = vmatpush1.bf16.msra.mxu0 %v1598
      %2112 = vmatprep.subr.bf16.mxu0 %v1603
      %2113 = vmatpush1.bf16.msra.mxu0 %v1602
      %2114 = vmatprep.subr.bf16.mxu0 %v1607
      %2115 = vmatpush1.bf16.msra.mxu0 %v1606
      %2116 = vmatprep.subr.bf16.mxu0 %v1611
      %2117 = vmatpush1.bf16.msra.mxu0 %v1610
      %2118 = vmatprep.subr.bf16.mxu0 %v1615
      %2119 = vmatpush1.bf16.msra.mxu0 %v1614
      %2120 = vmatprep.subr.bf16.mxu0 %v1619
      %2121 = vmatpush1.bf16.msra.mxu0 %v1618
      %2122 = vmatprep.subr.bf16.mxu0 %v1623
      %2123 = vmatpush1.bf16.msra.mxu0 %v1622
      %2124 = vmatprep.subr.bf16.mxu0 %v1627
      %2125 = vmatpush1.bf16.msra.mxu0 %v1626
      %2126 = vmatprep.subr.bf16.mxu0 %v1631
      %2127 = vmatpush1.bf16.msra.mxu0 %v1630
      %2128 = vmatprep.subr.bf16.mxu0 %v1635
      %2129 = vmatpush1.bf16.msra.mxu0 %v1634
      %2130 = vmatprep.subr.bf16.mxu0 %v1639
      %2131 = vmatpush1.bf16.msra.mxu0 %v1638
      %2132 = vmatprep.subr.bf16.mxu0 %v1643
      %2133 = vmatpush1.bf16.msra.mxu0 %v1642
      %2134 = vmatprep.subr.bf16.mxu0 %v1647
      %2135 = vmatpush1.bf16.msra.mxu0 %v1646
      %2136 = vmatprep.subr.bf16.mxu0 %v1651
      %2137 = vmatpush1.bf16.msra.mxu0 %v1650
      %2138 = vmatprep.subr.bf16.mxu0 %v1655
      %2139 = vmatpush1.bf16.msra.mxu0 %v1654
      %2140 = vmatprep.subr.bf16.mxu0 %v1659
      %2141 = vmatpush1.bf16.msra.mxu0 %v1658
      %2142 = vmatprep.mubr.bf16.mxu0 %v767
      %2143 = vmatmul.mubr.bf16.gmra.mrb[0].mxu0 %v766
      %v2144 = vpop.f32.mrb[0].mxu0
      %v2145 = vadd.f32 %v653, %v2144
      %v2146 = vpop.f32.mrb[0].mxu0
      %v2147 = vadd.f32 %v657, %v2146
      %v2148 = vpop.f32.mrb[0].mxu0
      %v2149 = vadd.f32 %v653, %v2148
      %v2150 = vpop.f32.mrb[0].mxu0
      %v2151 = vadd.f32 %v657, %v2150
      %2152 = vmatprep.mubr.bf16.mxu0 %v775
      %2153 = vmatmul.mubr.bf16.gmra.mrb[0].mxu0 %v774
      %v2154 = vpop.f32.mrb[0].mxu0
      %v2155 = vadd.f32 %v653, %v2154
      %v2156 = vpop.f32.mrb[0].mxu0
      %v2157 = vadd.f32 %v657, %v2156
      %v2158 = vpop.f32.mrb[0].mxu0
      %v2159 = vadd.f32 %v653, %v2158
      %v2160 = vpop.f32.mrb[0].mxu0
      %v2161 = vadd.f32 %v657, %v2160
      %2162 = vmatprep.mubr.bf16.mxu0 %v783
      %2163 = vmatmul.mubr.bf16.gmra.mrb[0].mxu0 %v782
      %v2164 = vpop.f32.mrb[0].mxu0
      %v2165 = vadd.f32 %v653, %v2164
      %v2166 = vpop.f32.mrb[0].mxu0
      %v2167 = vadd.f32 %v657, %v2166
      %v2168 = vpop.f32.mrb[0].mxu0
      %v2169 = vadd.f32 %v653, %v2168
      %v2170 = vpop.f32.mrb[0].mxu0
      %v2171 = vadd.f32 %v657, %v2170
      %2172 = vmatprep.mubr.bf16.mxu0 %v791
      %2173 = vmatmul.mubr.bf16.gmra.mrb[0].mxu0 %v790
      %v2174 = vpop.f32.mrb[0].mxu0
      %v2175 = vadd.f32 %v653, %v2174
      %v2176 = vpop.f32.mrb[0].mxu0
      %v2177 = vadd.f32 %v657, %v2176
      %v2178 = vpop.f32.mrb[0].mxu0
      %v2179 = vadd.f32 %v653, %v2178
      %v2180 = vpop.f32.mrb[0].mxu0
      %v2181 = vadd.f32 %v657, %v2180
      %2182 = vdwg.mxu0
      %2183 = vmatprep.subr.bf16.mxu0 %v1663
      %2184 = vmatpush1.bf16.msra.mxu0 %v1662
      %2185 = vmatprep.subr.bf16.mxu0 %v1667
      %2186 = vmatpush1.bf16.msra.mxu0 %v1666
      %2187 = vmatprep.subr.bf16.mxu0 %v1671
      %2188 = vmatpush1.bf16.msra.mxu0 %v1670
      %2189 = vmatprep.subr.bf16.mxu0 %v1675
      %2190 = vmatpush1.bf16.msra.mxu0 %v1674
      %2191 = vmatprep.subr.bf16.mxu0 %v1679
      %2192 = vmatpush1.bf16.msra.mxu0 %v1678
      %2193 = vmatprep.subr.bf16.mxu0 %v1683
      %2194 = vmatpush1.bf16.msra.mxu0 %v1682
      %2195 = vmatprep.subr.bf16.mxu0 %v1687
      %2196 = vmatpush1.bf16.msra.mxu0 %v1686
      %2197 = vmatprep.subr.bf16.mxu0 %v1691
      %2198 = vmatpush1.bf16.msra.mxu0 %v1690
      %2199 = vmatprep.subr.bf16.mxu0 %v1695
      %2200 = vmatpush1.bf16.msra.mxu0 %v1694
      %2201 = vmatprep.subr.bf16.mxu0 %v1699
      %2202 = vmatpush1.bf16.msra.mxu0 %v1698
      %2203 = vmatprep.subr.bf16.mxu0 %v1703
      %2204 = vmatpush1.bf16.msra.mxu0 %v1702
      %2205 = vmatprep.subr.bf16.mxu0 %v1707
      %2206 = vmatpush1.bf16.msra.mxu0 %v1706
      %2207 = vmatprep.subr.bf16.mxu0 %v1711
      %2208 = vmatpush1.bf16.msra.mxu0 %v1710
      %2209 = vmatprep.subr.bf16.mxu0 %v1715
      %2210 = vmatpush1.bf16.msra.mxu0 %v1714
      %2211 = vmatprep.subr.bf16.mxu0 %v1719
      %2212 = vmatpush1.bf16.msra.mxu0 %v1718
      %2213 = vmatprep.subr.bf16.mxu0 %v1723
      %2214 = vmatpush1.bf16.msra.mxu0 %v1722
      %2215 = vmatprep.mubr.bf16.mxu0 %v769
      %2216 = vmatmul.mubr.bf16.gmra.mrb[0].mxu0 %v768
      %v2217 = vpop.f32.mrb[0].mxu0
      %v2218 = vadd.f32 %v2145, %v2217
      %v2219 = vpop.f32.mrb[0].mxu0
      %v2220 = vadd.f32 %v2147, %v2219
      %v2221 = vpop.f32.mrb[0].mxu0
      %v2222 = vadd.f32 %v2149, %v2221
      %v2223 = vpop.f32.mrb[0].mxu0
      %v2224 = vadd.f32 %v2151, %v2223
      %2225 = vmatprep.mubr.bf16.mxu0 %v777
      %2226 = vmatmul.mubr.bf16.gmra.mrb[0].mxu0 %v776
      %v2227 = vpop.f32.mrb[0].mxu0
      %v2228 = vadd.f32 %v2155, %v2227
      %v2229 = vpop.f32.mrb[0].mxu0
      %v2230 = vadd.f32 %v2157, %v2229
      %v2231 = vpop.f32.mrb[0].mxu0
      %v2232 = vadd.f32 %v2159, %v2231
      %v2233 = vpop.f32.mrb[0].mxu0
      %v2234 = vadd.f32 %v2161, %v2233
      %2235 = vmatprep.mubr.bf16.mxu0 %v785
      %2236 = vmatmul.mubr.bf16.gmra.mrb[0].mxu0 %v784
      %v2237 = vpop.f32.mrb[0].mxu0
      %v2238 = vadd.f32 %v2165, %v2237
      %v2239 = vpop.f32.mrb[0].mxu0
      %v2240 = vadd.f32 %v2167, %v2239
      %v2241 = vpop.f32.mrb[0].mxu0
      %v2242 = vadd.f32 %v2169, %v2241
      %v2243 = vpop.f32.mrb[0].mxu0
      %v2244 = vadd.f32 %v2171, %v2243
      %2245 = vmatprep.mubr.bf16.mxu0 %v793
      %2246 = vmatmul.mubr.bf16.gmra.mrb[0].mxu0 %v792
      %v2247 = vpop.f32.mrb[0].mxu0
      %v2248 = vadd.f32 %v2175, %v2247
      %v2249 = vpop.f32.mrb[0].mxu0
      %v2250 = vadd.f32 %v2177, %v2249
      %v2251 = vpop.f32.mrb[0].mxu0
      %v2252 = vadd.f32 %v2179, %v2251
      %v2253 = vpop.f32.mrb[0].mxu0
      %v2254 = vadd.f32 %v2181, %v2253
      %2255 = vdwg.mxu0
      %2256 = vmatprep.subr.bf16.mxu0 %v1727
      %2257 = vmatpush1.bf16.msra.mxu0 %v1726
      %2258 = vmatprep.subr.bf16.mxu0 %v1731
      %2259 = vmatpush1.bf16.msra.mxu0 %v1730
      %2260 = vmatprep.subr.bf16.mxu0 %v1735
      %2261 = vmatpush1.bf16.msra.mxu0 %v1734
      %2262 = vmatprep.subr.bf16.mxu0 %v1739
      %2263 = vmatpush1.bf16.msra.mxu0 %v1738
      %2264 = vmatprep.subr.bf16.mxu0 %v1743
      %2265 = vmatpush1.bf16.msra.mxu0 %v1742
      %2266 = vmatprep.subr.bf16.mxu0 %v1747
      %2267 = vmatpush1.bf16.msra.mxu0 %v1746
      %2268 = vmatprep.subr.bf16.mxu0 %v1751
      %2269 = vmatpush1.bf16.msra.mxu0 %v1750
      %2270 = vmatprep.subr.bf16.mxu0 %v1755
      %2271 = vmatpush1.bf16.msra.mxu0 %v1754
      %2272 = vmatprep.subr.bf16.mxu0 %v1759
      %2273 = vmatpush1.bf16.msra.mxu0 %v1758
      %2274 = vmatprep.subr.bf16.mxu0 %v1763
      %2275 = vmatpush1.bf16.msra.mxu0 %v1762
      %2276 = vmatprep.subr.bf16.mxu0 %v1767
      %2277 = vmatpush1.bf16.msra.mxu0 %v1766
      %2278 = vmatprep.subr.bf16.mxu0 %v1771
      %2279 = vmatpush1.bf16.msra.mxu0 %v1770
      %2280 = vmatprep.subr.bf16.mxu0 %v1775
      %2281 = vmatpush1.bf16.msra.mxu0 %v1774
      %2282 = vmatprep.subr.bf16.mxu0 %v1779
      %2283 = vmatpush1.bf16.msra.mxu0 %v1778
      %2284 = vmatprep.subr.bf16.mxu0 %v1783
      %2285 = vmatpush1.bf16.msra.mxu0 %v1782
      %2286 = vmatprep.subr.bf16.mxu0 %v1787
      %2287 = vmatpush1.bf16.msra.mxu0 %v1786
      %2288 = vmatprep.mubr.bf16.mxu0 %v771
      %2289 = vmatmul.mubr.bf16.gmra.mrb[0].mxu0 %v770
      %v2290 = vpop.f32.mrb[0].mxu0
      %v2291 = vadd.f32 %v2218, %v2290
      %v2292 = vpop.f32.mrb[0].mxu0
      %v2293 = vadd.f32 %v2220, %v2292
      %v2294 = vpop.f32.mrb[0].mxu0
      %v2295 = vadd.f32 %v2222, %v2294
      %v2296 = vpop.f32.mrb[0].mxu0
      %v2297 = vadd.f32 %v2224, %v2296
      %2298 = vmatprep.mubr.bf16.mxu0 %v779
      %2299 = vmatmul.mubr.bf16.gmra.mrb[0].mxu0 %v778
      %v2300 = vpop.f32.mrb[0].mxu0
      %v2301 = vadd.f32 %v2228, %v2300
      %v2302 = vpop.f32.mrb[0].mxu0
      %v2303 = vadd.f32 %v2230, %v2302
      %v2304 = vpop.f32.mrb[0].mxu0
      %v2305 = vadd.f32 %v2232, %v2304
      %v2306 = vpop.f32.mrb[0].mxu0
      %v2307 = vadd.f32 %v2234, %v2306
      %2308 = vmatprep.mubr.bf16.mxu0 %v787
      %2309 = vmatmul.mubr.bf16.gmra.mrb[0].mxu0 %v786
      %v2310 = vpop.f32.mrb[0].mxu0
      %v2311 = vadd.f32 %v2238, %v2310
      %v2312 = vpop.f32.mrb[0].mxu0
      %v2313 = vadd.f32 %v2240, %v2312
      %v2314 = vpop.f32.mrb[0].mxu0
      %v2315 = vadd.f32 %v2242, %v2314
      %v2316 = vpop.f32.mrb[0].mxu0
      %v2317 = vadd.f32 %v2244, %v2316
      %2318 = vmatprep.mubr.bf16.mxu0 %v795
      %2319 = vmatmul.mubr.bf16.gmra.mrb[0].mxu0 %v794
      %v2320 = vpop.f32.mrb[0].mxu0
      %v2321 = vadd.f32 %v2248, %v2320
      %v2322 = vpop.f32.mrb[0].mxu0
      %v2323 = vadd.f32 %v2250, %v2322
      %v2324 = vpop.f32.mrb[0].mxu0
      %v2325 = vadd.f32 %v2252, %v2324
      %v2326 = vpop.f32.mrb[0].mxu0
      %v2327 = vadd.f32 %v2254, %v2326
      %2328 = vdwg.mxu0
      %2329 = vmatprep.subr.bf16.mxu0 %v1791
      %2330 = vmatpush1.bf16.msra.mxu0 %v1790
      %2331 = vmatprep.subr.bf16.mxu0 %v1795
      %2332 = vmatpush1.bf16.msra.mxu0 %v1794
      %2333 = vmatprep.subr.bf16.mxu0 %v1799
      %2334 = vmatpush1.bf16.msra.mxu0 %v1798
      %2335 = vmatprep.subr.bf16.mxu0 %v1803
      %2336 = vmatpush1.bf16.msra.mxu0 %v1802
      %2337 = vmatprep.subr.bf16.mxu0 %v1807
      %2338 = vmatpush1.bf16.msra.mxu0 %v1806
      %2339 = vmatprep.subr.bf16.mxu0 %v1811
      %2340 = vmatpush1.bf16.msra.mxu0 %v1810
      %2341 = vmatprep.subr.bf16.mxu0 %v1815
      %2342 = vmatpush1.bf16.msra.mxu0 %v1814
      %2343 = vmatprep.subr.bf16.mxu0 %v1819
      %2344 = vmatpush1.bf16.msra.mxu0 %v1818
      %2345 = vmatprep.subr.bf16.mxu0 %v1823
      %2346 = vmatpush1.bf16.msra.mxu0 %v1822
      %2347 = vmatprep.subr.bf16.mxu0 %v1827
      %2348 = vmatpush1.bf16.msra.mxu0 %v1826
      %2349 = vmatprep.subr.bf16.mxu0 %v1831
      %2350 = vmatpush1.bf16.msra.mxu0 %v1830
      %2351 = vmatprep.subr.bf16.mxu0 %v1835
      %2352 = vmatpush1.bf16.msra.mxu0 %v1834
      %2353 = vmatprep.subr.bf16.mxu0 %v1839
      %2354 = vmatpush1.bf16.msra.mxu0 %v1838
      %2355 = vmatprep.subr.bf16.mxu0 %v1843
      %2356 = vmatpush1.bf16.msra.mxu0 %v1842
      %2357 = vmatprep.subr.bf16.mxu0 %v1847
      %2358 = vmatpush1.bf16.msra.mxu0 %v1846
      %2359 = vmatprep.subr.bf16.mxu0 %v1851
      %2360 = vmatpush1.bf16.msra.mxu0 %v1850
      %2361 = vmatprep.mubr.bf16.mxu0 %v773
      %2362 = vmatmul.mubr.bf16.gmra.mrb[0].mxu0 %v772
      %v2363 = vpop.f32.mrb[0].mxu0
      %v2364 = vadd.f32 %v2291, %v2363
      %v2365 = vpop.f32.mrb[0].mxu0
      %v2366 = vadd.f32 %v2293, %v2365
      %v2367 = vpop.f32.mrb[0].mxu0
      %v2368 = vadd.f32 %v2295, %v2367
      %v2369 = vpop.f32.mrb[0].mxu0
      %v2370 = vadd.f32 %v2297, %v2369
      %2371 = vmatprep.mubr.bf16.mxu0 %v781
      %2372 = vmatmul.mubr.bf16.gmra.mrb[0].mxu0 %v780
      %v2373 = vpop.f32.mrb[0].mxu0
      %v2374 = vadd.f32 %v2301, %v2373
      %v2375 = vpop.f32.mrb[0].mxu0
      %v2376 = vadd.f32 %v2303, %v2375
      %v2377 = vpop.f32.mrb[0].mxu0
      %v2378 = vadd.f32 %v2305, %v2377
      %v2379 = vpop.f32.mrb[0].mxu0
      %v2380 = vadd.f32 %v2307, %v2379
      %2381 = vmatprep.mubr.bf16.mxu0 %v789
      %2382 = vmatmul.mubr.bf16.gmra.mrb[0].mxu0 %v788
      %v2383 = vpop.f32.mrb[0].mxu0
      %v2384 = vadd.f32 %v2311, %v2383
      %v2385 = vpop.f32.mrb[0].mxu0
      %v2386 = vadd.f32 %v2313, %v2385
      %v2387 = vpop.f32.mrb[0].mxu0
      %v2388 = vadd.f32 %v2315, %v2387
      %v2389 = vpop.f32.mrb[0].mxu0
      %v2390 = vadd.f32 %v2317, %v2389
      %2391 = vmatprep.mubr.bf16.mxu0 %v797
      %2392 = vmatmul.mubr.bf16.gmra.mrb[0].mxu0 %v796
      %v2393 = vpop.f32.mrb[0].mxu0
      %v2394 = vadd.f32 %v2321, %v2393
      %v2395 = vpop.f32.mrb[0].mxu0
      %v2396 = vadd.f32 %v2323, %v2395
      %v2397 = vpop.f32.mrb[0].mxu0
      %v2398 = vadd.f32 %v2325, %v2397
      %v2399 = vpop.f32.mrb[0].mxu0
      %v2400 = vadd.f32 %v2327, %v2399
      %2401 = vdwg.mxu0
      %2402 = vmatprep.subr.bf16.mxu0 %v1601
      %2403 = vmatpush1.bf16.msra.mxu0 %v1600
      %2404 = vmatprep.subr.bf16.mxu0 %v1605
      %2405 = vmatpush1.bf16.msra.mxu0 %v1604
      %2406 = vmatprep.subr.bf16.mxu0 %v1609
      %2407 = vmatpush1.bf16.msra.mxu0 %v1608
      %2408 = vmatprep.subr.bf16.mxu0 %v1613
      %2409 = vmatpush1.bf16.msra.mxu0 %v1612
      %2410 = vmatprep.subr.bf16.mxu0 %v1617
      %2411 = vmatpush1.bf16.msra.mxu0 %v1616
      %2412 = vmatprep.subr.bf16.mxu0 %v1621
      %2413 = vmatpush1.bf16.msra.mxu0 %v1620
      %2414 = vmatprep.subr.bf16.mxu0 %v1625
      %2415 = vmatpush1.bf16.msra.mxu0 %v1624
      %2416 = vmatprep.subr.bf16.mxu0 %v1629
      %2417 = vmatpush1.bf16.msra.mxu0 %v1628
      %2418 = vmatprep.subr.bf16.mxu0 %v1633
      %2419 = vmatpush1.bf16.msra.mxu0 %v1632
      %2420 = vmatprep.subr.bf16.mxu0 %v1637
      %2421 = vmatpush1.bf16.msra.mxu0 %v1636
      %2422 = vmatprep.subr.bf16.mxu0 %v1641
      %2423 = vmatpush1.bf16.msra.mxu0 %v1640
      %2424 = vmatprep.subr.bf16.mxu0 %v1645
      %2425 = vmatpush1.bf16.msra.mxu0 %v1644
      %2426 = vmatprep.subr.bf16.mxu0 %v1649
      %2427 = vmatpush1.bf16.msra.mxu0 %v1648
      %2428 = vmatprep.subr.bf16.mxu0 %v1653
      %2429 = vmatpush1.bf16.msra.mxu0 %v1652
      %2430 = vmatprep.subr.bf16.mxu0 %v1657
      %2431 = vmatpush1.bf16.msra.mxu0 %v1656
      %2432 = vmatprep.subr.bf16.mxu0 %v1661
      %2433 = vmatpush1.bf16.msra.mxu0 %v1660
      %2434 = vmatprep.mubr.bf16.mxu0 %v767
      %2435 = vmatmul.mubr.bf16.gmra.mrb[0].mxu0 %v766
      %v2436 = vpop.f32.mrb[0].mxu0
      %v2437 = vadd.f32 %v661, %v2436
      %v2438 = vpop.f32.mrb[0].mxu0
      %v2439 = vadd.f32 %v665, %v2438
      %v2440 = vpop.f32.mrb[0].mxu0
      %v2441 = vadd.f32 %v661, %v2440
      %v2442 = vpop.f32.mrb[0].mxu0
      %v2443 = vadd.f32 %v665, %v2442
      %2444 = vmatprep.mubr.bf16.mxu0 %v775
      %2445 = vmatmul.mubr.bf16.gmra.mrb[0].mxu0 %v774
      %v2446 = vpop.f32.mrb[0].mxu0
      %v2447 = vadd.f32 %v661, %v2446
      %v2448 = vpop.f32.mrb[0].mxu0
      %v2449 = vadd.f32 %v665, %v2448
      %v2450 = vpop.f32.mrb[0].mxu0
      %v2451 = vadd.f32 %v661, %v2450
      %v2452 = vpop.f32.mrb[0].mxu0
      %v2453 = vadd.f32 %v665, %v2452
      %2454 = vmatprep.mubr.bf16.mxu0 %v783
      %2455 = vmatmul.mubr.bf16.gmra.mrb[0].mxu0 %v782
      %v2456 = vpop.f32.mrb[0].mxu0
      %v2457 = vadd.f32 %v661, %v2456
      %v2458 = vpop.f32.mrb[0].mxu0
      %v2459 = vadd.f32 %v665, %v2458
      %v2460 = vpop.f32.mrb[0].mxu0
      %v2461 = vadd.f32 %v661, %v2460
      %v2462 = vpop.f32.mrb[0].mxu0
      %v2463 = vadd.f32 %v665, %v2462
      %2464 = vmatprep.mubr.bf16.mxu0 %v791
      %2465 = vmatmul.mubr.bf16.gmra.mrb[0].mxu0 %v790
      %v2466 = vpop.f32.mrb[0].mxu0
      %v2467 = vadd.f32 %v661, %v2466
      %v2468 = vpop.f32.mrb[0].mxu0
      %v2469 = vadd.f32 %v665, %v2468
      %v2470 = vpop.f32.mrb[0].mxu0
      %v2471 = vadd.f32 %v661, %v2470
      %v2472 = vpop.f32.mrb[0].mxu0
      %v2473 = vadd.f32 %v665, %v2472
      %2474 = vdwg.mxu0
      %2475 = vmatprep.subr.bf16.mxu0 %v1665
      %2476 = vmatpush1.bf16.msra.mxu0 %v1664
      %2477 = vmatprep.subr.bf16.mxu0 %v1669
      %2478 = vmatpush1.bf16.msra.mxu0 %v1668
      %2479 = vmatprep.subr.bf16.mxu0 %v1673
      %2480 = vmatpush1.bf16.msra.mxu0 %v1672
      %2481 = vmatprep.subr.bf16.mxu0 %v1677
      %2482 = vmatpush1.bf16.msra.mxu0 %v1676
      %2483 = vmatprep.subr.bf16.mxu0 %v1681
      %2484 = vmatpush1.bf16.msra.mxu0 %v1680
      %2485 = vmatprep.subr.bf16.mxu0 %v1685
      %2486 = vmatpush1.bf16.msra.mxu0 %v1684
      %2487 = vmatprep.subr.bf16.mxu0 %v1689
      %2488 = vmatpush1.bf16.msra.mxu0 %v1688
      %2489 = vmatprep.subr.bf16.mxu0 %v1693
      %2490 = vmatpush1.bf16.msra.mxu0 %v1692
      %2491 = vmatprep.subr.bf16.mxu0 %v1697
      %2492 = vmatpush1.bf16.msra.mxu0 %v1696
      %2493 = vmatprep.subr.bf16.mxu0 %v1701
      %2494 = vmatpush1.bf16.msra.mxu0 %v1700
      %2495 = vmatprep.subr.bf16.mxu0 %v1705
      %2496 = vmatpush1.bf16.msra.mxu0 %v1704
      %2497 = vmatprep.subr.bf16.mxu0 %v1709
      %2498 = vmatpush1.bf16.msra.mxu0 %v1708
      %2499 = vmatprep.subr.bf16.mxu0 %v1713
      %2500 = vmatpush1.bf16.msra.mxu0 %v1712
      %2501 = vmatprep.subr.bf16.mxu0 %v1717
      %2502 = vmatpush1.bf16.msra.mxu0 %v1716
      %2503 = vmatprep.subr.bf16.mxu0 %v1721
      %2504 = vmatpush1.bf16.msra.mxu0 %v1720
      %2505 = vmatprep.subr.bf16.mxu0 %v1725
      %2506 = vmatpush1.bf16.msra.mxu0 %v1724
      %2507 = vmatprep.mubr.bf16.mxu0 %v769
      %2508 = vmatmul.mubr.bf16.gmra.mrb[0].mxu0 %v768
      %v2509 = vpop.f32.mrb[0].mxu0
      %v2510 = vadd.f32 %v2437, %v2509
      %v2511 = vpop.f32.mrb[0].mxu0
      %v2512 = vadd.f32 %v2439, %v2511
      %v2513 = vpop.f32.mrb[0].mxu0
      %v2514 = vadd.f32 %v2441, %v2513
      %v2515 = vpop.f32.mrb[0].mxu0
      %v2516 = vadd.f32 %v2443, %v2515
      %2517 = vmatprep.mubr.bf16.mxu0 %v777
      %2518 = vmatmul.mubr.bf16.gmra.mrb[0].mxu0 %v776
      %v2519 = vpop.f32.mrb[0].mxu0
      %v2520 = vadd.f32 %v2447, %v2519
      %v2521 = vpop.f32.mrb[0].mxu0
      %v2522 = vadd.f32 %v2449, %v2521
      %v2523 = vpop.f32.mrb[0].mxu0
      %v2524 = vadd.f32 %v2451, %v2523
      %v2525 = vpop.f32.mrb[0].mxu0
      %v2526 = vadd.f32 %v2453, %v2525
      %2527 = vmatprep.mubr.bf16.mxu0 %v785
      %2528 = vmatmul.mubr.bf16.gmra.mrb[0].mxu0 %v784
      %v2529 = vpop.f32.mrb[0].mxu0
      %v2530 = vadd.f32 %v2457, %v2529
      %v2531 = vpop.f32.mrb[0].mxu0
      %v2532 = vadd.f32 %v2459, %v2531
      %v2533 = vpop.f32.mrb[0].mxu0
      %v2534 = vadd.f32 %v2461, %v2533
      %v2535 = vpop.f32.mrb[0].mxu0
      %v2536 = vadd.f32 %v2463, %v2535
      %2537 = vmatprep.mubr.bf16.mxu0 %v793
      %2538 = vmatmul.mubr.bf16.gmra.mrb[0].mxu0 %v792
      %v2539 = vpop.f32.mrb[0].mxu0
      %v2540 = vadd.f32 %v2467, %v2539
      %v2541 = vpop.f32.mrb[0].mxu0
      %v2542 = vadd.f32 %v2469, %v2541
      %v2543 = vpop.f32.mrb[0].mxu0
      %v2544 = vadd.f32 %v2471, %v2543
      %v2545 = vpop.f32.mrb[0].mxu0
      %v2546 = vadd.f32 %v2473, %v2545
      %2547 = vdwg.mxu0
      %2548 = vmatprep.subr.bf16.mxu0 %v1729
      %2549 = vmatpush1.bf16.msra.mxu0 %v1728
      %2550 = vmatprep.subr.bf16.mxu0 %v1733
      %2551 = vmatpush1.bf16.msra.mxu0 %v1732
      %2552 = vmatprep.subr.bf16.mxu0 %v1737
      %2553 = vmatpush1.bf16.msra.mxu0 %v1736
      %2554 = vmatprep.subr.bf16.mxu0 %v1741
      %2555 = vmatpush1.bf16.msra.mxu0 %v1740
      %2556 = vmatprep.subr.bf16.mxu0 %v1745
      %2557 = vmatpush1.bf16.msra.mxu0 %v1744
      %2558 = vmatprep.subr.bf16.mxu0 %v1749
      %2559 = vmatpush1.bf16.msra.mxu0 %v1748
      %2560 = vmatprep.subr.bf16.mxu0 %v1753
      %2561 = vmatpush1.bf16.msra.mxu0 %v1752
      %2562 = vmatprep.subr.bf16.mxu0 %v1757
      %2563 = vmatpush1.bf16.msra.mxu0 %v1756
      %2564 = vmatprep.subr.bf16.mxu0 %v1761
      %2565 = vmatpush1.bf16.msra.mxu0 %v1760
      %2566 = vmatprep.subr.bf16.mxu0 %v1765
      %2567 = vmatpush1.bf16.msra.mxu0 %v1764
      %2568 = vmatprep.subr.bf16.mxu0 %v1769
      %2569 = vmatpush1.bf16.msra.mxu0 %v1768
      %2570 = vmatprep.subr.bf16.mxu0 %v1773
      %2571 = vmatpush1.bf16.msra.mxu0 %v1772
      %2572 = vmatprep.subr.bf16.mxu0 %v1777
      %2573 = vmatpush1.bf16.msra.mxu0 %v1776
      %2574 = vmatprep.subr.bf16.mxu0 %v1781
      %2575 = vmatpush1.bf16.msra.mxu0 %v1780
      %2576 = vmatprep.subr.bf16.mxu0 %v1785
      %2577 = vmatpush1.bf16.msra.mxu0 %v1784
      %2578 = vmatprep.subr.bf16.mxu0 %v1789
      %2579 = vmatpush1.bf16.msra.mxu0 %v1788
      %2580 = vmatprep.mubr.bf16.mxu0 %v771
      %2581 = vmatmul.mubr.bf16.gmra.mrb[0].mxu0 %v770
      %v2582 = vpop.f32.mrb[0].mxu0
      %v2583 = vadd.f32 %v2510, %v2582
      %v2584 = vpop.f32.mrb[0].mxu0
      %v2585 = vadd.f32 %v2512, %v2584
      %v2586 = vpop.f32.mrb[0].mxu0
      %v2587 = vadd.f32 %v2514, %v2586
      %v2588 = vpop.f32.mrb[0].mxu0
      %v2589 = vadd.f32 %v2516, %v2588
      %2590 = vmatprep.mubr.bf16.mxu0 %v779
      %2591 = vmatmul.mubr.bf16.gmra.mrb[0].mxu0 %v778
      %v2592 = vpop.f32.mrb[0].mxu0
      %v2593 = vadd.f32 %v2520, %v2592
      %v2594 = vpop.f32.mrb[0].mxu0
      %v2595 = vadd.f32 %v2522, %v2594
      %v2596 = vpop.f32.mrb[0].mxu0
      %v2597 = vadd.f32 %v2524, %v2596
      %v2598 = vpop.f32.mrb[0].mxu0
      %v2599 = vadd.f32 %v2526, %v2598
      %2600 = vmatprep.mubr.bf16.mxu0 %v787
      %2601 = vmatmul.mubr.bf16.gmra.mrb[0].mxu0 %v786
      %v2602 = vpop.f32.mrb[0].mxu0
      %v2603 = vadd.f32 %v2530, %v2602
      %v2604 = vpop.f32.mrb[0].mxu0
      %v2605 = vadd.f32 %v2532, %v2604
      %v2606 = vpop.f32.mrb[0].mxu0
      %v2607 = vadd.f32 %v2534, %v2606
      %v2608 = vpop.f32.mrb[0].mxu0
      %v2609 = vadd.f32 %v2536, %v2608
      %2610 = vmatprep.mubr.bf16.mxu0 %v795
      %2611 = vmatmul.mubr.bf16.gmra.mrb[0].mxu0 %v794
      %v2612 = vpop.f32.mrb[0].mxu0
      %v2613 = vadd.f32 %v2540, %v2612
      %v2614 = vpop.f32.mrb[0].mxu0
      %v2615 = vadd.f32 %v2542, %v2614
      %v2616 = vpop.f32.mrb[0].mxu0
      %v2617 = vadd.f32 %v2544, %v2616
      %v2618 = vpop.f32.mrb[0].mxu0
      %v2619 = vadd.f32 %v2546, %v2618
      %2620 = vdwg.mxu0
      %2621 = vmatprep.subr.bf16.mxu0 %v1793
      %2622 = vmatpush1.bf16.msra.mxu0 %v1792
      %2623 = vmatprep.subr.bf16.mxu0 %v1797
      %2624 = vmatpush1.bf16.msra.mxu0 %v1796
      %2625 = vmatprep.subr.bf16.mxu0 %v1801
      %2626 = vmatpush1.bf16.msra.mxu0 %v1800
      %2627 = vmatprep.subr.bf16.mxu0 %v1805
      %2628 = vmatpush1.bf16.msra.mxu0 %v1804
      %2629 = vmatprep.subr.bf16.mxu0 %v1809
      %2630 = vmatpush1.bf16.msra.mxu0 %v1808
      %2631 = vmatprep.subr.bf16.mxu0 %v1813
      %2632 = vmatpush1.bf16.msra.mxu0 %v1812
      %2633 = vmatprep.subr.bf16.mxu0 %v1817
      %2634 = vmatpush1.bf16.msra.mxu0 %v1816
      %2635 = vmatprep.subr.bf16.mxu0 %v1821
      %2636 = vmatpush1.bf16.msra.mxu0 %v1820
      %2637 = vmatprep.subr.bf16.mxu0 %v1825
      %2638 = vmatpush1.bf16.msra.mxu0 %v1824
      %2639 = vmatprep.subr.bf16.mxu0 %v1829
      %2640 = vmatpush1.bf16.msra.mxu0 %v1828
      %2641 = vmatprep.subr.bf16.mxu0 %v1833
      %2642 = vmatpush1.bf16.msra.mxu0 %v1832
      %2643 = vmatprep.subr.bf16.mxu0 %v1837
      %2644 = vmatpush1.bf16.msra.mxu0 %v1836
      %2645 = vmatprep.subr.bf16.mxu0 %v1841
      %2646 = vmatpush1.bf16.msra.mxu0 %v1840
      %2647 = vmatprep.subr.bf16.mxu0 %v1845
      %2648 = vmatpush1.bf16.msra.mxu0 %v1844
      %2649 = vmatprep.subr.bf16.mxu0 %v1849
      %2650 = vmatpush1.bf16.msra.mxu0 %v1848
      %2651 = vmatprep.subr.bf16.mxu0 %v1853
      %2652 = vmatpush1.bf16.msra.mxu0 %v1852
      %2653 = vmatprep.mubr.bf16.mxu0 %v773
      %2654 = vmatmul.mubr.bf16.gmra.mrb[0].mxu0 %v772
      %v2655 = vpop.f32.mrb[0].mxu0
      %v2656 = vadd.f32 %v2583, %v2655
      %v2657 = vpop.f32.mrb[0].mxu0
      %v2658 = vadd.f32 %v2585, %v2657
      %v2659 = vpop.f32.mrb[0].mxu0
      %v2660 = vadd.f32 %v2587, %v2659
      %v2661 = vpop.f32.mrb[0].mxu0
      %v2662 = vadd.f32 %v2589, %v2661
      %2663 = vmatprep.mubr.bf16.mxu0 %v781
      %2664 = vmatmul.mubr.bf16.gmra.mrb[0].mxu0 %v780
      %v2665 = vpop.f32.mrb[0].mxu0
      %v2666 = vadd.f32 %v2593, %v2665
      %v2667 = vpop.f32.mrb[0].mxu0
      %v2668 = vadd.f32 %v2595, %v2667
      %v2669 = vpop.f32.mrb[0].mxu0
      %v2670 = vadd.f32 %v2597, %v2669
      %v2671 = vpop.f32.mrb[0].mxu0
      %v2672 = vadd.f32 %v2599, %v2671
      %2673 = vmatprep.mubr.bf16.mxu0 %v789
      %2674 = vmatmul.mubr.bf16.gmra.mrb[0].mxu0 %v788
      %v2675 = vpop.f32.mrb[0].mxu0
      %v2676 = vadd.f32 %v2603, %v2675
      %v2677 = vpop.f32.mrb[0].mxu0
      %v2678 = vadd.f32 %v2605, %v2677
      %v2679 = vpop.f32.mrb[0].mxu0
      %v2680 = vadd.f32 %v2607, %v2679
      %v2681 = vpop.f32.mrb[0].mxu0
      %v2682 = vadd.f32 %v2609, %v2681
      %2683 = vmatprep.mubr.bf16.mxu0 %v797
      %2684 = vmatmul.mubr.bf16.gmra.mrb[0].mxu0 %v796
      %v2685 = vpop.f32.mrb[0].mxu0
      %v2686 = vadd.f32 %v2613, %v2685
      %v2687 = vpop.f32.mrb[0].mxu0
      %v2688 = vadd.f32 %v2615, %v2687
      %v2689 = vpop.f32.mrb[0].mxu0
      %v2690 = vadd.f32 %v2617, %v2689
      %v2691 = vpop.f32.mrb[0].mxu0
      %v2692 = vadd.f32 %v2619, %v2691
      %2693 = vdwg.mxu0
      %2694 = vst [vmem:[#allocation2] sm:$0xff] %v2364
      %2695 = vst [vmem:[#allocation2 + $0x8] sm:$0xff] %v2366
      %2696 = vst [vmem:[#allocation2 + $0x10] sm:$0xff] %v2656
      %2697 = vst [vmem:[#allocation2 + $0x18] sm:$0xff] %v2658
      %2698 = vst [vmem:[#allocation2 + $0x20] sm:$0xff] %v2368
      %2699 = vst [vmem:[#allocation2 + $0x28] sm:$0xff] %v2370
      %2700 = vst [vmem:[#allocation2 + $0x30] sm:$0xff] %v2660
      %2701 = vst [vmem:[#allocation2 + $0x38] sm:$0xff] %v2662
      %2702 = vst [vmem:[#allocation2 + $0x40] sm:$0xff] %v2374
      %2703 = vst [vmem:[#allocation2 + $0x48] sm:$0xff] %v2376
      %2704 = vst [vmem:[#allocation2 + $0x50] sm:$0xff] %v2666
      %2705 = vst [vmem:[#allocation2 + $0x58] sm:$0xff] %v2668
      %2706 = vst [vmem:[#allocation2 + $0x60] sm:$0xff] %v2378
      %2707 = vst [vmem:[#allocation2 + $0x68] sm:$0xff] %v2380
      %2708 = vst [vmem:[#allocation2 + $0x70] sm:$0xff] %v2670
      %2709 = vst [vmem:[#allocation2 + $0x78] sm:$0xff] %v2672
      %2710 = vst [vmem:[#allocation2 + $0x80] sm:$0xff] %v2384
      %2711 = vst [vmem:[#allocation2 + $0x88] sm:$0xff] %v2386
      %2712 = vst [vmem:[#allocation2 + $0x90] sm:$0xff] %v2676
      %2713 = vst [vmem:[#allocation2 + $0x98] sm:$0xff] %v2678
      %2714 = vst [vmem:[#allocation2 + $0xa0] sm:$0xff] %v2388
      %2715 = vst [vmem:[#allocation2 + $0xa8] sm:$0xff] %v2390
      %2716 = vst [vmem:[#allocation2 + $0xb0] sm:$0xff] %v2680
      %2717 = vst [vmem:[#allocation2 + $0xb8] sm:$0xff] %v2682
      %2718 = vst [vmem:[#allocation2 + $0xc0] sm:$0xff] %v2394
      %2719 = vst [vmem:[#allocation2 + $0xc8] sm:$0xff] %v2396
      %2720 = vst [vmem:[#allocation2 + $0xd0] sm:$0xff] %v2686
      %2721 = vst [vmem:[#allocation2 + $0xd8] sm:$0xff] %v2688
      %2722 = vst [vmem:[#allocation2 + $0xe0] sm:$0xff] %v2398
      %2723 = vst [vmem:[#allocation2 + $0xe8] sm:$0xff] %v2400
      %2724 = vst [vmem:[#allocation2 + $0xf0] sm:$0xff] %v2690
      %2725 = vst [vmem:[#allocation2 + $0xf8] sm:$0xff] %v2692
      %v2726 = vlaneseq
      %v2727 = vand.u32 %v2726, 127
      %s2728 = smul.u32 %s23, 8
      %v2729 = vld [vmem:[#allocation3] sm:$0xff]
      %v2730 = vld [vmem:[#allocation4] sm:$0xff]
      %v2731 = vld [vmem:[#allocation5] sm:$0xff]
      %v2732 = vld [vmem:[#allocation2] sm:$0xff]
      %v2733 = vld [vmem:[#allocation2 + $0x8] sm:$0xff]
      %v2734 = vld [vmem:[#allocation2 + $0x10] sm:$0xff]
      %v2735 = vld [vmem:[#allocation2 + $0x18] sm:$0xff]
      %v2736 = vpack.c.bf16 %v2729, %v2729
      %v2737 = vld [vmem:[%s2] sm:$0xff]
      %v2738 = vld [vmem:[%s2 + $0x8] sm:$0xff]
      %v2739 = vld [vmem:[%s2 + $0x10] sm:$0xff]
      %v2740 = vld [vmem:[%s2 + $0x18] sm:$0xff]
      %v2741 = vld [vmem:[%s2 + $0x20] sm:$0xff]
      %v2742 = vld [vmem:[%s2 + $0x28] sm:$0xff]
      %v2743 = vld [vmem:[%s2 + $0x30] sm:$0xff]
      %v2744 = vld [vmem:[%s2 + $0x38] sm:$0xff]
      %v2745 = vld [vmem:[%s2 + $0x40] sm:$0xff]
      %v2746 = vld [vmem:[%s2 + $0x48] sm:$0xff]
      %v2747 = vld [vmem:[%s2 + $0x50] sm:$0xff]
      %v2748 = vld [vmem:[%s2 + $0x58] sm:$0xff]
      %v2749 = vld [vmem:[%s2 + $0x60] sm:$0xff]
      %v2750 = vld [vmem:[%s2 + $0x68] sm:$0xff]
      %v2751 = vld [vmem:[%s2 + $0x70] sm:$0xff]
      %v2752 = vld [vmem:[%s2 + $0x78] sm:$0xff]
      %v2753 = vld [vmem:[%s2 + $0x80] sm:$0xff]
      %v2754 = vld [vmem:[%s2 + $0x88] sm:$0xff]
      %v2755 = vld [vmem:[%s2 + $0x90] sm:$0xff]
      %v2756 = vld [vmem:[%s2 + $0x98] sm:$0xff]
      %v2757 = vld [vmem:[%s2 + $0xa0] sm:$0xff]
      %v2758 = vld [vmem:[%s2 + $0xa8] sm:$0xff]
      %v2759 = vld [vmem:[%s2 + $0xb0] sm:$0xff]
      %v2760 = vld [vmem:[%s2 + $0xb8] sm:$0xff]
      %v2761 = vld [vmem:[%s2 + $0xc0] sm:$0xff]
      %v2762 = vld [vmem:[%s2 + $0xc8] sm:$0xff]
      %v2763 = vld [vmem:[%s2 + $0xd0] sm:$0xff]
      %v2764 = vld [vmem:[%s2 + $0xd8] sm:$0xff]
      %v2765 = vld [vmem:[%s2 + $0xe0] sm:$0xff]
      %v2766 = vld [vmem:[%s2 + $0xe8] sm:$0xff]
      %v2767 = vld [vmem:[%s2 + $0xf0] sm:$0xff]
      %v2768 = vld [vmem:[%s2 + $0xf8] sm:$0xff]
      %v2801 = vunpack.c.l.b16 %v2737
      %v2802 = vunpack.c.h.b16 %v2737
      %v2803 = vunpack.c.l.b16 %v2738
      %v2804 = vunpack.c.h.b16 %v2738
      %v2805 = vunpack.c.l.b16 %v2739
      %v2806 = vunpack.c.h.b16 %v2739
      %v2807 = vunpack.c.l.b16 %v2740
      %v2808 = vunpack.c.h.b16 %v2740
      %v2809 = vunpack.c.l.b16 %v2741
      %v2810 = vunpack.c.h.b16 %v2741
      %v2811 = vunpack.c.l.b16 %v2742
      %v2812 = vunpack.c.h.b16 %v2742
      %v2813 = vunpack.c.l.b16 %v2743
      %v2814 = vunpack.c.h.b16 %v2743
      %v2815 = vunpack.c.l.b16 %v2744
      %v2816 = vunpack.c.h.b16 %v2744
      %v2817 = vunpack.c.l.b16 %v2745
      %v2818 = vunpack.c.h.b16 %v2745
      %v2819 = vunpack.c.l.b16 %v2746
      %v2820 = vunpack.c.h.b16 %v2746
      %v2821 = vunpack.c.l.b16 %v2747
      %v2822 = vunpack.c.h.b16 %v2747
      %v2823 = vunpack.c.l.b16 %v2748
      %v2824 = vunpack.c.h.b16 %v2748
      %v2825 = vunpack.c.l.b16 %v2749
      %v2826 = vunpack.c.h.b16 %v2749
      %v2827 = vunpack.c.l.b16 %v2750
      %v2828 = vunpack.c.h.b16 %v2750
      %v2829 = vunpack.c.l.b16 %v2751
      %v2830 = vunpack.c.h.b16 %v2751
      %v2831 = vunpack.c.l.b16 %v2752
      %v2832 = vunpack.c.h.b16 %v2752
      %v2833 = vunpack.c.l.b16 %v2753
      %v2834 = vunpack.c.h.b16 %v2753
      %v2835 = vunpack.c.l.b16 %v2754
      %v2836 = vunpack.c.h.b16 %v2754
      %v2837 = vunpack.c.l.b16 %v2755
      %v2838 = vunpack.c.h.b16 %v2755
      %v2839 = vunpack.c.l.b16 %v2756
      %v2840 = vunpack.c.h.b16 %v2756
      %v2841 = vunpack.c.l.b16 %v2757
      %v2842 = vunpack.c.h.b16 %v2757
      %v2843 = vunpack.c.l.b16 %v2758
      %v2844 = vunpack.c.h.b16 %v2758
      %v2845 = vunpack.c.l.b16 %v2759
      %v2846 = vunpack.c.h.b16 %v2759
      %v2847 = vunpack.c.l.b16 %v2760
      %v2848 = vunpack.c.h.b16 %v2760
      %v2849 = vunpack.c.l.b16 %v2761
      %v2850 = vunpack.c.h.b16 %v2761
      %v2851 = vunpack.c.l.b16 %v2762
      %v2852 = vunpack.c.h.b16 %v2762
      %v2853 = vunpack.c.l.b16 %v2763
      %v2854 = vunpack.c.h.b16 %v2763
      %v2855 = vunpack.c.l.b16 %v2764
      %v2856 = vunpack.c.h.b16 %v2764
      %v2857 = vunpack.c.l.b16 %v2765
      %v2858 = vunpack.c.h.b16 %v2765
      %v2859 = vunpack.c.l.b16 %v2766
      %v2860 = vunpack.c.h.b16 %v2766
      %v2861 = vunpack.c.l.b16 %v2767
      %v2862 = vunpack.c.h.b16 %v2767
      %v2863 = vunpack.c.l.b16 %v2768
      %v2864 = vunpack.c.h.b16 %v2768
      %v2865 = vpack.c.b16 %v2805, %v2801
      %v2866 = vpack.c.b16 %v2806, %v2802
      %v2867 = vpack.c.b16 %v2807, %v2803
      %v2868 = vpack.c.b16 %v2808, %v2804
      %v2869 = vpack.c.b16 %v2813, %v2809
      %v2870 = vpack.c.b16 %v2814, %v2810
      %v2871 = vpack.c.b16 %v2815, %v2811
      %v2872 = vpack.c.b16 %v2816, %v2812
      %v2873 = vpack.c.b16 %v2821, %v2817
      %v2874 = vpack.c.b16 %v2822, %v2818
      %v2875 = vpack.c.b16 %v2823, %v2819
      %v2876 = vpack.c.b16 %v2824, %v2820
      %v2877 = vpack.c.b16 %v2829, %v2825
      %v2878 = vpack.c.b16 %v2830, %v2826
      %v2879 = vpack.c.b16 %v2831, %v2827
      %v2880 = vpack.c.b16 %v2832, %v2828
      %v2881 = vpack.c.b16 %v2837, %v2833
      %v2882 = vpack.c.b16 %v2838, %v2834
      %v2883 = vpack.c.b16 %v2839, %v2835
      %v2884 = vpack.c.b16 %v2840, %v2836
      %v2885 = vpack.c.b16 %v2845, %v2841
      %v2886 = vpack.c.b16 %v2846, %v2842
      %v2887 = vpack.c.b16 %v2847, %v2843
      %v2888 = vpack.c.b16 %v2848, %v2844
      %v2889 = vpack.c.b16 %v2853, %v2849
      %v2890 = vpack.c.b16 %v2854, %v2850
      %v2891 = vpack.c.b16 %v2855, %v2851
      %v2892 = vpack.c.b16 %v2856, %v2852
      %v2893 = vpack.c.b16 %v2861, %v2857
      %v2894 = vpack.c.b16 %v2862, %v2858
      %v2895 = vpack.c.b16 %v2863, %v2859
      %v2896 = vpack.c.b16 %v2864, %v2860
      %2929 = vmatprep.subr.bf16.mxu0 %v2866
      %2930 = vmatpush1.bf16.msra.mxu0 %v2865
      %2931 = vmatprep.subr.bf16.mxu0 %v2870
      %2932 = vmatpush1.bf16.msra.mxu0 %v2869
      %2933 = vmatprep.subr.bf16.mxu0 %v2874
      %2934 = vmatpush1.bf16.msra.mxu0 %v2873
      %2935 = vmatprep.subr.bf16.mxu0 %v2878
      %2936 = vmatpush1.bf16.msra.mxu0 %v2877
      %2937 = vmatprep.subr.bf16.mxu0 %v2882
      %2938 = vmatpush1.bf16.msra.mxu0 %v2881
      %2939 = vmatprep.subr.bf16.mxu0 %v2886
      %2940 = vmatpush1.bf16.msra.mxu0 %v2885
      %2941 = vmatprep.subr.bf16.mxu0 %v2890
      %2942 = vmatpush1.bf16.msra.mxu0 %v2889
      %2943 = vmatprep.subr.bf16.mxu0 %v2894
      %2944 = vmatpush1.bf16.msra.mxu0 %v2893
      %2945 = vmatprep.subr.bf16.mxu0 0
      %2946 = vmatpush1.bf16.msra.mxu0 0
      %2947 = vmatprep.subr.bf16.mxu0 0
      %2948 = vmatpush1.bf16.msra.mxu0 0
      %2949 = vmatprep.subr.bf16.mxu0 0
      %2950 = vmatpush1.bf16.msra.mxu0 0
      %2951 = vmatprep.subr.bf16.mxu0 0
      %2952 = vmatpush1.bf16.msra.mxu0 0
      %2953 = vmatprep.subr.bf16.mxu0 0
      %2954 = vmatpush1.bf16.msra.mxu0 0
      %2955 = vmatprep.subr.bf16.mxu0 0
      %2956 = vmatpush1.bf16.msra.mxu0 0
      %2957 = vmatprep.subr.bf16.mxu0 0
      %2958 = vmatpush1.bf16.msra.mxu0 0
      %2959 = vmatprep.subr.bf16.mxu0 0
      %2960 = vmatpush1.bf16.msra.mxu0 0
      %2961 = vmatprep.mubr.bf16.mxu0 0
      %2962 = vmatmul.mubr.bf16.gmra.mrb[0].mxu0 %v2736
      %v2963 = vpop.f32.mrb[0].mxu0
      %v2964 = vadd.f32 0.0, %v2963
      %v2965 = vpop.f32.mrb[0].mxu0
      %v2966 = vadd.f32 0.0, %v2965
      %v2967 = vpop.f32.mrb[0].mxu0
      %v2968 = vpop.f32.mrb[0].mxu0
      %2969 = vdwg.mxu0
      %2970 = vmatprep.subr.bf16.mxu0 %v2868
      %2971 = vmatpush1.bf16.msra.mxu0 %v2867
      %2972 = vmatprep.subr.bf16.mxu0 %v2872
      %2973 = vmatpush1.bf16.msra.mxu0 %v2871
      %2974 = vmatprep.subr.bf16.mxu0 %v2876
      %2975 = vmatpush1.bf16.msra.mxu0 %v2875
      %2976 = vmatprep.subr.bf16.mxu0 %v2880
      %2977 = vmatpush1.bf16.msra.mxu0 %v2879
      %2978 = vmatprep.subr.bf16.mxu0 %v2884
      %2979 = vmatpush1.bf16.msra.mxu0 %v2883
      %2980 = vmatprep.subr.bf16.mxu0 %v2888
      %2981 = vmatpush1.bf16.msra.mxu0 %v2887
      %2982 = vmatprep.subr.bf16.mxu0 %v2892
      %2983 = vmatpush1.bf16.msra.mxu0 %v2891
      %2984 = vmatprep.subr.bf16.mxu0 %v2896
      %2985 = vmatpush1.bf16.msra.mxu0 %v2895
      %2986 = vmatprep.subr.bf16.mxu0 0
      %2987 = vmatpush1.bf16.msra.mxu0 0
      %2988 = vmatprep.subr.bf16.mxu0 0
      %2989 = vmatpush1.bf16.msra.mxu0 0
      %2990 = vmatprep.subr.bf16.mxu0 0
      %2991 = vmatpush1.bf16.msra.mxu0 0
      %2992 = vmatprep.subr.bf16.mxu0 0
      %2993 = vmatpush1.bf16.msra.mxu0 0
      %2994 = vmatprep.subr.bf16.mxu0 0
      %2995 = vmatpush1.bf16.msra.mxu0 0
      %2996 = vmatprep.subr.bf16.mxu0 0
      %2997 = vmatpush1.bf16.msra.mxu0 0
      %2998 = vmatprep.subr.bf16.mxu0 0
      %2999 = vmatpush1.bf16.msra.mxu0 0
      %3000 = vmatprep.subr.bf16.mxu0 0
      %3001 = vmatpush1.bf16.msra.mxu0 0
      %3002 = vmatprep.mubr.bf16.mxu0 0
      %3003 = vmatmul.mubr.bf16.gmra.mrb[0].mxu0 %v2736
      %v3004 = vpop.f32.mrb[0].mxu0
      %v3005 = vadd.f32 0.0, %v3004
      %v3006 = vpop.f32.mrb[0].mxu0
      %v3007 = vadd.f32 0.0, %v3006
      %v3008 = vpop.f32.mrb[0].mxu0
      %v3009 = vpop.f32.mrb[0].mxu0
      %3010 = vdwg.mxu0
      %v3011 = vadd.f32 %v2732, %v2964
      %v3012 = vadd.f32 %v2733, %v2966
      %v3013 = vadd.f32 %v2734, %v3005
      %v3014 = vadd.f32 %v2735, %v3007
      %v3015 = vsub.f32 0.0, %v3011
      %v3016 = vmul.f32 %v3015, 1.442695
      %v3017 = vpow.pop %v3016
      %v3018 = vadd.f32 %v3017, 1.0
      %v3019 = vrcp.pop %v3018
      %v3020 = vsub.f32 0.0, %v3012
      %v3021 = vmul.f32 %v3020, 1.442695
      %v3022 = vpow.pop %v3021
      %v3023 = vadd.f32 %v3022, 1.0
      %v3024 = vrcp.pop %v3023
      %v3025 = vtanh.pop %v3013
      %v3026 = vsub.f32 0.0, %v3014
      %v3027 = vmul.f32 %v3026, 1.442695
      %v3028 = vpow.pop %v3027
      %v3029 = vadd.f32 %v3028, 1.0
      %v3030 = vrcp.pop %v3029
      %v3031 = vmul.f32 %v3024, %v2730
      %v3032 = vmul.f32 %v3019, %v3025
      %v3033 = vadd.f32 %v3031, %v3032
      %v3034 = vtanh.pop %v3033
      %v3035 = vmul.f32 %v3030, %v3034
      %p3036 = scmp.lt.s32.totalorder %s2728, 68
      %s3037 = scalar_select %p3036, 1, 0
      %v3038 = vstv %s3037
      %vm3039 = vcmp.eq.s32.totalorder %v3038, 1
      %v3040 = vsel %vm3039, %v3033, %v2730
      %v3041 = vsel %vm3039, %v3035, %v2729
      %3042 = vmax.xlane.f32.xlu0 %v3035
      %v3043 = vpop.xlane.xlu0 %3042
      %v3044 = vstv %s2728
      %vm3045 = vcmp.eq.s32.totalorder %v2727, %v3044
      %vm3046 = vmand %vm3045, %vm3039
      %v3047 = vsel %vm3046, %v3043, %v2731
      %s3048 = sadd.s32 %s2728, 1
      %v3049 = vld [vmem:[#allocation2 + $0x20] sm:$0xff]
      %v3050 = vld [vmem:[#allocation2 + $0x28] sm:$0xff]
      %v3051 = vld [vmem:[#allocation2 + $0x30] sm:$0xff]
      %v3052 = vld [vmem:[#allocation2 + $0x38] sm:$0xff]
      %v3053 = vpack.c.bf16 %v3041, %v3041
      %3054 = vmatprep.subr.bf16.mxu0 %v2866
      %3055 = vmatpush1.bf16.msra.mxu0 %v2865
      %3056 = vmatprep.subr.bf16.mxu0 %v2870
      %3057 = vmatpush1.bf16.msra.mxu0 %v2869
      %3058 = vmatprep.subr.bf16.mxu0 %v2874
      %3059 = vmatpush1.bf16.msra.mxu0 %v2873
      %3060 = vmatprep.subr.bf16.mxu0 %v2878
      %3061 = vmatpush1.bf16.msra.mxu0 %v2877
      %3062 = vmatprep.subr.bf16.mxu0 %v2882
      %3063 = vmatpush1.bf16.msra.mxu0 %v2881
      %3064 = vmatprep.subr.bf16.mxu0 %v2886
      %3065 = vmatpush1.bf16.msra.mxu0 %v2885
      %3066 = vmatprep.subr.bf16.mxu0 %v2890
      %3067 = vmatpush1.bf16.msra.mxu0 %v2889
      %3068 = vmatprep.subr.bf16.mxu0 %v2894
      %3069 = vmatpush1.bf16.msra.mxu0 %v2893
      %3070 = vmatprep.subr.bf16.mxu0 0
      %3071 = vmatpush1.bf16.msra.mxu0 0
      %3072 = vmatprep.subr.bf16.mxu0 0
      %3073 = vmatpush1.bf16.msra.mxu0 0
      %3074 = vmatprep.subr.bf16.mxu0 0
      %3075 = vmatpush1.bf16.msra.mxu0 0
      %3076 = vmatprep.subr.bf16.mxu0 0
      %3077 = vmatpush1.bf16.msra.mxu0 0
      %3078 = vmatprep.subr.bf16.mxu0 0
      %3079 = vmatpush1.bf16.msra.mxu0 0
      %3080 = vmatprep.subr.bf16.mxu0 0
      %3081 = vmatpush1.bf16.msra.mxu0 0
      %3082 = vmatprep.subr.bf16.mxu0 0
      %3083 = vmatpush1.bf16.msra.mxu0 0
      %3084 = vmatprep.subr.bf16.mxu0 0
      %3085 = vmatpush1.bf16.msra.mxu0 0
      %3086 = vmatprep.mubr.bf16.mxu0 0
      %3087 = vmatmul.mubr.bf16.gmra.mrb[0].mxu0 %v3053
      %v3088 = vpop.f32.mrb[0].mxu0
      %v3089 = vadd.f32 0.0, %v3088
      %v3090 = vpop.f32.mrb[0].mxu0
      %v3091 = vadd.f32 0.0, %v3090
      %v3092 = vpop.f32.mrb[0].mxu0
      %v3093 = vpop.f32.mrb[0].mxu0
      %3094 = vdwg.mxu0
      %3095 = vmatprep.subr.bf16.mxu0 %v2868
      %3096 = vmatpush1.bf16.msra.mxu0 %v2867
      %3097 = vmatprep.subr.bf16.mxu0 %v2872
      %3098 = vmatpush1.bf16.msra.mxu0 %v2871
      %3099 = vmatprep.subr.bf16.mxu0 %v2876
      %3100 = vmatpush1.bf16.msra.mxu0 %v2875
      %3101 = vmatprep.subr.bf16.mxu0 %v2880
      %3102 = vmatpush1.bf16.msra.mxu0 %v2879
      %3103 = vmatprep.subr.bf16.mxu0 %v2884
      %3104 = vmatpush1.bf16.msra.mxu0 %v2883
      %3105 = vmatprep.subr.bf16.mxu0 %v2888
      %3106 = vmatpush1.bf16.msra.mxu0 %v2887
      %3107 = vmatprep.subr.bf16.mxu0 %v2892
      %3108 = vmatpush1.bf16.msra.mxu0 %v2891
      %3109 = vmatprep.subr.bf16.mxu0 %v2896
      %3110 = vmatpush1.bf16.msra.mxu0 %v2895
      %3111 = vmatprep.subr.bf16.mxu0 0
      %3112 = vmatpush1.bf16.msra.mxu0 0
      %3113 = vmatprep.subr.bf16.mxu0 0
      %3114 = vmatpush1.bf16.msra.mxu0 0
      %3115 = vmatprep.subr.bf16.mxu0 0
      %3116 = vmatpush1.bf16.msra.mxu0 0
      %3117 = vmatprep.subr.bf16.mxu0 0
      %3118 = vmatpush1.bf16.msra.mxu0 0
      %3119 = vmatprep.subr.bf16.mxu0 0
      %3120 = vmatpush1.bf16.msra.mxu0 0
      %3121 = vmatprep.subr.bf16.mxu0 0
      %3122 = vmatpush1.bf16.msra.mxu0 0
      %3123 = vmatprep.subr.bf16.mxu0 0
      %3124 = vmatpush1.bf16.msra.mxu0 0
      %3125 = vmatprep.subr.bf16.mxu0 0
      %3126 = vmatpush1.bf16.msra.mxu0 0
      %3127 = vmatprep.mubr.bf16.mxu0 0
      %3128 = vmatmul.mubr.bf16.gmra.mrb[0].mxu0 %v3053
      %v3129 = vpop.f32.mrb[0].mxu0
      %v3130 = vadd.f32 0.0, %v3129
      %v3131 = vpop.f32.mrb[0].mxu0
      %v3132 = vadd.f32 0.0, %v3131
      %v3133 = vpop.f32.mrb[0].mxu0
      %v3134 = vpop.f32.mrb[0].mxu0
      %3135 = vdwg.mxu0
      %v3136 = vadd.f32 %v3049, %v3089
      %v3137 = vadd.f32 %v3050, %v3091
      %v3138 = vadd.f32 %v3051, %v3130
      %v3139 = vadd.f32 %v3052, %v3132
      %v3140 = vsub.f32 0.0, %v3136
      %v3141 = vmul.f32 %v3140, 1.442695
      %v3142 = vpow.pop %v3141
      %v3143 = vadd.f32 %v3142, 1.0
      %v3144 = vrcp.pop %v3143
      %v3145 = vsub.f32 0.0, %v3137
      %v3146 = vmul.f32 %v3145, 1.442695
      %v3147 = vpow.pop %v3146
      %v3148 = vadd.f32 %v3147, 1.0
      %v3149 = vrcp.pop %v3148
      %v3150 = vtanh.pop %v3138
      %v3151 = vsub.f32 0.0, %v3139
      %v3152 = vmul.f32 %v3151, 1.442695
      %v3153 = vpow.pop %v3152
      %v3154 = vadd.f32 %v3153, 1.0
      %v3155 = vrcp.pop %v3154
      %v3156 = vmul.f32 %v3149, %v3040
      %v3157 = vmul.f32 %v3144, %v3150
      %v3158 = vadd.f32 %v3156, %v3157
      %v3159 = vtanh.pop %v3158
      %v3160 = vmul.f32 %v3155, %v3159
      %p3161 = scmp.lt.s32.totalorder %s3048, 68
      %s3162 = scalar_select %p3161, 1, 0
      %v3163 = vstv %s3162
      %vm3164 = vcmp.eq.s32.totalorder %v3163, 1
      %v3165 = vsel %vm3164, %v3158, %v3040
      %v3166 = vsel %vm3164, %v3160, %v3041
      %3167 = vmax.xlane.f32.xlu0 %v3160
      %v3168 = vpop.xlane.xlu0 %3167
      %v3169 = vstv %s3048
      %vm3170 = vcmp.eq.s32.totalorder %v2727, %v3169
      %vm3171 = vmand %vm3170, %vm3164
      %v3172 = vsel %vm3171, %v3168, %v3047
      %s3173 = sadd.s32 %s2728, 2
      %v3174 = vld [vmem:[#allocation2 + $0x40] sm:$0xff]
      %v3175 = vld [vmem:[#allocation2 + $0x48] sm:$0xff]
      %v3176 = vld [vmem:[#allocation2 + $0x50] sm:$0xff]
      %v3177 = vld [vmem:[#allocation2 + $0x58] sm:$0xff]
      %v3178 = vpack.c.bf16 %v3166, %v3166
      %3179 = vmatprep.subr.bf16.mxu0 %v2866
      %3180 = vmatpush1.bf16.msra.mxu0 %v2865
      %3181 = vmatprep.subr.bf16.mxu0 %v2870
      %3182 = vmatpush1.bf16.msra.mxu0 %v2869
      %3183 = vmatprep.subr.bf16.mxu0 %v2874
      %3184 = vmatpush1.bf16.msra.mxu0 %v2873
      %3185 = vmatprep.subr.bf16.mxu0 %v2878
      %3186 = vmatpush1.bf16.msra.mxu0 %v2877
      %3187 = vmatprep.subr.bf16.mxu0 %v2882
      %3188 = vmatpush1.bf16.msra.mxu0 %v2881
      %3189 = vmatprep.subr.bf16.mxu0 %v2886
      %3190 = vmatpush1.bf16.msra.mxu0 %v2885
      %3191 = vmatprep.subr.bf16.mxu0 %v2890
      %3192 = vmatpush1.bf16.msra.mxu0 %v2889
      %3193 = vmatprep.subr.bf16.mxu0 %v2894
      %3194 = vmatpush1.bf16.msra.mxu0 %v2893
      %3195 = vmatprep.subr.bf16.mxu0 0
      %3196 = vmatpush1.bf16.msra.mxu0 0
      %3197 = vmatprep.subr.bf16.mxu0 0
      %3198 = vmatpush1.bf16.msra.mxu0 0
      %3199 = vmatprep.subr.bf16.mxu0 0
      %3200 = vmatpush1.bf16.msra.mxu0 0
      %3201 = vmatprep.subr.bf16.mxu0 0
      %3202 = vmatpush1.bf16.msra.mxu0 0
      %3203 = vmatprep.subr.bf16.mxu0 0
      %3204 = vmatpush1.bf16.msra.mxu0 0
      %3205 = vmatprep.subr.bf16.mxu0 0
      %3206 = vmatpush1.bf16.msra.mxu0 0
      %3207 = vmatprep.subr.bf16.mxu0 0
      %3208 = vmatpush1.bf16.msra.mxu0 0
      %3209 = vmatprep.subr.bf16.mxu0 0
      %3210 = vmatpush1.bf16.msra.mxu0 0
      %3211 = vmatprep.mubr.bf16.mxu0 0
      %3212 = vmatmul.mubr.bf16.gmra.mrb[0].mxu0 %v3178
      %v3213 = vpop.f32.mrb[0].mxu0
      %v3214 = vadd.f32 0.0, %v3213
      %v3215 = vpop.f32.mrb[0].mxu0
      %v3216 = vadd.f32 0.0, %v3215
      %v3217 = vpop.f32.mrb[0].mxu0
      %v3218 = vpop.f32.mrb[0].mxu0
      %3219 = vdwg.mxu0
      %3220 = vmatprep.subr.bf16.mxu0 %v2868
      %3221 = vmatpush1.bf16.msra.mxu0 %v2867
      %3222 = vmatprep.subr.bf16.mxu0 %v2872
      %3223 = vmatpush1.bf16.msra.mxu0 %v2871
      %3224 = vmatprep.subr.bf16.mxu0 %v2876
      %3225 = vmatpush1.bf16.msra.mxu0 %v2875
      %3226 = vmatprep.subr.bf16.mxu0 %v2880
      %3227 = vmatpush1.bf16.msra.mxu0 %v2879
      %3228 = vmatprep.subr.bf16.mxu0 %v2884
      %3229 = vmatpush1.bf16.msra.mxu0 %v2883
      %3230 = vmatprep.subr.bf16.mxu0 %v2888
      %3231 = vmatpush1.bf16.msra.mxu0 %v2887
      %3232 = vmatprep.subr.bf16.mxu0 %v2892
      %3233 = vmatpush1.bf16.msra.mxu0 %v2891
      %3234 = vmatprep.subr.bf16.mxu0 %v2896
      %3235 = vmatpush1.bf16.msra.mxu0 %v2895
      %3236 = vmatprep.subr.bf16.mxu0 0
      %3237 = vmatpush1.bf16.msra.mxu0 0
      %3238 = vmatprep.subr.bf16.mxu0 0
      %3239 = vmatpush1.bf16.msra.mxu0 0
      %3240 = vmatprep.subr.bf16.mxu0 0
      %3241 = vmatpush1.bf16.msra.mxu0 0
      %3242 = vmatprep.subr.bf16.mxu0 0
      %3243 = vmatpush1.bf16.msra.mxu0 0
      %3244 = vmatprep.subr.bf16.mxu0 0
      %3245 = vmatpush1.bf16.msra.mxu0 0
      %3246 = vmatprep.subr.bf16.mxu0 0
      %3247 = vmatpush1.bf16.msra.mxu0 0
      %3248 = vmatprep.subr.bf16.mxu0 0
      %3249 = vmatpush1.bf16.msra.mxu0 0
      %3250 = vmatprep.subr.bf16.mxu0 0
      %3251 = vmatpush1.bf16.msra.mxu0 0
      %3252 = vmatprep.mubr.bf16.mxu0 0
      %3253 = vmatmul.mubr.bf16.gmra.mrb[0].mxu0 %v3178
      %v3254 = vpop.f32.mrb[0].mxu0
      %v3255 = vadd.f32 0.0, %v3254
      %v3256 = vpop.f32.mrb[0].mxu0
      %v3257 = vadd.f32 0.0, %v3256
      %v3258 = vpop.f32.mrb[0].mxu0
      %v3259 = vpop.f32.mrb[0].mxu0
      %3260 = vdwg.mxu0
      %v3261 = vadd.f32 %v3174, %v3214
      %v3262 = vadd.f32 %v3175, %v3216
      %v3263 = vadd.f32 %v3176, %v3255
      %v3264 = vadd.f32 %v3177, %v3257
      %v3265 = vsub.f32 0.0, %v3261
      %v3266 = vmul.f32 %v3265, 1.442695
      %v3267 = vpow.pop %v3266
      %v3268 = vadd.f32 %v3267, 1.0
      %v3269 = vrcp.pop %v3268
      %v3270 = vsub.f32 0.0, %v3262
      %v3271 = vmul.f32 %v3270, 1.442695
      %v3272 = vpow.pop %v3271
      %v3273 = vadd.f32 %v3272, 1.0
      %v3274 = vrcp.pop %v3273
      %v3275 = vtanh.pop %v3263
      %v3276 = vsub.f32 0.0, %v3264
      %v3277 = vmul.f32 %v3276, 1.442695
      %v3278 = vpow.pop %v3277
      %v3279 = vadd.f32 %v3278, 1.0
      %v3280 = vrcp.pop %v3279
      %v3281 = vmul.f32 %v3274, %v3165
      %v3282 = vmul.f32 %v3269, %v3275
      %v3283 = vadd.f32 %v3281, %v3282
      %v3284 = vtanh.pop %v3283
      %v3285 = vmul.f32 %v3280, %v3284
      %p3286 = scmp.lt.s32.totalorder %s3173, 68
      %s3287 = scalar_select %p3286, 1, 0
      %v3288 = vstv %s3287
      %vm3289 = vcmp.eq.s32.totalorder %v3288, 1
      %v3290 = vsel %vm3289, %v3283, %v3165
      %v3291 = vsel %vm3289, %v3285, %v3166
      %3292 = vmax.xlane.f32.xlu0 %v3285
      %v3293 = vpop.xlane.xlu0 %3292
      %v3294 = vstv %s3173
      %vm3295 = vcmp.eq.s32.totalorder %v2727, %v3294
      %vm3296 = vmand %vm3295, %vm3289
      %v3297 = vsel %vm3296, %v3293, %v3172
      %s3298 = sadd.s32 %s2728, 3
      %v3299 = vld [vmem:[#allocation2 + $0x60] sm:$0xff]
      %v3300 = vld [vmem:[#allocation2 + $0x68] sm:$0xff]
      %v3301 = vld [vmem:[#allocation2 + $0x70] sm:$0xff]
      %v3302 = vld [vmem:[#allocation2 + $0x78] sm:$0xff]
      %v3303 = vpack.c.bf16 %v3291, %v3291
      %3304 = vmatprep.subr.bf16.mxu0 %v2866
      %3305 = vmatpush1.bf16.msra.mxu0 %v2865
      %3306 = vmatprep.subr.bf16.mxu0 %v2870
      %3307 = vmatpush1.bf16.msra.mxu0 %v2869
      %3308 = vmatprep.subr.bf16.mxu0 %v2874
      %3309 = vmatpush1.bf16.msra.mxu0 %v2873
      %3310 = vmatprep.subr.bf16.mxu0 %v2878
      %3311 = vmatpush1.bf16.msra.mxu0 %v2877
      %3312 = vmatprep.subr.bf16.mxu0 %v2882
      %3313 = vmatpush1.bf16.msra.mxu0 %v2881
      %3314 = vmatprep.subr.bf16.mxu0 %v2886
      %3315 = vmatpush1.bf16.msra.mxu0 %v2885
      %3316 = vmatprep.subr.bf16.mxu0 %v2890
      %3317 = vmatpush1.bf16.msra.mxu0 %v2889
      %3318 = vmatprep.subr.bf16.mxu0 %v2894
      %3319 = vmatpush1.bf16.msra.mxu0 %v2893
      %3320 = vmatprep.subr.bf16.mxu0 0
      %3321 = vmatpush1.bf16.msra.mxu0 0
      %3322 = vmatprep.subr.bf16.mxu0 0
      %3323 = vmatpush1.bf16.msra.mxu0 0
      %3324 = vmatprep.subr.bf16.mxu0 0
      %3325 = vmatpush1.bf16.msra.mxu0 0
      %3326 = vmatprep.subr.bf16.mxu0 0
      %3327 = vmatpush1.bf16.msra.mxu0 0
      %3328 = vmatprep.subr.bf16.mxu0 0
      %3329 = vmatpush1.bf16.msra.mxu0 0
      %3330 = vmatprep.subr.bf16.mxu0 0
      %3331 = vmatpush1.bf16.msra.mxu0 0
      %3332 = vmatprep.subr.bf16.mxu0 0
      %3333 = vmatpush1.bf16.msra.mxu0 0
      %3334 = vmatprep.subr.bf16.mxu0 0
      %3335 = vmatpush1.bf16.msra.mxu0 0
      %3336 = vmatprep.mubr.bf16.mxu0 0
      %3337 = vmatmul.mubr.bf16.gmra.mrb[0].mxu0 %v3303
      %v3338 = vpop.f32.mrb[0].mxu0
      %v3339 = vadd.f32 0.0, %v3338
      %v3340 = vpop.f32.mrb[0].mxu0
      %v3341 = vadd.f32 0.0, %v3340
      %v3342 = vpop.f32.mrb[0].mxu0
      %v3343 = vpop.f32.mrb[0].mxu0
      %3344 = vdwg.mxu0
      %3345 = vmatprep.subr.bf16.mxu0 %v2868
      %3346 = vmatpush1.bf16.msra.mxu0 %v2867
      %3347 = vmatprep.subr.bf16.mxu0 %v2872
      %3348 = vmatpush1.bf16.msra.mxu0 %v2871
      %3349 = vmatprep.subr.bf16.mxu0 %v2876
      %3350 = vmatpush1.bf16.msra.mxu0 %v2875
      %3351 = vmatprep.subr.bf16.mxu0 %v2880
      %3352 = vmatpush1.bf16.msra.mxu0 %v2879
      %3353 = vmatprep.subr.bf16.mxu0 %v2884
      %3354 = vmatpush1.bf16.msra.mxu0 %v2883
      %3355 = vmatprep.subr.bf16.mxu0 %v2888
      %3356 = vmatpush1.bf16.msra.mxu0 %v2887
      %3357 = vmatprep.subr.bf16.mxu0 %v2892
      %3358 = vmatpush1.bf16.msra.mxu0 %v2891
      %3359 = vmatprep.subr.bf16.mxu0 %v2896
      %3360 = vmatpush1.bf16.msra.mxu0 %v2895
      %3361 = vmatprep.subr.bf16.mxu0 0
      %3362 = vmatpush1.bf16.msra.mxu0 0
      %3363 = vmatprep.subr.bf16.mxu0 0
      %3364 = vmatpush1.bf16.msra.mxu0 0
      %3365 = vmatprep.subr.bf16.mxu0 0
      %3366 = vmatpush1.bf16.msra.mxu0 0
      %3367 = vmatprep.subr.bf16.mxu0 0
      %3368 = vmatpush1.bf16.msra.mxu0 0
      %3369 = vmatprep.subr.bf16.mxu0 0
      %3370 = vmatpush1.bf16.msra.mxu0 0
      %3371 = vmatprep.subr.bf16.mxu0 0
      %3372 = vmatpush1.bf16.msra.mxu0 0
      %3373 = vmatprep.subr.bf16.mxu0 0
      %3374 = vmatpush1.bf16.msra.mxu0 0
      %3375 = vmatprep.subr.bf16.mxu0 0
      %3376 = vmatpush1.bf16.msra.mxu0 0
      %3377 = vmatprep.mubr.bf16.mxu0 0
      %3378 = vmatmul.mubr.bf16.gmra.mrb[0].mxu0 %v3303
      %v3379 = vpop.f32.mrb[0].mxu0
      %v3380 = vadd.f32 0.0, %v3379
      %v3381 = vpop.f32.mrb[0].mxu0
      %v3382 = vadd.f32 0.0, %v3381
      %v3383 = vpop.f32.mrb[0].mxu0
      %v3384 = vpop.f32.mrb[0].mxu0
      %3385 = vdwg.mxu0
      %v3386 = vadd.f32 %v3299, %v3339
      %v3387 = vadd.f32 %v3300, %v3341
      %v3388 = vadd.f32 %v3301, %v3380
      %v3389 = vadd.f32 %v3302, %v3382
      %v3390 = vsub.f32 0.0, %v3386
      %v3391 = vmul.f32 %v3390, 1.442695
      %v3392 = vpow.pop %v3391
      %v3393 = vadd.f32 %v3392, 1.0
      %v3394 = vrcp.pop %v3393
      %v3395 = vsub.f32 0.0, %v3387
      %v3396 = vmul.f32 %v3395, 1.442695
      %v3397 = vpow.pop %v3396
      %v3398 = vadd.f32 %v3397, 1.0
      %v3399 = vrcp.pop %v3398
      %v3400 = vtanh.pop %v3388
      %v3401 = vsub.f32 0.0, %v3389
      %v3402 = vmul.f32 %v3401, 1.442695
      %v3403 = vpow.pop %v3402
      %v3404 = vadd.f32 %v3403, 1.0
      %v3405 = vrcp.pop %v3404
      %v3406 = vmul.f32 %v3399, %v3290
      %v3407 = vmul.f32 %v3394, %v3400
      %v3408 = vadd.f32 %v3406, %v3407
      %v3409 = vtanh.pop %v3408
      %v3410 = vmul.f32 %v3405, %v3409
      %p3411 = scmp.lt.s32.totalorder %s3298, 68
      %s3412 = scalar_select %p3411, 1, 0
      %v3413 = vstv %s3412
      %vm3414 = vcmp.eq.s32.totalorder %v3413, 1
      %v3415 = vsel %vm3414, %v3408, %v3290
      %v3416 = vsel %vm3414, %v3410, %v3291
      %3417 = vmax.xlane.f32.xlu0 %v3410
      %v3418 = vpop.xlane.xlu0 %3417
      %v3419 = vstv %s3298
      %vm3420 = vcmp.eq.s32.totalorder %v2727, %v3419
      %vm3421 = vmand %vm3420, %vm3414
      %v3422 = vsel %vm3421, %v3418, %v3297
      %s3423 = sadd.s32 %s2728, 4
      %v3424 = vld [vmem:[#allocation2 + $0x80] sm:$0xff]
      %v3425 = vld [vmem:[#allocation2 + $0x88] sm:$0xff]
      %v3426 = vld [vmem:[#allocation2 + $0x90] sm:$0xff]
      %v3427 = vld [vmem:[#allocation2 + $0x98] sm:$0xff]
      %v3428 = vpack.c.bf16 %v3416, %v3416
      %3429 = vmatprep.subr.bf16.mxu0 %v2866
      %3430 = vmatpush1.bf16.msra.mxu0 %v2865
      %3431 = vmatprep.subr.bf16.mxu0 %v2870
      %3432 = vmatpush1.bf16.msra.mxu0 %v2869
      %3433 = vmatprep.subr.bf16.mxu0 %v2874
      %3434 = vmatpush1.bf16.msra.mxu0 %v2873
      %3435 = vmatprep.subr.bf16.mxu0 %v2878
      %3436 = vmatpush1.bf16.msra.mxu0 %v2877
      %3437 = vmatprep.subr.bf16.mxu0 %v2882
      %3438 = vmatpush1.bf16.msra.mxu0 %v2881
      %3439 = vmatprep.subr.bf16.mxu0 %v2886
      %3440 = vmatpush1.bf16.msra.mxu0 %v2885
      %3441 = vmatprep.subr.bf16.mxu0 %v2890
      %3442 = vmatpush1.bf16.msra.mxu0 %v2889
      %3443 = vmatprep.subr.bf16.mxu0 %v2894
      %3444 = vmatpush1.bf16.msra.mxu0 %v2893
      %3445 = vmatprep.subr.bf16.mxu0 0
      %3446 = vmatpush1.bf16.msra.mxu0 0
      %3447 = vmatprep.subr.bf16.mxu0 0
      %3448 = vmatpush1.bf16.msra.mxu0 0
      %3449 = vmatprep.subr.bf16.mxu0 0
      %3450 = vmatpush1.bf16.msra.mxu0 0
      %3451 = vmatprep.subr.bf16.mxu0 0
      %3452 = vmatpush1.bf16.msra.mxu0 0
      %3453 = vmatprep.subr.bf16.mxu0 0
      %3454 = vmatpush1.bf16.msra.mxu0 0
      %3455 = vmatprep.subr.bf16.mxu0 0
      %3456 = vmatpush1.bf16.msra.mxu0 0
      %3457 = vmatprep.subr.bf16.mxu0 0
      %3458 = vmatpush1.bf16.msra.mxu0 0
      %3459 = vmatprep.subr.bf16.mxu0 0
      %3460 = vmatpush1.bf16.msra.mxu0 0
      %3461 = vmatprep.mubr.bf16.mxu0 0
      %3462 = vmatmul.mubr.bf16.gmra.mrb[0].mxu0 %v3428
      %v3463 = vpop.f32.mrb[0].mxu0
      %v3464 = vadd.f32 0.0, %v3463
      %v3465 = vpop.f32.mrb[0].mxu0
      %v3466 = vadd.f32 0.0, %v3465
      %v3467 = vpop.f32.mrb[0].mxu0
      %v3468 = vpop.f32.mrb[0].mxu0
      %3469 = vdwg.mxu0
      %3470 = vmatprep.subr.bf16.mxu0 %v2868
      %3471 = vmatpush1.bf16.msra.mxu0 %v2867
      %3472 = vmatprep.subr.bf16.mxu0 %v2872
      %3473 = vmatpush1.bf16.msra.mxu0 %v2871
      %3474 = vmatprep.subr.bf16.mxu0 %v2876
      %3475 = vmatpush1.bf16.msra.mxu0 %v2875
      %3476 = vmatprep.subr.bf16.mxu0 %v2880
      %3477 = vmatpush1.bf16.msra.mxu0 %v2879
      %3478 = vmatprep.subr.bf16.mxu0 %v2884
      %3479 = vmatpush1.bf16.msra.mxu0 %v2883
      %3480 = vmatprep.subr.bf16.mxu0 %v2888
      %3481 = vmatpush1.bf16.msra.mxu0 %v2887
      %3482 = vmatprep.subr.bf16.mxu0 %v2892
      %3483 = vmatpush1.bf16.msra.mxu0 %v2891
      %3484 = vmatprep.subr.bf16.mxu0 %v2896
      %3485 = vmatpush1.bf16.msra.mxu0 %v2895
      %3486 = vmatprep.subr.bf16.mxu0 0
      %3487 = vmatpush1.bf16.msra.mxu0 0
      %3488 = vmatprep.subr.bf16.mxu0 0
      %3489 = vmatpush1.bf16.msra.mxu0 0
      %3490 = vmatprep.subr.bf16.mxu0 0
      %3491 = vmatpush1.bf16.msra.mxu0 0
      %3492 = vmatprep.subr.bf16.mxu0 0
      %3493 = vmatpush1.bf16.msra.mxu0 0
      %3494 = vmatprep.subr.bf16.mxu0 0
      %3495 = vmatpush1.bf16.msra.mxu0 0
      %3496 = vmatprep.subr.bf16.mxu0 0
      %3497 = vmatpush1.bf16.msra.mxu0 0
      %3498 = vmatprep.subr.bf16.mxu0 0
      %3499 = vmatpush1.bf16.msra.mxu0 0
      %3500 = vmatprep.subr.bf16.mxu0 0
      %3501 = vmatpush1.bf16.msra.mxu0 0
      %3502 = vmatprep.mubr.bf16.mxu0 0
      %3503 = vmatmul.mubr.bf16.gmra.mrb[0].mxu0 %v3428
      %v3504 = vpop.f32.mrb[0].mxu0
      %v3505 = vadd.f32 0.0, %v3504
      %v3506 = vpop.f32.mrb[0].mxu0
      %v3507 = vadd.f32 0.0, %v3506
      %v3508 = vpop.f32.mrb[0].mxu0
      %v3509 = vpop.f32.mrb[0].mxu0
      %3510 = vdwg.mxu0
      %v3511 = vadd.f32 %v3424, %v3464
      %v3512 = vadd.f32 %v3425, %v3466
      %v3513 = vadd.f32 %v3426, %v3505
      %v3514 = vadd.f32 %v3427, %v3507
      %v3515 = vsub.f32 0.0, %v3511
      %v3516 = vmul.f32 %v3515, 1.442695
      %v3517 = vpow.pop %v3516
      %v3518 = vadd.f32 %v3517, 1.0
      %v3519 = vrcp.pop %v3518
      %v3520 = vsub.f32 0.0, %v3512
      %v3521 = vmul.f32 %v3520, 1.442695
      %v3522 = vpow.pop %v3521
      %v3523 = vadd.f32 %v3522, 1.0
      %v3524 = vrcp.pop %v3523
      %v3525 = vtanh.pop %v3513
      %v3526 = vsub.f32 0.0, %v3514
      %v3527 = vmul.f32 %v3526, 1.442695
      %v3528 = vpow.pop %v3527
      %v3529 = vadd.f32 %v3528, 1.0
      %v3530 = vrcp.pop %v3529
      %v3531 = vmul.f32 %v3524, %v3415
      %v3532 = vmul.f32 %v3519, %v3525
      %v3533 = vadd.f32 %v3531, %v3532
      %v3534 = vtanh.pop %v3533
      %v3535 = vmul.f32 %v3530, %v3534
      %p3536 = scmp.lt.s32.totalorder %s3423, 68
      %s3537 = scalar_select %p3536, 1, 0
      %v3538 = vstv %s3537
      %vm3539 = vcmp.eq.s32.totalorder %v3538, 1
      %v3540 = vsel %vm3539, %v3533, %v3415
      %v3541 = vsel %vm3539, %v3535, %v3416
      %3542 = vmax.xlane.f32.xlu0 %v3535
      %v3543 = vpop.xlane.xlu0 %3542
      %v3544 = vstv %s3423
      %vm3545 = vcmp.eq.s32.totalorder %v2727, %v3544
      %vm3546 = vmand %vm3545, %vm3539
      %v3547 = vsel %vm3546, %v3543, %v3422
      %s3548 = sadd.s32 %s2728, 5
      %v3549 = vld [vmem:[#allocation2 + $0xa0] sm:$0xff]
      %v3550 = vld [vmem:[#allocation2 + $0xa8] sm:$0xff]
      %v3551 = vld [vmem:[#allocation2 + $0xb0] sm:$0xff]
      %v3552 = vld [vmem:[#allocation2 + $0xb8] sm:$0xff]
      %v3553 = vpack.c.bf16 %v3541, %v3541
      %3554 = vmatprep.subr.bf16.mxu0 %v2866
      %3555 = vmatpush1.bf16.msra.mxu0 %v2865
      %3556 = vmatprep.subr.bf16.mxu0 %v2870
      %3557 = vmatpush1.bf16.msra.mxu0 %v2869
      %3558 = vmatprep.subr.bf16.mxu0 %v2874
      %3559 = vmatpush1.bf16.msra.mxu0 %v2873
      %3560 = vmatprep.subr.bf16.mxu0 %v2878
      %3561 = vmatpush1.bf16.msra.mxu0 %v2877
      %3562 = vmatprep.subr.bf16.mxu0 %v2882
      %3563 = vmatpush1.bf16.msra.mxu0 %v2881
      %3564 = vmatprep.subr.bf16.mxu0 %v2886
      %3565 = vmatpush1.bf16.msra.mxu0 %v2885
      %3566 = vmatprep.subr.bf16.mxu0 %v2890
      %3567 = vmatpush1.bf16.msra.mxu0 %v2889
      %3568 = vmatprep.subr.bf16.mxu0 %v2894
      %3569 = vmatpush1.bf16.msra.mxu0 %v2893
      %3570 = vmatprep.subr.bf16.mxu0 0
      %3571 = vmatpush1.bf16.msra.mxu0 0
      %3572 = vmatprep.subr.bf16.mxu0 0
      %3573 = vmatpush1.bf16.msra.mxu0 0
      %3574 = vmatprep.subr.bf16.mxu0 0
      %3575 = vmatpush1.bf16.msra.mxu0 0
      %3576 = vmatprep.subr.bf16.mxu0 0
      %3577 = vmatpush1.bf16.msra.mxu0 0
      %3578 = vmatprep.subr.bf16.mxu0 0
      %3579 = vmatpush1.bf16.msra.mxu0 0
      %3580 = vmatprep.subr.bf16.mxu0 0
      %3581 = vmatpush1.bf16.msra.mxu0 0
      %3582 = vmatprep.subr.bf16.mxu0 0
      %3583 = vmatpush1.bf16.msra.mxu0 0
      %3584 = vmatprep.subr.bf16.mxu0 0
      %3585 = vmatpush1.bf16.msra.mxu0 0
      %3586 = vmatprep.mubr.bf16.mxu0 0
      %3587 = vmatmul.mubr.bf16.gmra.mrb[0].mxu0 %v3553
      %v3588 = vpop.f32.mrb[0].mxu0
      %v3589 = vadd.f32 0.0, %v3588
      %v3590 = vpop.f32.mrb[0].mxu0
      %v3591 = vadd.f32 0.0, %v3590
      %v3592 = vpop.f32.mrb[0].mxu0
      %v3593 = vpop.f32.mrb[0].mxu0
      %3594 = vdwg.mxu0
      %3595 = vmatprep.subr.bf16.mxu0 %v2868
      %3596 = vmatpush1.bf16.msra.mxu0 %v2867
      %3597 = vmatprep.subr.bf16.mxu0 %v2872
      %3598 = vmatpush1.bf16.msra.mxu0 %v2871
      %3599 = vmatprep.subr.bf16.mxu0 %v2876
      %3600 = vmatpush1.bf16.msra.mxu0 %v2875
      %3601 = vmatprep.subr.bf16.mxu0 %v2880
      %3602 = vmatpush1.bf16.msra.mxu0 %v2879
      %3603 = vmatprep.subr.bf16.mxu0 %v2884
      %3604 = vmatpush1.bf16.msra.mxu0 %v2883
      %3605 = vmatprep.subr.bf16.mxu0 %v2888
      %3606 = vmatpush1.bf16.msra.mxu0 %v2887
      %3607 = vmatprep.subr.bf16.mxu0 %v2892
      %3608 = vmatpush1.bf16.msra.mxu0 %v2891
      %3609 = vmatprep.subr.bf16.mxu0 %v2896
      %3610 = vmatpush1.bf16.msra.mxu0 %v2895
      %3611 = vmatprep.subr.bf16.mxu0 0
      %3612 = vmatpush1.bf16.msra.mxu0 0
      %3613 = vmatprep.subr.bf16.mxu0 0
      %3614 = vmatpush1.bf16.msra.mxu0 0
      %3615 = vmatprep.subr.bf16.mxu0 0
      %3616 = vmatpush1.bf16.msra.mxu0 0
      %3617 = vmatprep.subr.bf16.mxu0 0
      %3618 = vmatpush1.bf16.msra.mxu0 0
      %3619 = vmatprep.subr.bf16.mxu0 0
      %3620 = vmatpush1.bf16.msra.mxu0 0
      %3621 = vmatprep.subr.bf16.mxu0 0
      %3622 = vmatpush1.bf16.msra.mxu0 0
      %3623 = vmatprep.subr.bf16.mxu0 0
      %3624 = vmatpush1.bf16.msra.mxu0 0
      %3625 = vmatprep.subr.bf16.mxu0 0
      %3626 = vmatpush1.bf16.msra.mxu0 0
      %3627 = vmatprep.mubr.bf16.mxu0 0
      %3628 = vmatmul.mubr.bf16.gmra.mrb[0].mxu0 %v3553
      %v3629 = vpop.f32.mrb[0].mxu0
      %v3630 = vadd.f32 0.0, %v3629
      %v3631 = vpop.f32.mrb[0].mxu0
      %v3632 = vadd.f32 0.0, %v3631
      %v3633 = vpop.f32.mrb[0].mxu0
      %v3634 = vpop.f32.mrb[0].mxu0
      %3635 = vdwg.mxu0
      %v3636 = vadd.f32 %v3549, %v3589
      %v3637 = vadd.f32 %v3550, %v3591
      %v3638 = vadd.f32 %v3551, %v3630
      %v3639 = vadd.f32 %v3552, %v3632
      %v3640 = vsub.f32 0.0, %v3636
      %v3641 = vmul.f32 %v3640, 1.442695
      %v3642 = vpow.pop %v3641
      %v3643 = vadd.f32 %v3642, 1.0
      %v3644 = vrcp.pop %v3643
      %v3645 = vsub.f32 0.0, %v3637
      %v3646 = vmul.f32 %v3645, 1.442695
      %v3647 = vpow.pop %v3646
      %v3648 = vadd.f32 %v3647, 1.0
      %v3649 = vrcp.pop %v3648
      %v3650 = vtanh.pop %v3638
      %v3651 = vsub.f32 0.0, %v3639
      %v3652 = vmul.f32 %v3651, 1.442695
      %v3653 = vpow.pop %v3652
      %v3654 = vadd.f32 %v3653, 1.0
      %v3655 = vrcp.pop %v3654
      %v3656 = vmul.f32 %v3649, %v3540
      %v3657 = vmul.f32 %v3644, %v3650
      %v3658 = vadd.f32 %v3656, %v3657
      %v3659 = vtanh.pop %v3658
      %v3660 = vmul.f32 %v3655, %v3659
      %p3661 = scmp.lt.s32.totalorder %s3548, 68
      %s3662 = scalar_select %p3661, 1, 0
      %v3663 = vstv %s3662
      %vm3664 = vcmp.eq.s32.totalorder %v3663, 1
      %v3665 = vsel %vm3664, %v3658, %v3540
      %v3666 = vsel %vm3664, %v3660, %v3541
      %3667 = vmax.xlane.f32.xlu0 %v3660
      %v3668 = vpop.xlane.xlu0 %3667
      %v3669 = vstv %s3548
      %vm3670 = vcmp.eq.s32.totalorder %v2727, %v3669
      %vm3671 = vmand %vm3670, %vm3664
      %v3672 = vsel %vm3671, %v3668, %v3547
      %s3673 = sadd.s32 %s2728, 6
      %v3674 = vld [vmem:[#allocation2 + $0xc0] sm:$0xff]
      %v3675 = vld [vmem:[#allocation2 + $0xc8] sm:$0xff]
      %v3676 = vld [vmem:[#allocation2 + $0xd0] sm:$0xff]
      %v3677 = vld [vmem:[#allocation2 + $0xd8] sm:$0xff]
      %v3678 = vpack.c.bf16 %v3666, %v3666
      %3679 = vmatprep.subr.bf16.mxu0 %v2866
      %3680 = vmatpush1.bf16.msra.mxu0 %v2865
      %3681 = vmatprep.subr.bf16.mxu0 %v2870
      %3682 = vmatpush1.bf16.msra.mxu0 %v2869
      %3683 = vmatprep.subr.bf16.mxu0 %v2874
      %3684 = vmatpush1.bf16.msra.mxu0 %v2873
      %3685 = vmatprep.subr.bf16.mxu0 %v2878
      %3686 = vmatpush1.bf16.msra.mxu0 %v2877
      %3687 = vmatprep.subr.bf16.mxu0 %v2882
      %3688 = vmatpush1.bf16.msra.mxu0 %v2881
      %3689 = vmatprep.subr.bf16.mxu0 %v2886
      %3690 = vmatpush1.bf16.msra.mxu0 %v2885
      %3691 = vmatprep.subr.bf16.mxu0 %v2890
      %3692 = vmatpush1.bf16.msra.mxu0 %v2889
      %3693 = vmatprep.subr.bf16.mxu0 %v2894
      %3694 = vmatpush1.bf16.msra.mxu0 %v2893
      %3695 = vmatprep.subr.bf16.mxu0 0
      %3696 = vmatpush1.bf16.msra.mxu0 0
      %3697 = vmatprep.subr.bf16.mxu0 0
      %3698 = vmatpush1.bf16.msra.mxu0 0
      %3699 = vmatprep.subr.bf16.mxu0 0
      %3700 = vmatpush1.bf16.msra.mxu0 0
      %3701 = vmatprep.subr.bf16.mxu0 0
      %3702 = vmatpush1.bf16.msra.mxu0 0
      %3703 = vmatprep.subr.bf16.mxu0 0
      %3704 = vmatpush1.bf16.msra.mxu0 0
      %3705 = vmatprep.subr.bf16.mxu0 0
      %3706 = vmatpush1.bf16.msra.mxu0 0
      %3707 = vmatprep.subr.bf16.mxu0 0
      %3708 = vmatpush1.bf16.msra.mxu0 0
      %3709 = vmatprep.subr.bf16.mxu0 0
      %3710 = vmatpush1.bf16.msra.mxu0 0
      %3711 = vmatprep.mubr.bf16.mxu0 0
      %3712 = vmatmul.mubr.bf16.gmra.mrb[0].mxu0 %v3678
      %v3713 = vpop.f32.mrb[0].mxu0
      %v3714 = vadd.f32 0.0, %v3713
      %v3715 = vpop.f32.mrb[0].mxu0
      %v3716 = vadd.f32 0.0, %v3715
      %v3717 = vpop.f32.mrb[0].mxu0
      %v3718 = vpop.f32.mrb[0].mxu0
      %3719 = vdwg.mxu0
      %3720 = vmatprep.subr.bf16.mxu0 %v2868
      %3721 = vmatpush1.bf16.msra.mxu0 %v2867
      %3722 = vmatprep.subr.bf16.mxu0 %v2872
      %3723 = vmatpush1.bf16.msra.mxu0 %v2871
      %3724 = vmatprep.subr.bf16.mxu0 %v2876
      %3725 = vmatpush1.bf16.msra.mxu0 %v2875
      %3726 = vmatprep.subr.bf16.mxu0 %v2880
      %3727 = vmatpush1.bf16.msra.mxu0 %v2879
      %3728 = vmatprep.subr.bf16.mxu0 %v2884
      %3729 = vmatpush1.bf16.msra.mxu0 %v2883
      %3730 = vmatprep.subr.bf16.mxu0 %v2888
      %3731 = vmatpush1.bf16.msra.mxu0 %v2887
      %3732 = vmatprep.subr.bf16.mxu0 %v2892
      %3733 = vmatpush1.bf16.msra.mxu0 %v2891
      %3734 = vmatprep.subr.bf16.mxu0 %v2896
      %3735 = vmatpush1.bf16.msra.mxu0 %v2895
      %3736 = vmatprep.subr.bf16.mxu0 0
      %3737 = vmatpush1.bf16.msra.mxu0 0
      %3738 = vmatprep.subr.bf16.mxu0 0
      %3739 = vmatpush1.bf16.msra.mxu0 0
      %3740 = vmatprep.subr.bf16.mxu0 0
      %3741 = vmatpush1.bf16.msra.mxu0 0
      %3742 = vmatprep.subr.bf16.mxu0 0
      %3743 = vmatpush1.bf16.msra.mxu0 0
      %3744 = vmatprep.subr.bf16.mxu0 0
      %3745 = vmatpush1.bf16.msra.mxu0 0
      %3746 = vmatprep.subr.bf16.mxu0 0
      %3747 = vmatpush1.bf16.msra.mxu0 0
      %3748 = vmatprep.subr.bf16.mxu0 0
      %3749 = vmatpush1.bf16.msra.mxu0 0
      %3750 = vmatprep.subr.bf16.mxu0 0
      %3751 = vmatpush1.bf16.msra.mxu0 0
      %3752 = vmatprep.mubr.bf16.mxu0 0
      %3753 = vmatmul.mubr.bf16.gmra.mrb[0].mxu0 %v3678
      %v3754 = vpop.f32.mrb[0].mxu0
      %v3755 = vadd.f32 0.0, %v3754
      %v3756 = vpop.f32.mrb[0].mxu0
      %v3757 = vadd.f32 0.0, %v3756
      %v3758 = vpop.f32.mrb[0].mxu0
      %v3759 = vpop.f32.mrb[0].mxu0
      %3760 = vdwg.mxu0
      %v3761 = vadd.f32 %v3674, %v3714
      %v3762 = vadd.f32 %v3675, %v3716
      %v3763 = vadd.f32 %v3676, %v3755
      %v3764 = vadd.f32 %v3677, %v3757
      %v3765 = vsub.f32 0.0, %v3761
      %v3766 = vmul.f32 %v3765, 1.442695
      %v3767 = vpow.pop %v3766
      %v3768 = vadd.f32 %v3767, 1.0
      %v3769 = vrcp.pop %v3768
      %v3770 = vsub.f32 0.0, %v3762
      %v3771 = vmul.f32 %v3770, 1.442695
      %v3772 = vpow.pop %v3771
      %v3773 = vadd.f32 %v3772, 1.0
      %v3774 = vrcp.pop %v3773
      %v3775 = vtanh.pop %v3763
      %v3776 = vsub.f32 0.0, %v3764
      %v3777 = vmul.f32 %v3776, 1.442695
      %v3778 = vpow.pop %v3777
      %v3779 = vadd.f32 %v3778, 1.0
      %v3780 = vrcp.pop %v3779
      %v3781 = vmul.f32 %v3774, %v3665
      %v3782 = vmul.f32 %v3769, %v3775
      %v3783 = vadd.f32 %v3781, %v3782
      %v3784 = vtanh.pop %v3783
      %v3785 = vmul.f32 %v3780, %v3784
      %p3786 = scmp.lt.s32.totalorder %s3673, 68
      %s3787 = scalar_select %p3786, 1, 0
      %v3788 = vstv %s3787
      %vm3789 = vcmp.eq.s32.totalorder %v3788, 1
      %v3790 = vsel %vm3789, %v3783, %v3665
      %v3791 = vsel %vm3789, %v3785, %v3666
      %3792 = vmax.xlane.f32.xlu0 %v3785
      %v3793 = vpop.xlane.xlu0 %3792
      %v3794 = vstv %s3673
      %vm3795 = vcmp.eq.s32.totalorder %v2727, %v3794
      %vm3796 = vmand %vm3795, %vm3789
      %v3797 = vsel %vm3796, %v3793, %v3672
      %s3798 = sadd.s32 %s2728, 7
      %v3799 = vld [vmem:[#allocation2 + $0xe0] sm:$0xff]
      %v3800 = vld [vmem:[#allocation2 + $0xe8] sm:$0xff]
      %v3801 = vld [vmem:[#allocation2 + $0xf0] sm:$0xff]
      %v3802 = vld [vmem:[#allocation2 + $0xf8] sm:$0xff]
      %v3803 = vpack.c.bf16 %v3791, %v3791
      %3804 = vmatprep.subr.bf16.mxu0 %v2866
      %3805 = vmatpush1.bf16.msra.mxu0 %v2865
      %3806 = vmatprep.subr.bf16.mxu0 %v2870
      %3807 = vmatpush1.bf16.msra.mxu0 %v2869
      %3808 = vmatprep.subr.bf16.mxu0 %v2874
      %3809 = vmatpush1.bf16.msra.mxu0 %v2873
      %3810 = vmatprep.subr.bf16.mxu0 %v2878
      %3811 = vmatpush1.bf16.msra.mxu0 %v2877
      %3812 = vmatprep.subr.bf16.mxu0 %v2882
      %3813 = vmatpush1.bf16.msra.mxu0 %v2881
      %3814 = vmatprep.subr.bf16.mxu0 %v2886
      %3815 = vmatpush1.bf16.msra.mxu0 %v2885
      %3816 = vmatprep.subr.bf16.mxu0 %v2890
      %3817 = vmatpush1.bf16.msra.mxu0 %v2889
      %3818 = vmatprep.subr.bf16.mxu0 %v2894
      %3819 = vmatpush1.bf16.msra.mxu0 %v2893
      %3820 = vmatprep.subr.bf16.mxu0 0
      %3821 = vmatpush1.bf16.msra.mxu0 0
      %3822 = vmatprep.subr.bf16.mxu0 0
      %3823 = vmatpush1.bf16.msra.mxu0 0
      %3824 = vmatprep.subr.bf16.mxu0 0
      %3825 = vmatpush1.bf16.msra.mxu0 0
      %3826 = vmatprep.subr.bf16.mxu0 0
      %3827 = vmatpush1.bf16.msra.mxu0 0
      %3828 = vmatprep.subr.bf16.mxu0 0
      %3829 = vmatpush1.bf16.msra.mxu0 0
      %3830 = vmatprep.subr.bf16.mxu0 0
      %3831 = vmatpush1.bf16.msra.mxu0 0
      %3832 = vmatprep.subr.bf16.mxu0 0
      %3833 = vmatpush1.bf16.msra.mxu0 0
      %3834 = vmatprep.subr.bf16.mxu0 0
      %3835 = vmatpush1.bf16.msra.mxu0 0
      %3836 = vmatprep.mubr.bf16.mxu0 0
      %3837 = vmatmul.mubr.bf16.gmra.mrb[0].mxu0 %v3803
      %v3838 = vpop.f32.mrb[0].mxu0
      %v3839 = vadd.f32 0.0, %v3838
      %v3840 = vpop.f32.mrb[0].mxu0
      %v3841 = vadd.f32 0.0, %v3840
      %v3842 = vpop.f32.mrb[0].mxu0
      %v3843 = vpop.f32.mrb[0].mxu0
      %3844 = vdwg.mxu0
      %3845 = vmatprep.subr.bf16.mxu0 %v2868
      %3846 = vmatpush1.bf16.msra.mxu0 %v2867
      %3847 = vmatprep.subr.bf16.mxu0 %v2872
      %3848 = vmatpush1.bf16.msra.mxu0 %v2871
      %3849 = vmatprep.subr.bf16.mxu0 %v2876
      %3850 = vmatpush1.bf16.msra.mxu0 %v2875
      %3851 = vmatprep.subr.bf16.mxu0 %v2880
      %3852 = vmatpush1.bf16.msra.mxu0 %v2879
      %3853 = vmatprep.subr.bf16.mxu0 %v2884
      %3854 = vmatpush1.bf16.msra.mxu0 %v2883
      %3855 = vmatprep.subr.bf16.mxu0 %v2888
      %3856 = vmatpush1.bf16.msra.mxu0 %v2887
      %3857 = vmatprep.subr.bf16.mxu0 %v2892
      %3858 = vmatpush1.bf16.msra.mxu0 %v2891
      %3859 = vmatprep.subr.bf16.mxu0 %v2896
      %3860 = vmatpush1.bf16.msra.mxu0 %v2895
      %3861 = vmatprep.subr.bf16.mxu0 0
      %3862 = vmatpush1.bf16.msra.mxu0 0
      %3863 = vmatprep.subr.bf16.mxu0 0
      %3864 = vmatpush1.bf16.msra.mxu0 0
      %3865 = vmatprep.subr.bf16.mxu0 0
      %3866 = vmatpush1.bf16.msra.mxu0 0
      %3867 = vmatprep.subr.bf16.mxu0 0
      %3868 = vmatpush1.bf16.msra.mxu0 0
      %3869 = vmatprep.subr.bf16.mxu0 0
      %3870 = vmatpush1.bf16.msra.mxu0 0
      %3871 = vmatprep.subr.bf16.mxu0 0
      %3872 = vmatpush1.bf16.msra.mxu0 0
      %3873 = vmatprep.subr.bf16.mxu0 0
      %3874 = vmatpush1.bf16.msra.mxu0 0
      %3875 = vmatprep.subr.bf16.mxu0 0
      %3876 = vmatpush1.bf16.msra.mxu0 0
      %3877 = vmatprep.mubr.bf16.mxu0 0
      %3878 = vmatmul.mubr.bf16.gmra.mrb[0].mxu0 %v3803
      %v3879 = vpop.f32.mrb[0].mxu0
      %v3880 = vadd.f32 0.0, %v3879
      %v3881 = vpop.f32.mrb[0].mxu0
      %v3882 = vadd.f32 0.0, %v3881
      %v3883 = vpop.f32.mrb[0].mxu0
      %v3884 = vpop.f32.mrb[0].mxu0
      %3885 = vdwg.mxu0
      %v3886 = vadd.f32 %v3799, %v3839
      %v3887 = vadd.f32 %v3800, %v3841
      %v3888 = vadd.f32 %v3801, %v3880
      %v3889 = vadd.f32 %v3802, %v3882
      %v3890 = vsub.f32 0.0, %v3886
      %v3891 = vmul.f32 %v3890, 1.442695
      %v3892 = vpow.pop %v3891
      %v3893 = vadd.f32 %v3892, 1.0
      %v3894 = vrcp.pop %v3893
      %v3895 = vsub.f32 0.0, %v3887
      %v3896 = vmul.f32 %v3895, 1.442695
      %v3897 = vpow.pop %v3896
      %v3898 = vadd.f32 %v3897, 1.0
      %v3899 = vrcp.pop %v3898
      %v3900 = vtanh.pop %v3888
      %v3901 = vsub.f32 0.0, %v3889
      %v3902 = vmul.f32 %v3901, 1.442695
      %v3903 = vpow.pop %v3902
      %v3904 = vadd.f32 %v3903, 1.0
      %v3905 = vrcp.pop %v3904
      %v3906 = vmul.f32 %v3899, %v3790
      %v3907 = vmul.f32 %v3894, %v3900
      %v3908 = vadd.f32 %v3906, %v3907
      %v3909 = vtanh.pop %v3908
      %v3910 = vmul.f32 %v3905, %v3909
      %p3911 = scmp.lt.s32.totalorder %s3798, 68
      %s3912 = scalar_select %p3911, 1, 0
      %v3913 = vstv %s3912
      %vm3914 = vcmp.eq.s32.totalorder %v3913, 1
      %v3915 = vsel %vm3914, %v3908, %v3790
      %v3916 = vsel %vm3914, %v3910, %v3791
      %3917 = vmax.xlane.f32.xlu0 %v3910
      %v3918 = vpop.xlane.xlu0 %3917
      %v3919 = vstv %s3798
      %vm3920 = vcmp.eq.s32.totalorder %v2727, %v3919
      %vm3921 = vmand %vm3920, %vm3914
      %v3922 = vsel %vm3921, %v3918, %v3797
      %3923 = vst [vmem:[#allocation3] sm:$0xff] %v3916
      %3924 = vst [vmem:[#allocation4] sm:$0xff] %v3915
      %3925 = vst [vmem:[#allocation5] sm:$0xff] %v3922
      %p3926 = scmp.eq.s32.totalorder %s23, 8
      // Predicated region
      $region65: #{embedded_vector_classifier_forward.1} parent=59 // pred_check
        %p3927 = pneg %p3926
      $region66: #{embedded_vector_classifier_forward.1} parent=59 // pred_check_branch
        %3929 = sbr.rel (%p3927) target = $region68
      $region67: #{embedded_vector_classifier_forward.1} parent=59 // pred_region
        %v3930 = vld [vmem:[%s4] sm:$0xff]
        %v3931 = vld [vmem:[%s4 + $0x8] sm:$0xff]
        %v3932 = vld [vmem:[%s4 + $0x10] sm:$0xff]
        %v3933 = vld [vmem:[%s4 + $0x18] sm:$0xff]
        %v3934 = vld [vmem:[%s4 + $0x20] sm:$0xff]
        %v3935 = vld [vmem:[%s4 + $0x28] sm:$0xff]
        %v3936 = vld [vmem:[%s4 + $0x30] sm:$0xff]
        %v3937 = vld [vmem:[%s4 + $0x38] sm:$0xff]
        %v3938 = vld [vmem:[%s4 + $0x40] sm:$0xff]
        %v3939 = vld [vmem:[%s4 + $0x48] sm:$0xff]
        %v3940 = vld [vmem:[%s4 + $0x50] sm:$0xff]
        %v3941 = vld [vmem:[%s4 + $0x58] sm:$0xff]
        %v3942 = vld [vmem:[%s4 + $0x60] sm:$0xff]
        %v3943 = vld [vmem:[%s4 + $0x68] sm:$0xff]
        %v3944 = vld [vmem:[%s4 + $0x70] sm:$0xff]
        %v3945 = vld [vmem:[%s4 + $0x78] sm:$0xff]
        %v3946 = vld [vmem:[%s5] sm:$0x1]
        %v3948 = vlaneseq
        %v3949 = vshrl.u32 %v3948, 7
        %v3950 = vsub.s32 0, %v3949
        %v3951 = vrot.slane %v3946, %v3950
        %3953 = vmatprep.subr.mxu0 0.0
        %3954 = vmatpush1.msra.mxu0 %v3930
        %3955 = vmatprep.subr.mxu0 0.0
        %3956 = vmatpush1.msra.mxu0 %v3931
        %3957 = vmatprep.subr.mxu0 0.0
        %3958 = vmatpush1.msra.mxu0 %v3932
        %3959 = vmatprep.subr.mxu0 0.0
        %3960 = vmatpush1.msra.mxu0 %v3933
        %3961 = vmatprep.subr.mxu0 0.0
        %3962 = vmatpush1.msra.mxu0 %v3934
        %3963 = vmatprep.subr.mxu0 0.0
        %3964 = vmatpush1.msra.mxu0 %v3935
        %3965 = vmatprep.subr.mxu0 0.0
        %3966 = vmatpush1.msra.mxu0 %v3936
        %3967 = vmatprep.subr.mxu0 0.0
        %3968 = vmatpush1.msra.mxu0 %v3937
        %3969 = vmatprep.subr.mxu0 0.0
        %3970 = vmatpush1.msra.mxu0 %v3938
        %3971 = vmatprep.subr.mxu0 0.0
        %3972 = vmatpush1.msra.mxu0 %v3939
        %3973 = vmatprep.subr.mxu0 0.0
        %3974 = vmatpush1.msra.mxu0 %v3940
        %3975 = vmatprep.subr.mxu0 0.0
        %3976 = vmatpush1.msra.mxu0 %v3941
        %3977 = vmatprep.subr.mxu0 0.0
        %3978 = vmatpush1.msra.mxu0 %v3942
        %3979 = vmatprep.subr.mxu0 0.0
        %3980 = vmatpush1.msra.mxu0 %v3943
        %3981 = vmatprep.subr.mxu0 0.0
        %3982 = vmatpush1.msra.mxu0 %v3944
        %3983 = vmatprep.subr.mxu0 0.0
        %3984 = vmatpush1.msra.mxu0 %v3945
        %3985 = vmatprep.subr.mxu0 0.0
        %3986 = vmatpush1.msra.mxu0 0.0
        %3987 = vmatprep.subr.mxu0 0.0
        %3988 = vmatpush1.msra.mxu0 0.0
        %3989 = vmatprep.subr.mxu0 0.0
        %3990 = vmatpush1.msra.mxu0 0.0
        %3991 = vmatprep.subr.mxu0 0.0
        %3992 = vmatpush1.msra.mxu0 0.0
        %3993 = vmatprep.subr.mxu0 0.0
        %3994 = vmatpush1.msra.mxu0 0.0
        %3995 = vmatprep.subr.mxu0 0.0
        %3996 = vmatpush1.msra.mxu0 0.0
        %3997 = vmatprep.subr.mxu0 0.0
        %3998 = vmatpush1.msra.mxu0 0.0
        %3999 = vmatprep.subr.mxu0 0.0
        %4000 = vmatpush1.msra.mxu0 0.0
        %4001 = vmatprep.subr.mxu0 0.0
        %4002 = vmatpush1.msra.mxu0 0.0
        %4003 = vmatprep.subr.mxu0 0.0
        %4004 = vmatpush1.msra.mxu0 0.0
        %4005 = vmatprep.subr.mxu0 0.0
        %4006 = vmatpush1.msra.mxu0 0.0
        %4007 = vmatprep.subr.mxu0 0.0
        %4008 = vmatpush1.msra.mxu0 0.0
        %4009 = vmatprep.subr.mxu0 0.0
        %4010 = vmatpush1.msra.mxu0 0.0
        %4011 = vmatprep.subr.mxu0 0.0
        %4012 = vmatpush1.msra.mxu0 0.0
        %4013 = vmatprep.subr.mxu0 0.0
        %4014 = vmatpush1.msra.mxu0 0.0
        %4015 = vmatprep.subr.mxu0 0.0
        %4016 = vmatpush1.msra.mxu0 0.0
        %4017 = vmatprep.mubr.f32.mxu0 0.0
        %4018 = vmatmul.mubr.f32.gmra.mrb[0].mxu0 %v3922
        %v4019 = vpop.f32.mrb[0].mxu0
        %v4020 = vadd.f32 %v3951, %v4019
        %v4021 = vpop.f32.mrb[0].mxu0
        %4022 = vdwg.mxu0
        %v4023 = vmax.f32 %v4020, 0.0
        %v4024 = vld [vmem:[%s6] sm:$0xff]
        %v4025 = vld [vmem:[%s6 + $0x8] sm:$0xff]
        %v4026 = vld [vmem:[%s6 + $0x10] sm:$0xff]
        %v4027 = vld [vmem:[%s6 + $0x18] sm:$0xff]
        %v4028 = vld [vmem:[%s6 + $0x20] sm:$0xff]
        %v4029 = vld [vmem:[%s6 + $0x28] sm:$0xff]
        %v4030 = vld [vmem:[%s6 + $0x30] sm:$0xff]
        %v4031 = vld [vmem:[%s6 + $0x38] sm:$0xff]
        %v4032 = vld [vmem:[%s6 + $0x40] sm:$0xff]
        %v4033 = vld [vmem:[%s6 + $0x48] sm:$0xff]
        %v4034 = vld [vmem:[%s6 + $0x50] sm:$0xff]
        %v4035 = vld [vmem:[%s6 + $0x58] sm:$0xff]
        %v4036 = vld [vmem:[%s6 + $0x60] sm:$0xff]
        %v4037 = vld [vmem:[%s6 + $0x68] sm:$0xff]
        %v4038 = vld [vmem:[%s6 + $0x70] sm:$0xff]
        %v4039 = vld [vmem:[%s6 + $0x78] sm:$0xff]
        %v4040 = vld [vmem:[%s7] sm:$0x1]
        %v4042 = vlaneseq
        %v4043 = vshrl.u32 %v4042, 7
        %v4044 = vsub.s32 0, %v4043
        %v4045 = vrot.slane %v4040, %v4044
        %4047 = vmatprep.subr.mxu0 0.0
        %4048 = vmatpush1.msra.mxu0 %v4024
        %4049 = vmatprep.subr.mxu0 0.0
        %4050 = vmatpush1.msra.mxu0 %v4025
        %4051 = vmatprep.subr.mxu0 0.0
        %4052 = vmatpush1.msra.mxu0 %v4026
        %4053 = vmatprep.subr.mxu0 0.0
        %4054 = vmatpush1.msra.mxu0 %v4027
        %4055 = vmatprep.subr.mxu0 0.0
        %4056 = vmatpush1.msra.mxu0 %v4028
        %4057 = vmatprep.subr.mxu0 0.0
        %4058 = vmatpush1.msra.mxu0 %v4029
        %4059 = vmatprep.subr.mxu0 0.0
        %4060 = vmatpush1.msra.mxu0 %v4030
        %4061 = vmatprep.subr.mxu0 0.0
        %4062 = vmatpush1.msra.mxu0 %v4031
        %4063 = vmatprep.subr.mxu0 0.0
        %4064 = vmatpush1.msra.mxu0 %v4032
        %4065 = vmatprep.subr.mxu0 0.0
        %4066 = vmatpush1.msra.mxu0 %v4033
        %4067 = vmatprep.subr.mxu0 0.0
        %4068 = vmatpush1.msra.mxu0 %v4034
        %4069 = vmatprep.subr.mxu0 0.0
        %4070 = vmatpush1.msra.mxu0 %v4035
        %4071 = vmatprep.subr.mxu0 0.0
        %4072 = vmatpush1.msra.mxu0 %v4036
        %4073 = vmatprep.subr.mxu0 0.0
        %4074 = vmatpush1.msra.mxu0 %v4037
        %4075 = vmatprep.subr.mxu0 0.0
        %4076 = vmatpush1.msra.mxu0 %v4038
        %4077 = vmatprep.subr.mxu0 0.0
        %4078 = vmatpush1.msra.mxu0 %v4039
        %4079 = vmatprep.subr.mxu0 0.0
        %4080 = vmatpush1.msra.mxu0 0.0
        %4081 = vmatprep.subr.mxu0 0.0
        %4082 = vmatpush1.msra.mxu0 0.0
        %4083 = vmatprep.subr.mxu0 0.0
        %4084 = vmatpush1.msra.mxu0 0.0
        %4085 = vmatprep.subr.mxu0 0.0
        %4086 = vmatpush1.msra.mxu0 0.0
        %4087 = vmatprep.subr.mxu0 0.0
        %4088 = vmatpush1.msra.mxu0 0.0
        %4089 = vmatprep.subr.mxu0 0.0
        %4090 = vmatpush1.msra.mxu0 0.0
        %4091 = vmatprep.subr.mxu0 0.0
        %4092 = vmatpush1.msra.mxu0 0.0
        %4093 = vmatprep.subr.mxu0 0.0
        %4094 = vmatpush1.msra.mxu0 0.0
        %4095 = vmatprep.subr.mxu0 0.0
        %4096 = vmatpush1.msra.mxu0 0.0
        %4097 = vmatprep.subr.mxu0 0.0
        %4098 = vmatpush1.msra.mxu0 0.0
        %4099 = vmatprep.subr.mxu0 0.0
        %4100 = vmatpush1.msra.mxu0 0.0
        %4101 = vmatprep.subr.mxu0 0.0
        %4102 = vmatpush1.msra.mxu0 0.0
        %4103 = vmatprep.subr.mxu0 0.0
        %4104 = vmatpush1.msra.mxu0 0.0
        %4105 = vmatprep.subr.mxu0 0.0
        %4106 = vmatpush1.msra.mxu0 0.0
        %4107 = vmatprep.subr.mxu0 0.0
        %4108 = vmatpush1.msra.mxu0 0.0
        %4109 = vmatprep.subr.mxu0 0.0
        %4110 = vmatpush1.msra.mxu0 0.0
        %4111 = vmatprep.mubr.f32.mxu0 0.0
        %4112 = vmatmul.mubr.f32.gmra.mrb[0].mxu0 %v4023
        %v4113 = vpop.f32.mrb[0].mxu0
        %v4114 = vadd.f32 %v4045, %v4113
        %v4115 = vpop.f32.mrb[0].mxu0
        %4116 = vdwg.mxu0
        %v4117 = vmax.f32 %v4114, 0.0
        %v4118 = vld [vmem:[%s8] sm:$0x1]
        %v4120 = vlaneseq
        %v4121 = vshrl.u32 %v4120, 7
        %v4122 = vsub.s32 0, %v4121
        %v4123 = vrot.slane %v4118, %v4122
        %v4125 = vmul.f32 %v4117, %v4123
        %vm4126 = vcmask 261120
        %v4127 = vsel %vm4126, %v4125, 0.0
        %4128 = vadd.xlane.f32.xlu0 %v4127
        %v4129 = vpop.xlane.xlu0 %4128
        %v4130 = vld [vmem:[#allocation6] sm:$0x1]
        %v4132 = vlaneseq
        %v4133 = vshrl.u32 %v4132, 7
        %v4134 = vsub.s32 0, %v4133
        %v4135 = vrot.slane %v4130, %v4134
        %v4137 = vadd.f32 %v4129, %v4135
        %vm4138 = vcmask 7168
        %4139 = vst.msk [vmem:[%s10] sm:$0xff] %vm4138, %v4137
      $region68: #{embedded_vector_classifier_forward.1} parent=59 // pred_fallthru
        _
      // Predicated region
      $region69: #{embedded_vector_classifier_forward.1} parent=59 // pred_check
        %p4140 = pneg %p251
      $region70: #{embedded_vector_classifier_forward.1} parent=59 // pred_check_branch
        %4142 = sbr.rel (%p4140) target = $region72
      $region71: #{embedded_vector_classifier_forward.1} parent=59 // pred_region
        _
      $region72: #{embedded_vector_classifier_forward.1} parent=59 // pred_fallthru
        _
      // Predicated region
      $region73: #{embedded_vector_classifier_forward.1} parent=59 // pred_check
        %p4143 = pneg %p251
      $region74: #{embedded_vector_classifier_forward.1} parent=59 // pred_check_branch
        %4145 = sbr.rel (%p4143) target = $region76
      $region75: #{embedded_vector_classifier_forward.1} parent=59 // pred_region
        _
      $region76: #{embedded_vector_classifier_forward.1} parent=59 // pred_fallthru
        _
    $region60: #{embedded_vector_classifier_forward.1} parent=5 // pred_fallthru
      _
    %p4146 = scmp.le.s32.totalorder 2, %s18
    // Predicated region
    $region77: #{embedded_vector_classifier_forward.1} parent=5 // pred_check
      %p4147 = pneg %p4146
    $region78: #{embedded_vector_classifier_forward.1} parent=5 // pred_check_branch
      %4149 = sbr.rel (%p4147) target = $region80
    $region79: #{embedded_vector_classifier_forward.1} parent=5 // pred_region
      %s4150 = ssub.s32 %s18, 2
    $region80: #{embedded_vector_classifier_forward.1} parent=5 // pred_fallthru
      _
  $region6: #{embedded_vector_classifier_forward.1} parent=0 // loop_footer
    %s22 = sadd.s32 1, %s18
  $region7: #{embedded_vector_classifier_forward.1} parent=0 // loop_footer_branch
    %17 = sbr.rel target = $region3
  $region8: #{embedded_vector_classifier_forward.1} parent=0 // loop_exit
    _

</llo_original>
